<compile_context>
chip_gen: v5e
topology: v5e:2x2
jax: 0.10.0
libtpu: 0.0.40
codegen_flags: <defaults>
</compile_context>

<pallas_src>
import jax
import jax.numpy as jnp
from jax import lax
from jax.experimental import pallas as pl
from jax.experimental.pallas import tpu as pltpu


def _sigmoid(x):
    # Exact identity: sigmoid(x) = 0.5 * (tanh(x/2) + 1).  tanh runs on the EUP
    # (separate bundle slot) and avoids divide / exp overflow on the serial path.
    return 0.5 * jnp.tanh(0.5 * x) + 0.5


# ----------------------------------------------------------------------------
# Fused kernel: stacked LSTM (h0 = hx, c0 = 0) + output projection + sigmoid.
# Sequence activations are kept flattened time-major (T*B, D) in VMEM scratch.
# ----------------------------------------------------------------------------
def _make_rnn_decoder_kernel(num_layers):
    def kernel(*refs):
        x_ref = refs[0]                       # (T*B, input_size), time-major flat
        hx_ref = refs[1]                      # (L, B, H)
        w_refs = refs[2:2 + 3 * num_layers]   # per layer: wih (4,Din,H), whh (4,H,H), b (4,1,H)
        wfc_ref, bfc_ref = refs[2 + 3 * num_layers:4 + 3 * num_layers]
        pred_ref, hN_ref, cN_ref = refs[4 + 3 * num_layers:7 + 3 * num_layers]
        seq_ref, zxi_ref, zxf_ref, zxg_ref, zxo_ref = refs[7 + 3 * num_layers:]

        _, B, H = hx_ref.shape
        T = x_ref.shape[0] // B
        zx_refs = (zxi_ref, zxf_ref, zxg_ref, zxo_ref)

        for l in range(num_layers):
            wih_ref = w_refs[3 * l]           # (4, Din_l, H)
            whh_ref = w_refs[3 * l + 1]       # (4, H, H)
            b_ref = w_refs[3 * l + 2]         # (4, 1, H)

            # ---- Input projection for the whole sequence, off the serial path.
            # One (T*B, Din) x (Din, H) matmul per gate, bias fused in.
            inp2d = x_ref[...] if l == 0 else seq_ref[...]     # (T*B, Din_l)
            for g in range(4):
                zx_refs[g][...] = (
                    jnp.dot(inp2d, wih_ref[g],
                            preferred_element_type=jnp.float32)
                    + b_ref[g])

            # Recurrent weights loaded once per layer (loop-invariant values).
            w_hi = whh_ref[0]
            w_hf = whh_ref[1]
            w_hg = whh_ref[2]
            w_ho = whh_ref[3]

            h0 = hx_ref[l]                                     # (B, H)
            c0 = jnp.zeros((B, H), jnp.float32)

            def step(t, carry):
                h, c = carry
                rows = pl.ds(t * B, B)                         # contiguous sublane slice
                gi = _sigmoid(zxi_ref[rows, :] +
                              jnp.dot(h, w_hi, preferred_element_type=jnp.float32))
                gf = _sigmoid(zxf_ref[rows, :] +
                              jnp.dot(h, w_hf, preferred_element_type=jnp.float32))
                gg = jnp.tanh(zxg_ref[rows, :] +
                              jnp.dot(h, w_hg, preferred_element_type=jnp.float32))
                go = _sigmoid(zxo_ref[rows, :] +
                              jnp.dot(h, w_ho, preferred_element_type=jnp.float32))
                c_new = gf * c + gi * gg
                h_new = go * jnp.tanh(c_new)
                seq_ref[rows, :] = h_new                       # layer output sequence
                return (h_new, c_new)

            h_fin, c_fin = lax.fori_loop(0, T, step, (h0, c0), unroll=True)
            hN_ref[l] = h_fin
            cN_ref[l] = c_fin

        # ---- Output projection: one flattened matmul + sigmoid, dense store.
        pred_ref[...] = _sigmoid(
            jnp.dot(seq_ref[...], wfc_ref[...],
                    preferred_element_type=jnp.float32)
            + bfc_ref[...])

    return kernel


# ----------------------------------------------------------------------------
# Wrapper: batch-first (B, T, D) in / out, single fused pallas_call.
# ----------------------------------------------------------------------------
def rnn_decoder_forward(params, x, hx):
    """x: (B, T, input_size); hx: (num_layers, B, hidden_size).
    Returns (prediction (B, T, output_size), (h_n, c_n) each (L, B, H))."""
    B, T, _ = x.shape
    L, _, H = hx.shape
    O = params["fc_w"].shape[1]

    # Single tiny relayout: flatten x to time-major rows (row t*B + b).
    x_tm = jnp.transpose(x.astype(jnp.float32), (1, 0, 2)).reshape(T * B, -1)

    args = [x_tm, hx.astype(jnp.float32)]
    for p in params["lstm"]:
        args += [p["wih"], p["whh"], p["b"]]
    args += [params["fc_w"], params["fc_b"]]

    vmem = pl.BlockSpec(memory_space=pltpu.MemorySpace.VMEM)
    pred_flat, h_n, c_n = pl.pallas_call(
        _make_rnn_decoder_kernel(L),
        out_shape=(jax.ShapeDtypeStruct((T * B, O), jnp.float32),
                   jax.ShapeDtypeStruct((L, B, H), jnp.float32),
                   jax.ShapeDtypeStruct((L, B, H), jnp.float32)),
        in_specs=[vmem] * len(args),
        out_specs=(vmem, vmem, vmem),
        scratch_shapes=[pltpu.VMEM((T * B, H), jnp.float32)] * 5,
    )(*args)

    prediction = jnp.transpose(pred_flat.reshape(T, B, O), (1, 0, 2))
    return prediction, (h_n, c_n)


# ----------------------------------------------------------------------------
# Parameters: synthesize in PyTorch layout, then one-time prep (transpose,
# per-gate split, bias fusion) hoisted out of the per-forward path.
# ----------------------------------------------------------------------------
def init_torch_layout_params(key, input_size, hidden_size, output_size, num_layers):
    def u(k, shape, scale=0.1):
        return jax.random.uniform(k, shape, jnp.float32, -scale, scale)

    keys = iter(jax.random.split(key, 4 * num_layers + 2))
    lstm = []
    for l in range(num_layers):
        din = input_size if l == 0 else hidden_size
        lstm.append(dict(
            w_ih=u(next(keys), (4 * hidden_size, din)),        # gate order i,f,g,o
            w_hh=u(next(keys), (4 * hidden_size, hidden_size)),
            b_ih=u(next(keys), (4 * hidden_size,)),
            b_hh=u(next(keys), (4 * hidden_size,))))
    return dict(lstm=lstm,
                fc_w=u(next(keys), (output_size, hidden_size)),
                fc_b=u(next(keys), (output_size,)))


def prepare_params(torch_params, hidden_size):
    H = hidden_size
    layers = []
    for p in torch_params["lstm"]:
        din = p["w_ih"].shape[1]
        wih = jnp.transpose(p["w_ih"]).reshape(din, 4, H).transpose(1, 0, 2)  # (4, Din, H)
        whh = jnp.transpose(p["w_hh"]).reshape(H, 4, H).transpose(1, 0, 2)    # (4, H, H)
        b = (p["b_ih"] + p["b_hh"]).reshape(4, 1, H)                          # fused bias
        layers.append(dict(wih=wih.astype(jnp.float32),
                           whh=whh.astype(jnp.float32),
                           b=b.astype(jnp.float32)))
    return dict(lstm=layers,
                fc_w=jnp.transpose(torch_params["fc_w"]).astype(jnp.float32),  # (H, O)
                fc_b=torch_params["fc_b"].reshape(1, -1).astype(jnp.float32))


# ----------------------------------------------------------------------------
# Pure-JAX reference (PyTorch semantics) for a correctness check.
# ----------------------------------------------------------------------------
def reference_forward(torch_params, x, hx):
    B, T, _ = x.shape
    L, _, H = hx.shape
    h = [hx[l] for l in range(L)]
    c = [jnp.zeros((B, H), jnp.float32) for _ in range(L)]
    inp = x
    for l in range(L):
        p = torch_params["lstm"][l]
        bias = p["b_ih"] + p["b_hh"]
        h_l, c_l = h[l], c[l]
        outs = []
        for t in range(T):
            z = inp[:, t, :] @ p["w_ih"].T + h_l @ p["w_hh"].T + bias
            i = jax.nn.sigmoid(z[:, 0 * H:1 * H])
            f = jax.nn.sigmoid(z[:, 1 * H:2 * H])
            g = jnp.tanh(z[:, 2 * H:3 * H])
            o = jax.nn.sigmoid(z[:, 3 * H:4 * H])
            c_l = f * c_l + i * g
            h_l = o * jnp.tanh(c_l)
            outs.append(h_l)
        inp = jnp.stack(outs, axis=1)
        h[l], c[l] = h_l, c_l
    pred = jax.nn.sigmoid(inp @ torch_params["fc_w"].T + torch_params["fc_b"])
    return pred, jnp.stack(h), jnp.stack(c)


if __name__ == "__main__":
    batch, seq_len = 2, 8
    input_size, hidden_size, output_size, num_layers = 16, 32, 16, 2

    key = jax.random.PRNGKey(0)
    k_param, k_x, k_h = jax.random.split(key, 3)
    torch_params = init_torch_layout_params(k_param, input_size, hidden_size,
                                            output_size, num_layers)
    params = prepare_params(torch_params, hidden_size)

    x = jax.random.normal(k_x, (batch, seq_len, input_size), jnp.float32)
    hx = jax.random.normal(k_h, (num_layers, batch, hidden_size), jnp.float32)

    fwd = jax.jit(rnn_decoder_forward)
    prediction, (h_n, c_n) = fwd(params, x, hx)
    jax.block_until_ready((prediction, h_n, c_n))

    assert prediction.shape == (batch, seq_len, output_size)
    assert h_n.shape == (num_layers, batch, hidden_size)
    assert c_n.shape == (num_layers, batch, hidden_size)
    assert bool(jnp.all(jnp.isfinite(prediction)))
    assert bool(jnp.all((prediction >= 0.0) & (prediction <= 1.0)))

    pred_ref, h_ref, c_ref = reference_forward(torch_params, x, hx)
    assert bool(jnp.allclose(prediction, pred_ref, atol=2e-3, rtol=2e-3))
    assert bool(jnp.allclose(h_n, h_ref, atol=2e-3, rtol=2e-3))
    assert bool(jnp.allclose(c_n, c_ref, atol=2e-3, rtol=2e-3))

    print("KERNEL_OK")
</pallas_src>

<mosaic_0001>
module attributes {stable_mosaic.version = 11 : i64} {
  func.func @kernel(%arg0: memref<16x16xf32, #tpu.memory_space<vmem>>, %arg1: memref<2x2x32xf32, #tpu.memory_space<vmem>>, %arg2: memref<4x16x32xf32, #tpu.memory_space<vmem>>, %arg3: memref<4x32x32xf32, #tpu.memory_space<vmem>>, %arg4: memref<4x1x32xf32, #tpu.memory_space<vmem>>, %arg5: memref<4x32x32xf32, #tpu.memory_space<vmem>>, %arg6: memref<4x32x32xf32, #tpu.memory_space<vmem>>, %arg7: memref<4x1x32xf32, #tpu.memory_space<vmem>>, %arg8: memref<32x16xf32, #tpu.memory_space<vmem>>, %arg9: memref<1x16xf32, #tpu.memory_space<vmem>>, %arg10: memref<16x16xf32, #tpu.memory_space<vmem>>, %arg11: memref<2x2x32xf32, #tpu.memory_space<vmem>>, %arg12: memref<2x2x32xf32, #tpu.memory_space<vmem>>, %arg13: memref<16x32xf32, #tpu.memory_space<vmem>>, %arg14: memref<16x32xf32, #tpu.memory_space<vmem>>, %arg15: memref<16x32xf32, #tpu.memory_space<vmem>>, %arg16: memref<16x32xf32, #tpu.memory_space<vmem>>, %arg17: memref<16x32xf32, #tpu.memory_space<vmem>>) attributes {dimension_semantics = [], scalar_prefetch = 0 : i64, scratch_operands = 5 : i64, tpu.core_type = #tpu.core_type<tc>} {
    %c0 = arith.constant 0 : index
    %c0_0 = arith.constant 0 : index
    %0 = vector.load %arg0[%c0, %c0_0] : memref<16x16xf32, #tpu.memory_space<vmem>>, vector<16x16xf32>
    %c0_1 = arith.constant 0 : index
    %c0_2 = arith.constant 0 : index
    %c0_3 = arith.constant 0 : index
    %1 = vector.load %arg2[%c0_1, %c0_2, %c0_3] : memref<4x16x32xf32, #tpu.memory_space<vmem>>, vector<1x16x32xf32>
    %2 = vector.shape_cast %1 : vector<1x16x32xf32> to vector<16x32xf32>
    %cst = arith.constant dense<0.000000e+00> : vector<16x32xf32>
    %3 = tpu.matmul %0, %2, %cst {dimension_numbers = #tpu.dot_dimension_numbers<[1], [0], [0], [1], [0, 0, 1, 1], [], []>} : vector<16x16xf32>, vector<16x32xf32>, vector<16x32xf32> -> vector<16x32xf32>
    %c0_4 = arith.constant 0 : index
    %c0_5 = arith.constant 0 : index
    %c0_6 = arith.constant 0 : index
    %4 = vector.load %arg4[%c0_4, %c0_5, %c0_6] : memref<4x1x32xf32, #tpu.memory_space<vmem>>, vector<1x1x32xf32>
    %5 = vector.shape_cast %4 : vector<1x1x32xf32> to vector<1x32xf32>
    %6 = vector.broadcast %5 : vector<1x32xf32> to vector<16x32xf32>
    %7 = arith.addf %3, %6 : vector<16x32xf32>
    %c0_7 = arith.constant 0 : index
    %c0_8 = arith.constant 0 : index
    %8 = vector.load %arg14[%c0_7, %c0_8] : memref<16x32xf32, #tpu.memory_space<vmem>>, vector<16x32xf32>
    tpu.vector_store %arg14[%c0_7, %c0_8], %7 {strides = array<i32>} : memref<16x32xf32, #tpu.memory_space<vmem>>, vector<16x32xf32>,
    %c1 = arith.constant 1 : index
    %c0_9 = arith.constant 0 : index
    %c0_10 = arith.constant 0 : index
    %9 = vector.load %arg2[%c1, %c0_9, %c0_10] : memref<4x16x32xf32, #tpu.memory_space<vmem>>, vector<1x16x32xf32>
    %10 = vector.shape_cast %9 : vector<1x16x32xf32> to vector<16x32xf32>
    %cst_11 = arith.constant dense<0.000000e+00> : vector<16x32xf32>
    %11 = tpu.matmul %0, %10, %cst_11 {dimension_numbers = #tpu.dot_dimension_numbers<[1], [0], [0], [1], [0, 0, 1, 1], [], []>} : vector<16x16xf32>, vector<16x32xf32>, vector<16x32xf32> -> vector<16x32xf32>
    %c1_12 = arith.constant 1 : index
    %c0_13 = arith.constant 0 : index
    %c0_14 = arith.constant 0 : index
    %12 = vector.load %arg4[%c1_12, %c0_13, %c0_14] : memref<4x1x32xf32, #tpu.memory_space<vmem>>, vector<1x1x32xf32>
    %13 = vector.shape_cast %12 : vector<1x1x32xf32> to vector<1x32xf32>
    %14 = vector.broadcast %13 : vector<1x32xf32> to vector<16x32xf32>
    %15 = arith.addf %11, %14 : vector<16x32xf32>
    %c0_15 = arith.constant 0 : index
    %c0_16 = arith.constant 0 : index
    %16 = vector.load %arg15[%c0_15, %c0_16] : memref<16x32xf32, #tpu.memory_space<vmem>>, vector<16x32xf32>
    tpu.vector_store %arg15[%c0_15, %c0_16], %15 {strides = array<i32>} : memref<16x32xf32, #tpu.memory_space<vmem>>, vector<16x32xf32>,
    %c2 = arith.constant 2 : index
    %c0_17 = arith.constant 0 : index
    %c0_18 = arith.constant 0 : index
    %17 = vector.load %arg2[%c2, %c0_17, %c0_18] : memref<4x16x32xf32, #tpu.memory_space<vmem>>, vector<1x16x32xf32>
    %18 = vector.shape_cast %17 : vector<1x16x32xf32> to vector<16x32xf32>
    %cst_19 = arith.constant dense<0.000000e+00> : vector<16x32xf32>
    %19 = tpu.matmul %0, %18, %cst_19 {dimension_numbers = #tpu.dot_dimension_numbers<[1], [0], [0], [1], [0, 0, 1, 1], [], []>} : vector<16x16xf32>, vector<16x32xf32>, vector<16x32xf32> -> vector<16x32xf32>
    %c2_20 = arith.constant 2 : index
    %c0_21 = arith.constant 0 : index
    %c0_22 = arith.constant 0 : index
    %20 = vector.load %arg4[%c2_20, %c0_21, %c0_22] : memref<4x1x32xf32, #tpu.memory_space<vmem>>, vector<1x1x32xf32>
    %21 = vector.shape_cast %20 : vector<1x1x32xf32> to vector<1x32xf32>
    %22 = vector.broadcast %21 : vector<1x32xf32> to vector<16x32xf32>
    %23 = arith.addf %19, %22 : vector<16x32xf32>
    %c0_23 = arith.constant 0 : index
    %c0_24 = arith.constant 0 : index
    %24 = vector.load %arg16[%c0_23, %c0_24] : memref<16x32xf32, #tpu.memory_space<vmem>>, vector<16x32xf32>
    tpu.vector_store %arg16[%c0_23, %c0_24], %23 {strides = array<i32>} : memref<16x32xf32, #tpu.memory_space<vmem>>, vector<16x32xf32>,
    %c3 = arith.constant 3 : index
    %c0_25 = arith.constant 0 : index
    %c0_26 = arith.constant 0 : index
    %25 = vector.load %arg2[%c3, %c0_25, %c0_26] : memref<4x16x32xf32, #tpu.memory_space<vmem>>, vector<1x16x32xf32>
    %26 = vector.shape_cast %25 : vector<1x16x32xf32> to vector<16x32xf32>
    %cst_27 = arith.constant dense<0.000000e+00> : vector<16x32xf32>
    %27 = tpu.matmul %0, %26, %cst_27 {dimension_numbers = #tpu.dot_dimension_numbers<[1], [0], [0], [1], [0, 0, 1, 1], [], []>} : vector<16x16xf32>, vector<16x32xf32>, vector<16x32xf32> -> vector<16x32xf32>
    %c3_28 = arith.constant 3 : index
    %c0_29 = arith.constant 0 : index
    %c0_30 = arith.constant 0 : index
    %28 = vector.load %arg4[%c3_28, %c0_29, %c0_30] : memref<4x1x32xf32, #tpu.memory_space<vmem>>, vector<1x1x32xf32>
    %29 = vector.shape_cast %28 : vector<1x1x32xf32> to vector<1x32xf32>
    %30 = vector.broadcast %29 : vector<1x32xf32> to vector<16x32xf32>
    %31 = arith.addf %27, %30 : vector<16x32xf32>
    %c0_31 = arith.constant 0 : index
    %c0_32 = arith.constant 0 : index
    %32 = vector.load %arg17[%c0_31, %c0_32] : memref<16x32xf32, #tpu.memory_space<vmem>>, vector<16x32xf32>
    tpu.vector_store %arg17[%c0_31, %c0_32], %31 {strides = array<i32>} : memref<16x32xf32, #tpu.memory_space<vmem>>, vector<16x32xf32>,
    %c0_33 = arith.constant 0 : index
    %c0_34 = arith.constant 0 : index
    %c0_35 = arith.constant 0 : index
    %33 = vector.load %arg3[%c0_33, %c0_34, %c0_35] : memref<4x32x32xf32, #tpu.memory_space<vmem>>, vector<1x32x32xf32>
    %34 = vector.shape_cast %33 : vector<1x32x32xf32> to vector<32x32xf32>
    %c1_36 = arith.constant 1 : index
    %c0_37 = arith.constant 0 : index
    %c0_38 = arith.constant 0 : index
    %35 = vector.load %arg3[%c1_36, %c0_37, %c0_38] : memref<4x32x32xf32, #tpu.memory_space<vmem>>, vector<1x32x32xf32>
    %36 = vector.shape_cast %35 : vector<1x32x32xf32> to vector<32x32xf32>
    %c2_39 = arith.constant 2 : index
    %c0_40 = arith.constant 0 : index
    %c0_41 = arith.constant 0 : index
    %37 = vector.load %arg3[%c2_39, %c0_40, %c0_41] : memref<4x32x32xf32, #tpu.memory_space<vmem>>, vector<1x32x32xf32>
    %38 = vector.shape_cast %37 : vector<1x32x32xf32> to vector<32x32xf32>
    %c3_42 = arith.constant 3 : index
    %c0_43 = arith.constant 0 : index
    %c0_44 = arith.constant 0 : index
    %39 = vector.load %arg3[%c3_42, %c0_43, %c0_44] : memref<4x32x32xf32, #tpu.memory_space<vmem>>, vector<1x32x32xf32>
    %40 = vector.shape_cast %39 : vector<1x32x32xf32> to vector<32x32xf32>
    %c0_45 = arith.constant 0 : index
    %c0_46 = arith.constant 0 : index
    %c0_47 = arith.constant 0 : index
    %41 = vector.load %arg1[%c0_45, %c0_46, %c0_47] : memref<2x2x32xf32, #tpu.memory_space<vmem>>, vector<1x2x32xf32>
    %42 = vector.shape_cast %41 : vector<1x2x32xf32> to vector<2x32xf32>
    %cst_48 = arith.constant 0.000000e+00 : f32
    %43 = vector.broadcast %cst_48 : f32 to vector<2x32xf32>
    %c0_i32 = arith.constant 0 : i32
    %c2_i32 = arith.constant 2 : i32
    %44 = arith.muli %c0_i32, %c2_i32 : i32
    %45 = arith.index_cast %44 : i32 to index
    %c0_49 = arith.constant 0 : index
    %46 = vector.load %arg14[%45, %c0_49] : memref<16x32xf32, #tpu.memory_space<vmem>>, vector<2x32xf32>
    %cst_50 = arith.constant dense<0.000000e+00> : vector<2x32xf32>
    %47 = tpu.matmul %42, %34, %cst_50 {dimension_numbers = #tpu.dot_dimension_numbers<[1], [0], [0], [1], [0, 0, 1, 1], [], []>} : vector<2x32xf32>, vector<32x32xf32>, vector<2x32xf32> -> vector<2x32xf32>
    %48 = arith.addf %46, %47 : vector<2x32xf32>
    %cst_51 = arith.constant 5.000000e-01 : f32
    %49 = vector.broadcast %cst_51 : f32 to vector<2x32xf32>
    %50 = arith.mulf %49, %48 : vector<2x32xf32>
    %51 = math.tanh %50 : vector<2x32xf32>
    %cst_52 = arith.constant 5.000000e-01 : f32
    %52 = vector.broadcast %cst_52 : f32 to vector<2x32xf32>
    %53 = arith.mulf %52, %51 : vector<2x32xf32>
    %cst_53 = arith.constant 5.000000e-01 : f32
    %54 = vector.broadcast %cst_53 : f32 to vector<2x32xf32>
    %55 = arith.addf %53, %54 : vector<2x32xf32>
    %56 = arith.index_cast %44 : i32 to index
    %c0_54 = arith.constant 0 : index
    %57 = vector.load %arg15[%56, %c0_54] : memref<16x32xf32, #tpu.memory_space<vmem>>, vector<2x32xf32>
    %cst_55 = arith.constant dense<0.000000e+00> : vector<2x32xf32>
    %58 = tpu.matmul %42, %36, %cst_55 {dimension_numbers = #tpu.dot_dimension_numbers<[1], [0], [0], [1], [0, 0, 1, 1], [], []>} : vector<2x32xf32>, vector<32x32xf32>, vector<2x32xf32> -> vector<2x32xf32>
    %59 = arith.addf %57, %58 : vector<2x32xf32>
    %cst_56 = arith.constant 5.000000e-01 : f32
    %60 = vector.broadcast %cst_56 : f32 to vector<2x32xf32>
    %61 = arith.mulf %60, %59 : vector<2x32xf32>
    %62 = math.tanh %61 : vector<2x32xf32>
    %cst_57 = arith.constant 5.000000e-01 : f32
    %63 = vector.broadcast %cst_57 : f32 to vector<2x32xf32>
    %64 = arith.mulf %63, %62 : vector<2x32xf32>
    %cst_58 = arith.constant 5.000000e-01 : f32
    %65 = vector.broadcast %cst_58 : f32 to vector<2x32xf32>
    %66 = arith.addf %64, %65 : vector<2x32xf32>
    %67 = arith.index_cast %44 : i32 to index
    %c0_59 = arith.constant 0 : index
    %68 = vector.load %arg16[%67, %c0_59] : memref<16x32xf32, #tpu.memory_space<vmem>>, vector<2x32xf32>
    %cst_60 = arith.constant dense<0.000000e+00> : vector<2x32xf32>
    %69 = tpu.matmul %42, %38, %cst_60 {dimension_numbers = #tpu.dot_dimension_numbers<[1], [0], [0], [1], [0, 0, 1, 1], [], []>} : vector<2x32xf32>, vector<32x32xf32>, vector<2x32xf32> -> vector<2x32xf32>
    %70 = arith.addf %68, %69 : vector<2x32xf32>
    %71 = math.tanh %70 : vector<2x32xf32>
    %72 = arith.index_cast %44 : i32 to index
    %c0_61 = arith.constant 0 : index
    %73 = vector.load %arg17[%72, %c0_61] : memref<16x32xf32, #tpu.memory_space<vmem>>, vector<2x32xf32>
    %cst_62 = arith.constant dense<0.000000e+00> : vector<2x32xf32>
    %74 = tpu.matmul %42, %40, %cst_62 {dimension_numbers = #tpu.dot_dimension_numbers<[1], [0], [0], [1], [0, 0, 1, 1], [], []>} : vector<2x32xf32>, vector<32x32xf32>, vector<2x32xf32> -> vector<2x32xf32>
    %75 = arith.addf %73, %74 : vector<2x32xf32>
    %cst_63 = arith.constant 5.000000e-01 : f32
    %76 = vector.broadcast %cst_63 : f32 to vector<2x32xf32>
    %77 = arith.mulf %76, %75 : vector<2x32xf32>
    %78 = math.tanh %77 : vector<2x32xf32>
    %cst_64 = arith.constant 5.000000e-01 : f32
    %79 = vector.broadcast %cst_64 : f32 to vector<2x32xf32>
    %80 = arith.mulf %79, %78 : vector<2x32xf32>
    %cst_65 = arith.constant 5.000000e-01 : f32
    %81 = vector.broadcast %cst_65 : f32 to vector<2x32xf32>
    %82 = arith.addf %80, %81 : vector<2x32xf32>
    %83 = arith.mulf %66, %43 : vector<2x32xf32>
    %84 = arith.mulf %55, %71 : vector<2x32xf32>
    %85 = arith.addf %83, %84 : vector<2x32xf32>
    %86 = math.tanh %85 : vector<2x32xf32>
    %87 = arith.mulf %82, %86 : vector<2x32xf32>
    %88 = arith.index_cast %44 : i32 to index
    %c0_66 = arith.constant 0 : index
    %89 = vector.load %arg13[%88, %c0_66] : memref<16x32xf32, #tpu.memory_space<vmem>>, vector<2x32xf32>
    tpu.vector_store %arg13[%88, %c0_66], %87 {strides = array<i32>} : memref<16x32xf32, #tpu.memory_space<vmem>>, vector<2x32xf32>,
    %c1_i32 = arith.constant 1 : i32
    %c2_i32_67 = arith.constant 2 : i32
    %90 = arith.muli %c1_i32, %c2_i32_67 : i32
    %91 = arith.index_cast %90 : i32 to index
    %c0_68 = arith.constant 0 : index
    %92 = vector.load %arg14[%91, %c0_68] : memref<16x32xf32, #tpu.memory_space<vmem>>, vector<2x32xf32>
    %cst_69 = arith.constant dense<0.000000e+00> : vector<2x32xf32>
    %93 = tpu.matmul %87, %34, %cst_69 {dimension_numbers = #tpu.dot_dimension_numbers<[1], [0], [0], [1], [0, 0, 1, 1], [], []>} : vector<2x32xf32>, vector<32x32xf32>, vector<2x32xf32> -> vector<2x32xf32>
    %94 = arith.addf %92, %93 : vector<2x32xf32>
    %cst_70 = arith.constant 5.000000e-01 : f32
    %95 = vector.broadcast %cst_70 : f32 to vector<2x32xf32>
    %96 = arith.mulf %95, %94 : vector<2x32xf32>
    %97 = math.tanh %96 : vector<2x32xf32>
    %cst_71 = arith.constant 5.000000e-01 : f32
    %98 = vector.broadcast %cst_71 : f32 to vector<2x32xf32>
    %99 = arith.mulf %98, %97 : vector<2x32xf32>
    %cst_72 = arith.constant 5.000000e-01 : f32
    %100 = vector.broadcast %cst_72 : f32 to vector<2x32xf32>
    %101 = arith.addf %99, %100 : vector<2x32xf32>
    %102 = arith.index_cast %90 : i32 to index
    %c0_73 = arith.constant 0 : index
    %103 = vector.load %arg15[%102, %c0_73] : memref<16x32xf32, #tpu.memory_space<vmem>>, vector<2x32xf32>
    %cst_74 = arith.constant dense<0.000000e+00> : vector<2x32xf32>
    %104 = tpu.matmul %87, %36, %cst_74 {dimension_numbers = #tpu.dot_dimension_numbers<[1], [0], [0], [1], [0, 0, 1, 1], [], []>} : vector<2x32xf32>, vector<32x32xf32>, vector<2x32xf32> -> vector<2x32xf32>
    %105 = arith.addf %103, %104 : vector<2x32xf32>
    %cst_75 = arith.constant 5.000000e-01 : f32
    %106 = vector.broadcast %cst_75 : f32 to vector<2x32xf32>
    %107 = arith.mulf %106, %105 : vector<2x32xf32>
    %108 = math.tanh %107 : vector<2x32xf32>
    %cst_76 = arith.constant 5.000000e-01 : f32
    %109 = vector.broadcast %cst_76 : f32 to vector<2x32xf32>
    %110 = arith.mulf %109, %108 : vector<2x32xf32>
    %cst_77 = arith.constant 5.000000e-01 : f32
    %111 = vector.broadcast %cst_77 : f32 to vector<2x32xf32>
    %112 = arith.addf %110, %111 : vector<2x32xf32>
    %113 = arith.index_cast %90 : i32 to index
    %c0_78 = arith.constant 0 : index
    %114 = vector.load %arg16[%113, %c0_78] : memref<16x32xf32, #tpu.memory_space<vmem>>, vector<2x32xf32>
    %cst_79 = arith.constant dense<0.000000e+00> : vector<2x32xf32>
    %115 = tpu.matmul %87, %38, %cst_79 {dimension_numbers = #tpu.dot_dimension_numbers<[1], [0], [0], [1], [0, 0, 1, 1], [], []>} : vector<2x32xf32>, vector<32x32xf32>, vector<2x32xf32> -> vector<2x32xf32>
    %116 = arith.addf %114, %115 : vector<2x32xf32>
    %117 = math.tanh %116 : vector<2x32xf32>
    %118 = arith.index_cast %90 : i32 to index
    %c0_80 = arith.constant 0 : index
    %119 = vector.load %arg17[%118, %c0_80] : memref<16x32xf32, #tpu.memory_space<vmem>>, vector<2x32xf32>
    %cst_81 = arith.constant dense<0.000000e+00> : vector<2x32xf32>
    %120 = tpu.matmul %87, %40, %cst_81 {dimension_numbers = #tpu.dot_dimension_numbers<[1], [0], [0], [1], [0, 0, 1, 1], [], []>} : vector<2x32xf32>, vector<32x32xf32>, vector<2x32xf32> -> vector<2x32xf32>
    %121 = arith.addf %119, %120 : vector<2x32xf32>
    %cst_82 = arith.constant 5.000000e-01 : f32
    %122 = vector.broadcast %cst_82 : f32 to vector<2x32xf32>
    %123 = arith.mulf %122, %121 : vector<2x32xf32>
    %124 = math.tanh %123 : vector<2x32xf32>
    %cst_83 = arith.constant 5.000000e-01 : f32
    %125 = vector.broadcast %cst_83 : f32 to vector<2x32xf32>
    %126 = arith.mulf %125, %124 : vector<2x32xf32>
    %cst_84 = arith.constant 5.000000e-01 : f32
    %127 = vector.broadcast %cst_84 : f32 to vector<2x32xf32>
    %128 = arith.addf %126, %127 : vector<2x32xf32>
    %129 = arith.mulf %112, %85 : vector<2x32xf32>
    %130 = arith.mulf %101, %117 : vector<2x32xf32>
    %131 = arith.addf %129, %130 : vector<2x32xf32>
    %132 = math.tanh %131 : vector<2x32xf32>
    %133 = arith.mulf %128, %132 : vector<2x32xf32>
    %134 = arith.index_cast %90 : i32 to index
    %c0_85 = arith.constant 0 : index
    %135 = vector.load %arg13[%134, %c0_85] : memref<16x32xf32, #tpu.memory_space<vmem>>, vector<2x32xf32>
    tpu.vector_store %arg13[%134, %c0_85], %133 {strides = array<i32>} : memref<16x32xf32, #tpu.memory_space<vmem>>, vector<2x32xf32>,
    %c2_i32_86 = arith.constant 2 : i32
    %c2_i32_87 = arith.constant 2 : i32
    %136 = arith.muli %c2_i32_86, %c2_i32_87 : i32
    %137 = arith.index_cast %136 : i32 to index
    %c0_88 = arith.constant 0 : index
    %138 = vector.load %arg14[%137, %c0_88] : memref<16x32xf32, #tpu.memory_space<vmem>>, vector<2x32xf32>
    %cst_89 = arith.constant dense<0.000000e+00> : vector<2x32xf32>
    %139 = tpu.matmul %133, %34, %cst_89 {dimension_numbers = #tpu.dot_dimension_numbers<[1], [0], [0], [1], [0, 0, 1, 1], [], []>} : vector<2x32xf32>, vector<32x32xf32>, vector<2x32xf32> -> vector<2x32xf32>
    %140 = arith.addf %138, %139 : vector<2x32xf32>
    %cst_90 = arith.constant 5.000000e-01 : f32
    %141 = vector.broadcast %cst_90 : f32 to vector<2x32xf32>
    %142 = arith.mulf %141, %140 : vector<2x32xf32>
    %143 = math.tanh %142 : vector<2x32xf32>
    %cst_91 = arith.constant 5.000000e-01 : f32
    %144 = vector.broadcast %cst_91 : f32 to vector<2x32xf32>
    %145 = arith.mulf %144, %143 : vector<2x32xf32>
    %cst_92 = arith.constant 5.000000e-01 : f32
    %146 = vector.broadcast %cst_92 : f32 to vector<2x32xf32>
    %147 = arith.addf %145, %146 : vector<2x32xf32>
    %148 = arith.index_cast %136 : i32 to index
    %c0_93 = arith.constant 0 : index
    %149 = vector.load %arg15[%148, %c0_93] : memref<16x32xf32, #tpu.memory_space<vmem>>, vector<2x32xf32>
    %cst_94 = arith.constant dense<0.000000e+00> : vector<2x32xf32>
    %150 = tpu.matmul %133, %36, %cst_94 {dimension_numbers = #tpu.dot_dimension_numbers<[1], [0], [0], [1], [0, 0, 1, 1], [], []>} : vector<2x32xf32>, vector<32x32xf32>, vector<2x32xf32> -> vector<2x32xf32>
    %151 = arith.addf %149, %150 : vector<2x32xf32>
    %cst_95 = arith.constant 5.000000e-01 : f32
    %152 = vector.broadcast %cst_95 : f32 to vector<2x32xf32>
    %153 = arith.mulf %152, %151 : vector<2x32xf32>
    %154 = math.tanh %153 : vector<2x32xf32>
    %cst_96 = arith.constant 5.000000e-01 : f32
    %155 = vector.broadcast %cst_96 : f32 to vector<2x32xf32>
    %156 = arith.mulf %155, %154 : vector<2x32xf32>
    %cst_97 = arith.constant 5.000000e-01 : f32
    %157 = vector.broadcast %cst_97 : f32 to vector<2x32xf32>
    %158 = arith.addf %156, %157 : vector<2x32xf32>
    %159 = arith.index_cast %136 : i32 to index
    %c0_98 = arith.constant 0 : index
    %160 = vector.load %arg16[%159, %c0_98] : memref<16x32xf32, #tpu.memory_space<vmem>>, vector<2x32xf32>
    %cst_99 = arith.constant dense<0.000000e+00> : vector<2x32xf32>
    %161 = tpu.matmul %133, %38, %cst_99 {dimension_numbers = #tpu.dot_dimension_numbers<[1], [0], [0], [1], [0, 0, 1, 1], [], []>} : vector<2x32xf32>, vector<32x32xf32>, vector<2x32xf32> -> vector<2x32xf32>
    %162 = arith.addf %160, %161 : vector<2x32xf32>
    %163 = math.tanh %162 : vector<2x32xf32>
    %164 = arith.index_cast %136 : i32 to index
    %c0_100 = arith.constant 0 : index
    %165 = vector.load %arg17[%164, %c0_100] : memref<16x32xf32, #tpu.memory_space<vmem>>, vector<2x32xf32>
    %cst_101 = arith.constant dense<0.000000e+00> : vector<2x32xf32>
    %166 = tpu.matmul %133, %40, %cst_101 {dimension_numbers = #tpu.dot_dimension_numbers<[1], [0], [0], [1], [0, 0, 1, 1], [], []>} : vector<2x32xf32>, vector<32x32xf32>, vector<2x32xf32> -> vector<2x32xf32>
    %167 = arith.addf %165, %166 : vector<2x32xf32>
    %cst_102 = arith.constant 5.000000e-01 : f32
    %168 = vector.broadcast %cst_102 : f32 to vector<2x32xf32>
    %169 = arith.mulf %168, %167 : vector<2x32xf32>
    %170 = math.tanh %169 : vector<2x32xf32>
    %cst_103 = arith.constant 5.000000e-01 : f32
    %171 = vector.broadcast %cst_103 : f32 to vector<2x32xf32>
    %172 = arith.mulf %171, %170 : vector<2x32xf32>
    %cst_104 = arith.constant 5.000000e-01 : f32
    %173 = vector.broadcast %cst_104 : f32 to vector<2x32xf32>
    %174 = arith.addf %172, %173 : vector<2x32xf32>
    %175 = arith.mulf %158, %131 : vector<2x32xf32>
    %176 = arith.mulf %147, %163 : vector<2x32xf32>
    %177 = arith.addf %175, %176 : vector<2x32xf32>
    %178 = math.tanh %177 : vector<2x32xf32>
    %179 = arith.mulf %174, %178 : vector<2x32xf32>
    %180 = arith.index_cast %136 : i32 to index
    %c0_105 = arith.constant 0 : index
    %181 = vector.load %arg13[%180, %c0_105] : memref<16x32xf32, #tpu.memory_space<vmem>>, vector<2x32xf32>
    tpu.vector_store %arg13[%180, %c0_105], %179 {strides = array<i32>} : memref<16x32xf32, #tpu.memory_space<vmem>>, vector<2x32xf32>,
    %c3_i32 = arith.constant 3 : i32
    %c2_i32_106 = arith.constant 2 : i32
    %182 = arith.muli %c3_i32, %c2_i32_106 : i32
    %183 = arith.index_cast %182 : i32 to index
    %c0_107 = arith.constant 0 : index
    %184 = vector.load %arg14[%183, %c0_107] : memref<16x32xf32, #tpu.memory_space<vmem>>, vector<2x32xf32>
    %cst_108 = arith.constant dense<0.000000e+00> : vector<2x32xf32>
    %185 = tpu.matmul %179, %34, %cst_108 {dimension_numbers = #tpu.dot_dimension_numbers<[1], [0], [0], [1], [0, 0, 1, 1], [], []>} : vector<2x32xf32>, vector<32x32xf32>, vector<2x32xf32> -> vector<2x32xf32>
    %186 = arith.addf %184, %185 : vector<2x32xf32>
    %cst_109 = arith.constant 5.000000e-01 : f32
    %187 = vector.broadcast %cst_109 : f32 to vector<2x32xf32>
    %188 = arith.mulf %187, %186 : vector<2x32xf32>
    %189 = math.tanh %188 : vector<2x32xf32>
    %cst_110 = arith.constant 5.000000e-01 : f32
    %190 = vector.broadcast %cst_110 : f32 to vector<2x32xf32>
    %191 = arith.mulf %190, %189 : vector<2x32xf32>
    %cst_111 = arith.constant 5.000000e-01 : f32
    %192 = vector.broadcast %cst_111 : f32 to vector<2x32xf32>
    %193 = arith.addf %191, %192 : vector<2x32xf32>
    %194 = arith.index_cast %182 : i32 to index
    %c0_112 = arith.constant 0 : index
    %195 = vector.load %arg15[%194, %c0_112] : memref<16x32xf32, #tpu.memory_space<vmem>>, vector<2x32xf32>
    %cst_113 = arith.constant dense<0.000000e+00> : vector<2x32xf32>
    %196 = tpu.matmul %179, %36, %cst_113 {dimension_numbers = #tpu.dot_dimension_numbers<[1], [0], [0], [1], [0, 0, 1, 1], [], []>} : vector<2x32xf32>, vector<32x32xf32>, vector<2x32xf32> -> vector<2x32xf32>
    %197 = arith.addf %195, %196 : vector<2x32xf32>
    %cst_114 = arith.constant 5.000000e-01 : f32
    %198 = vector.broadcast %cst_114 : f32 to vector<2x32xf32>
    %199 = arith.mulf %198, %197 : vector<2x32xf32>
    %200 = math.tanh %199 : vector<2x32xf32>
    %cst_115 = arith.constant 5.000000e-01 : f32
    %201 = vector.broadcast %cst_115 : f32 to vector<2x32xf32>
    %202 = arith.mulf %201, %200 : vector<2x32xf32>
    %cst_116 = arith.constant 5.000000e-01 : f32
    %203 = vector.broadcast %cst_116 : f32 to vector<2x32xf32>
    %204 = arith.addf %202, %203 : vector<2x32xf32>
    %205 = arith.index_cast %182 : i32 to index
    %c0_117 = arith.constant 0 : index
    %206 = vector.load %arg16[%205, %c0_117] : memref<16x32xf32, #tpu.memory_space<vmem>>, vector<2x32xf32>
    %cst_118 = arith.constant dense<0.000000e+00> : vector<2x32xf32>
    %207 = tpu.matmul %179, %38, %cst_118 {dimension_numbers = #tpu.dot_dimension_numbers<[1], [0], [0], [1], [0, 0, 1, 1], [], []>} : vector<2x32xf32>, vector<32x32xf32>, vector<2x32xf32> -> vector<2x32xf32>
    %208 = arith.addf %206, %207 : vector<2x32xf32>
    %209 = math.tanh %208 : vector<2x32xf32>
    %210 = arith.index_cast %182 : i32 to index
    %c0_119 = arith.constant 0 : index
    %211 = vector.load %arg17[%210, %c0_119] : memref<16x32xf32, #tpu.memory_space<vmem>>, vector<2x32xf32>
    %cst_120 = arith.constant dense<0.000000e+00> : vector<2x32xf32>
    %212 = tpu.matmul %179, %40, %cst_120 {dimension_numbers = #tpu.dot_dimension_numbers<[1], [0], [0], [1], [0, 0, 1, 1], [], []>} : vector<2x32xf32>, vector<32x32xf32>, vector<2x32xf32> -> vector<2x32xf32>
    %213 = arith.addf %211, %212 : vector<2x32xf32>
    %cst_121 = arith.constant 5.000000e-01 : f32
    %214 = vector.broadcast %cst_121 : f32 to vector<2x32xf32>
    %215 = arith.mulf %214, %213 : vector<2x32xf32>
    %216 = math.tanh %215 : vector<2x32xf32>
    %cst_122 = arith.constant 5.000000e-01 : f32
    %217 = vector.broadcast %cst_122 : f32 to vector<2x32xf32>
    %218 = arith.mulf %217, %216 : vector<2x32xf32>
    %cst_123 = arith.constant 5.000000e-01 : f32
    %219 = vector.broadcast %cst_123 : f32 to vector<2x32xf32>
    %220 = arith.addf %218, %219 : vector<2x32xf32>
    %221 = arith.mulf %204, %177 : vector<2x32xf32>
    %222 = arith.mulf %193, %209 : vector<2x32xf32>
    %223 = arith.addf %221, %222 : vector<2x32xf32>
    %224 = math.tanh %223 : vector<2x32xf32>
    %225 = arith.mulf %220, %224 : vector<2x32xf32>
    %226 = arith.index_cast %182 : i32 to index
    %c0_124 = arith.constant 0 : index
    %227 = vector.load %arg13[%226, %c0_124] : memref<16x32xf32, #tpu.memory_space<vmem>>, vector<2x32xf32>
    tpu.vector_store %arg13[%226, %c0_124], %225 {strides = array<i32>} : memref<16x32xf32, #tpu.memory_space<vmem>>, vector<2x32xf32>,
    %c4_i32 = arith.constant 4 : i32
    %c2_i32_125 = arith.constant 2 : i32
    %228 = arith.muli %c4_i32, %c2_i32_125 : i32
    %229 = arith.index_cast %228 : i32 to index
    %c0_126 = arith.constant 0 : index
    %230 = vector.load %arg14[%229, %c0_126] : memref<16x32xf32, #tpu.memory_space<vmem>>, vector<2x32xf32>
    %cst_127 = arith.constant dense<0.000000e+00> : vector<2x32xf32>
    %231 = tpu.matmul %225, %34, %cst_127 {dimension_numbers = #tpu.dot_dimension_numbers<[1], [0], [0], [1], [0, 0, 1, 1], [], []>} : vector<2x32xf32>, vector<32x32xf32>, vector<2x32xf32> -> vector<2x32xf32>
    %232 = arith.addf %230, %231 : vector<2x32xf32>
    %cst_128 = arith.constant 5.000000e-01 : f32
    %233 = vector.broadcast %cst_128 : f32 to vector<2x32xf32>
    %234 = arith.mulf %233, %232 : vector<2x32xf32>
    %235 = math.tanh %234 : vector<2x32xf32>
    %cst_129 = arith.constant 5.000000e-01 : f32
    %236 = vector.broadcast %cst_129 : f32 to vector<2x32xf32>
    %237 = arith.mulf %236, %235 : vector<2x32xf32>
    %cst_130 = arith.constant 5.000000e-01 : f32
    %238 = vector.broadcast %cst_130 : f32 to vector<2x32xf32>
    %239 = arith.addf %237, %238 : vector<2x32xf32>
    %240 = arith.index_cast %228 : i32 to index
    %c0_131 = arith.constant 0 : index
    %241 = vector.load %arg15[%240, %c0_131] : memref<16x32xf32, #tpu.memory_space<vmem>>, vector<2x32xf32>
    %cst_132 = arith.constant dense<0.000000e+00> : vector<2x32xf32>
    %242 = tpu.matmul %225, %36, %cst_132 {dimension_numbers = #tpu.dot_dimension_numbers<[1], [0], [0], [1], [0, 0, 1, 1], [], []>} : vector<2x32xf32>, vector<32x32xf32>, vector<2x32xf32> -> vector<2x32xf32>
    %243 = arith.addf %241, %242 : vector<2x32xf32>
    %cst_133 = arith.constant 5.000000e-01 : f32
    %244 = vector.broadcast %cst_133 : f32 to vector<2x32xf32>
    %245 = arith.mulf %244, %243 : vector<2x32xf32>
    %246 = math.tanh %245 : vector<2x32xf32>
    %cst_134 = arith.constant 5.000000e-01 : f32
    %247 = vector.broadcast %cst_134 : f32 to vector<2x32xf32>
    %248 = arith.mulf %247, %246 : vector<2x32xf32>
    %cst_135 = arith.constant 5.000000e-01 : f32
    %249 = vector.broadcast %cst_135 : f32 to vector<2x32xf32>
    %250 = arith.addf %248, %249 : vector<2x32xf32>
    %251 = arith.index_cast %228 : i32 to index
    %c0_136 = arith.constant 0 : index
    %252 = vector.load %arg16[%251, %c0_136] : memref<16x32xf32, #tpu.memory_space<vmem>>, vector<2x32xf32>
    %cst_137 = arith.constant dense<0.000000e+00> : vector<2x32xf32>
    %253 = tpu.matmul %225, %38, %cst_137 {dimension_numbers = #tpu.dot_dimension_numbers<[1], [0], [0], [1], [0, 0, 1, 1], [], []>} : vector<2x32xf32>, vector<32x32xf32>, vector<2x32xf32> -> vector<2x32xf32>
    %254 = arith.addf %252, %253 : vector<2x32xf32>
    %255 = math.tanh %254 : vector<2x32xf32>
    %256 = arith.index_cast %228 : i32 to index
    %c0_138 = arith.constant 0 : index
    %257 = vector.load %arg17[%256, %c0_138] : memref<16x32xf32, #tpu.memory_space<vmem>>, vector<2x32xf32>
    %cst_139 = arith.constant dense<0.000000e+00> : vector<2x32xf32>
    %258 = tpu.matmul %225, %40, %cst_139 {dimension_numbers = #tpu.dot_dimension_numbers<[1], [0], [0], [1], [0, 0, 1, 1], [], []>} : vector<2x32xf32>, vector<32x32xf32>, vector<2x32xf32> -> vector<2x32xf32>
    %259 = arith.addf %257, %258 : vector<2x32xf32>
    %cst_140 = arith.constant 5.000000e-01 : f32
    %260 = vector.broadcast %cst_140 : f32 to vector<2x32xf32>
    %261 = arith.mulf %260, %259 : vector<2x32xf32>
    %262 = math.tanh %261 : vector<2x32xf32>
    %cst_141 = arith.constant 5.000000e-01 : f32
    %263 = vector.broadcast %cst_141 : f32 to vector<2x32xf32>
    %264 = arith.mulf %263, %262 : vector<2x32xf32>
    %cst_142 = arith.constant 5.000000e-01 : f32
    %265 = vector.broadcast %cst_142 : f32 to vector<2x32xf32>
    %266 = arith.addf %264, %265 : vector<2x32xf32>
    %267 = arith.mulf %250, %223 : vector<2x32xf32>
    %268 = arith.mulf %239, %255 : vector<2x32xf32>
    %269 = arith.addf %267, %268 : vector<2x32xf32>
    %270 = math.tanh %269 : vector<2x32xf32>
    %271 = arith.mulf %266, %270 : vector<2x32xf32>
    %272 = arith.index_cast %228 : i32 to index
    %c0_143 = arith.constant 0 : index
    %273 = vector.load %arg13[%272, %c0_143] : memref<16x32xf32, #tpu.memory_space<vmem>>, vector<2x32xf32>
    tpu.vector_store %arg13[%272, %c0_143], %271 {strides = array<i32>} : memref<16x32xf32, #tpu.memory_space<vmem>>, vector<2x32xf32>,
    %c5_i32 = arith.constant 5 : i32
    %c2_i32_144 = arith.constant 2 : i32
    %274 = arith.muli %c5_i32, %c2_i32_144 : i32
    %275 = arith.index_cast %274 : i32 to index
    %c0_145 = arith.constant 0 : index
    %276 = vector.load %arg14[%275, %c0_145] : memref<16x32xf32, #tpu.memory_space<vmem>>, vector<2x32xf32>
    %cst_146 = arith.constant dense<0.000000e+00> : vector<2x32xf32>
    %277 = tpu.matmul %271, %34, %cst_146 {dimension_numbers = #tpu.dot_dimension_numbers<[1], [0], [0], [1], [0, 0, 1, 1], [], []>} : vector<2x32xf32>, vector<32x32xf32>, vector<2x32xf32> -> vector<2x32xf32>
    %278 = arith.addf %276, %277 : vector<2x32xf32>
    %cst_147 = arith.constant 5.000000e-01 : f32
    %279 = vector.broadcast %cst_147 : f32 to vector<2x32xf32>
    %280 = arith.mulf %279, %278 : vector<2x32xf32>
    %281 = math.tanh %280 : vector<2x32xf32>
    %cst_148 = arith.constant 5.000000e-01 : f32
    %282 = vector.broadcast %cst_148 : f32 to vector<2x32xf32>
    %283 = arith.mulf %282, %281 : vector<2x32xf32>
    %cst_149 = arith.constant 5.000000e-01 : f32
    %284 = vector.broadcast %cst_149 : f32 to vector<2x32xf32>
    %285 = arith.addf %283, %284 : vector<2x32xf32>
    %286 = arith.index_cast %274 : i32 to index
    %c0_150 = arith.constant 0 : index
    %287 = vector.load %arg15[%286, %c0_150] : memref<16x32xf32, #tpu.memory_space<vmem>>, vector<2x32xf32>
    %cst_151 = arith.constant dense<0.000000e+00> : vector<2x32xf32>
    %288 = tpu.matmul %271, %36, %cst_151 {dimension_numbers = #tpu.dot_dimension_numbers<[1], [0], [0], [1], [0, 0, 1, 1], [], []>} : vector<2x32xf32>, vector<32x32xf32>, vector<2x32xf32> -> vector<2x32xf32>
    %289 = arith.addf %287, %288 : vector<2x32xf32>
    %cst_152 = arith.constant 5.000000e-01 : f32
    %290 = vector.broadcast %cst_152 : f32 to vector<2x32xf32>
    %291 = arith.mulf %290, %289 : vector<2x32xf32>
    %292 = math.tanh %291 : vector<2x32xf32>
    %cst_153 = arith.constant 5.000000e-01 : f32
    %293 = vector.broadcast %cst_153 : f32 to vector<2x32xf32>
    %294 = arith.mulf %293, %292 : vector<2x32xf32>
    %cst_154 = arith.constant 5.000000e-01 : f32
    %295 = vector.broadcast %cst_154 : f32 to vector<2x32xf32>
    %296 = arith.addf %294, %295 : vector<2x32xf32>
    %297 = arith.index_cast %274 : i32 to index
    %c0_155 = arith.constant 0 : index
    %298 = vector.load %arg16[%297, %c0_155] : memref<16x32xf32, #tpu.memory_space<vmem>>, vector<2x32xf32>
    %cst_156 = arith.constant dense<0.000000e+00> : vector<2x32xf32>
    %299 = tpu.matmul %271, %38, %cst_156 {dimension_numbers = #tpu.dot_dimension_numbers<[1], [0], [0], [1], [0, 0, 1, 1], [], []>} : vector<2x32xf32>, vector<32x32xf32>, vector<2x32xf32> -> vector<2x32xf32>
    %300 = arith.addf %298, %299 : vector<2x32xf32>
    %301 = math.tanh %300 : vector<2x32xf32>
    %302 = arith.index_cast %274 : i32 to index
    %c0_157 = arith.constant 0 : index
    %303 = vector.load %arg17[%302, %c0_157] : memref<16x32xf32, #tpu.memory_space<vmem>>, vector<2x32xf32>
    %cst_158 = arith.constant dense<0.000000e+00> : vector<2x32xf32>
    %304 = tpu.matmul %271, %40, %cst_158 {dimension_numbers = #tpu.dot_dimension_numbers<[1], [0], [0], [1], [0, 0, 1, 1], [], []>} : vector<2x32xf32>, vector<32x32xf32>, vector<2x32xf32> -> vector<2x32xf32>
    %305 = arith.addf %303, %304 : vector<2x32xf32>
    %cst_159 = arith.constant 5.000000e-01 : f32
    %306 = vector.broadcast %cst_159 : f32 to vector<2x32xf32>
    %307 = arith.mulf %306, %305 : vector<2x32xf32>
    %308 = math.tanh %307 : vector<2x32xf32>
    %cst_160 = arith.constant 5.000000e-01 : f32
    %309 = vector.broadcast %cst_160 : f32 to vector<2x32xf32>
    %310 = arith.mulf %309, %308 : vector<2x32xf32>
    %cst_161 = arith.constant 5.000000e-01 : f32
    %311 = vector.broadcast %cst_161 : f32 to vector<2x32xf32>
    %312 = arith.addf %310, %311 : vector<2x32xf32>
    %313 = arith.mulf %296, %269 : vector<2x32xf32>
    %314 = arith.mulf %285, %301 : vector<2x32xf32>
    %315 = arith.addf %313, %314 : vector<2x32xf32>
    %316 = math.tanh %315 : vector<2x32xf32>
    %317 = arith.mulf %312, %316 : vector<2x32xf32>
    %318 = arith.index_cast %274 : i32 to index
    %c0_162 = arith.constant 0 : index
    %319 = vector.load %arg13[%318, %c0_162] : memref<16x32xf32, #tpu.memory_space<vmem>>, vector<2x32xf32>
    tpu.vector_store %arg13[%318, %c0_162], %317 {strides = array<i32>} : memref<16x32xf32, #tpu.memory_space<vmem>>, vector<2x32xf32>,
    %c6_i32 = arith.constant 6 : i32
    %c2_i32_163 = arith.constant 2 : i32
    %320 = arith.muli %c6_i32, %c2_i32_163 : i32
    %321 = arith.index_cast %320 : i32 to index
    %c0_164 = arith.constant 0 : index
    %322 = vector.load %arg14[%321, %c0_164] : memref<16x32xf32, #tpu.memory_space<vmem>>, vector<2x32xf32>
    %cst_165 = arith.constant dense<0.000000e+00> : vector<2x32xf32>
    %323 = tpu.matmul %317, %34, %cst_165 {dimension_numbers = #tpu.dot_dimension_numbers<[1], [0], [0], [1], [0, 0, 1, 1], [], []>} : vector<2x32xf32>, vector<32x32xf32>, vector<2x32xf32> -> vector<2x32xf32>
    %324 = arith.addf %322, %323 : vector<2x32xf32>
    %cst_166 = arith.constant 5.000000e-01 : f32
    %325 = vector.broadcast %cst_166 : f32 to vector<2x32xf32>
    %326 = arith.mulf %325, %324 : vector<2x32xf32>
    %327 = math.tanh %326 : vector<2x32xf32>
    %cst_167 = arith.constant 5.000000e-01 : f32
    %328 = vector.broadcast %cst_167 : f32 to vector<2x32xf32>
    %329 = arith.mulf %328, %327 : vector<2x32xf32>
    %cst_168 = arith.constant 5.000000e-01 : f32
    %330 = vector.broadcast %cst_168 : f32 to vector<2x32xf32>
    %331 = arith.addf %329, %330 : vector<2x32xf32>
    %332 = arith.index_cast %320 : i32 to index
    %c0_169 = arith.constant 0 : index
    %333 = vector.load %arg15[%332, %c0_169] : memref<16x32xf32, #tpu.memory_space<vmem>>, vector<2x32xf32>
    %cst_170 = arith.constant dense<0.000000e+00> : vector<2x32xf32>
    %334 = tpu.matmul %317, %36, %cst_170 {dimension_numbers = #tpu.dot_dimension_numbers<[1], [0], [0], [1], [0, 0, 1, 1], [], []>} : vector<2x32xf32>, vector<32x32xf32>, vector<2x32xf32> -> vector<2x32xf32>
    %335 = arith.addf %333, %334 : vector<2x32xf32>
    %cst_171 = arith.constant 5.000000e-01 : f32
    %336 = vector.broadcast %cst_171 : f32 to vector<2x32xf32>
    %337 = arith.mulf %336, %335 : vector<2x32xf32>
    %338 = math.tanh %337 : vector<2x32xf32>
    %cst_172 = arith.constant 5.000000e-01 : f32
    %339 = vector.broadcast %cst_172 : f32 to vector<2x32xf32>
    %340 = arith.mulf %339, %338 : vector<2x32xf32>
    %cst_173 = arith.constant 5.000000e-01 : f32
    %341 = vector.broadcast %cst_173 : f32 to vector<2x32xf32>
    %342 = arith.addf %340, %341 : vector<2x32xf32>
    %343 = arith.index_cast %320 : i32 to index
    %c0_174 = arith.constant 0 : index
    %344 = vector.load %arg16[%343, %c0_174] : memref<16x32xf32, #tpu.memory_space<vmem>>, vector<2x32xf32>
    %cst_175 = arith.constant dense<0.000000e+00> : vector<2x32xf32>
    %345 = tpu.matmul %317, %38, %cst_175 {dimension_numbers = #tpu.dot_dimension_numbers<[1], [0], [0], [1], [0, 0, 1, 1], [], []>} : vector<2x32xf32>, vector<32x32xf32>, vector<2x32xf32> -> vector<2x32xf32>
    %346 = arith.addf %344, %345 : vector<2x32xf32>
    %347 = math.tanh %346 : vector<2x32xf32>
    %348 = arith.index_cast %320 : i32 to index
    %c0_176 = arith.constant 0 : index
    %349 = vector.load %arg17[%348, %c0_176] : memref<16x32xf32, #tpu.memory_space<vmem>>, vector<2x32xf32>
    %cst_177 = arith.constant dense<0.000000e+00> : vector<2x32xf32>
    %350 = tpu.matmul %317, %40, %cst_177 {dimension_numbers = #tpu.dot_dimension_numbers<[1], [0], [0], [1], [0, 0, 1, 1], [], []>} : vector<2x32xf32>, vector<32x32xf32>, vector<2x32xf32> -> vector<2x32xf32>
    %351 = arith.addf %349, %350 : vector<2x32xf32>
    %cst_178 = arith.constant 5.000000e-01 : f32
    %352 = vector.broadcast %cst_178 : f32 to vector<2x32xf32>
    %353 = arith.mulf %352, %351 : vector<2x32xf32>
    %354 = math.tanh %353 : vector<2x32xf32>
    %cst_179 = arith.constant 5.000000e-01 : f32
    %355 = vector.broadcast %cst_179 : f32 to vector<2x32xf32>
    %356 = arith.mulf %355, %354 : vector<2x32xf32>
    %cst_180 = arith.constant 5.000000e-01 : f32
    %357 = vector.broadcast %cst_180 : f32 to vector<2x32xf32>
    %358 = arith.addf %356, %357 : vector<2x32xf32>
    %359 = arith.mulf %342, %315 : vector<2x32xf32>
    %360 = arith.mulf %331, %347 : vector<2x32xf32>
    %361 = arith.addf %359, %360 : vector<2x32xf32>
    %362 = math.tanh %361 : vector<2x32xf32>
    %363 = arith.mulf %358, %362 : vector<2x32xf32>
    %364 = arith.index_cast %320 : i32 to index
    %c0_181 = arith.constant 0 : index
    %365 = vector.load %arg13[%364, %c0_181] : memref<16x32xf32, #tpu.memory_space<vmem>>, vector<2x32xf32>
    tpu.vector_store %arg13[%364, %c0_181], %363 {strides = array<i32>} : memref<16x32xf32, #tpu.memory_space<vmem>>, vector<2x32xf32>,
    %c7_i32 = arith.constant 7 : i32
    %c2_i32_182 = arith.constant 2 : i32
    %366 = arith.muli %c7_i32, %c2_i32_182 : i32
    %367 = arith.index_cast %366 : i32 to index
    %c0_183 = arith.constant 0 : index
    %368 = vector.load %arg14[%367, %c0_183] : memref<16x32xf32, #tpu.memory_space<vmem>>, vector<2x32xf32>
    %cst_184 = arith.constant dense<0.000000e+00> : vector<2x32xf32>
    %369 = tpu.matmul %363, %34, %cst_184 {dimension_numbers = #tpu.dot_dimension_numbers<[1], [0], [0], [1], [0, 0, 1, 1], [], []>} : vector<2x32xf32>, vector<32x32xf32>, vector<2x32xf32> -> vector<2x32xf32>
    %370 = arith.addf %368, %369 : vector<2x32xf32>
    %cst_185 = arith.constant 5.000000e-01 : f32
    %371 = vector.broadcast %cst_185 : f32 to vector<2x32xf32>
    %372 = arith.mulf %371, %370 : vector<2x32xf32>
    %373 = math.tanh %372 : vector<2x32xf32>
    %cst_186 = arith.constant 5.000000e-01 : f32
    %374 = vector.broadcast %cst_186 : f32 to vector<2x32xf32>
    %375 = arith.mulf %374, %373 : vector<2x32xf32>
    %cst_187 = arith.constant 5.000000e-01 : f32
    %376 = vector.broadcast %cst_187 : f32 to vector<2x32xf32>
    %377 = arith.addf %375, %376 : vector<2x32xf32>
    %378 = arith.index_cast %366 : i32 to index
    %c0_188 = arith.constant 0 : index
    %379 = vector.load %arg15[%378, %c0_188] : memref<16x32xf32, #tpu.memory_space<vmem>>, vector<2x32xf32>
    %cst_189 = arith.constant dense<0.000000e+00> : vector<2x32xf32>
    %380 = tpu.matmul %363, %36, %cst_189 {dimension_numbers = #tpu.dot_dimension_numbers<[1], [0], [0], [1], [0, 0, 1, 1], [], []>} : vector<2x32xf32>, vector<32x32xf32>, vector<2x32xf32> -> vector<2x32xf32>
    %381 = arith.addf %379, %380 : vector<2x32xf32>
    %cst_190 = arith.constant 5.000000e-01 : f32
    %382 = vector.broadcast %cst_190 : f32 to vector<2x32xf32>
    %383 = arith.mulf %382, %381 : vector<2x32xf32>
    %384 = math.tanh %383 : vector<2x32xf32>
    %cst_191 = arith.constant 5.000000e-01 : f32
    %385 = vector.broadcast %cst_191 : f32 to vector<2x32xf32>
    %386 = arith.mulf %385, %384 : vector<2x32xf32>
    %cst_192 = arith.constant 5.000000e-01 : f32
    %387 = vector.broadcast %cst_192 : f32 to vector<2x32xf32>
    %388 = arith.addf %386, %387 : vector<2x32xf32>
    %389 = arith.index_cast %366 : i32 to index
    %c0_193 = arith.constant 0 : index
    %390 = vector.load %arg16[%389, %c0_193] : memref<16x32xf32, #tpu.memory_space<vmem>>, vector<2x32xf32>
    %cst_194 = arith.constant dense<0.000000e+00> : vector<2x32xf32>
    %391 = tpu.matmul %363, %38, %cst_194 {dimension_numbers = #tpu.dot_dimension_numbers<[1], [0], [0], [1], [0, 0, 1, 1], [], []>} : vector<2x32xf32>, vector<32x32xf32>, vector<2x32xf32> -> vector<2x32xf32>
    %392 = arith.addf %390, %391 : vector<2x32xf32>
    %393 = math.tanh %392 : vector<2x32xf32>
    %394 = arith.index_cast %366 : i32 to index
    %c0_195 = arith.constant 0 : index
    %395 = vector.load %arg17[%394, %c0_195] : memref<16x32xf32, #tpu.memory_space<vmem>>, vector<2x32xf32>
    %cst_196 = arith.constant dense<0.000000e+00> : vector<2x32xf32>
    %396 = tpu.matmul %363, %40, %cst_196 {dimension_numbers = #tpu.dot_dimension_numbers<[1], [0], [0], [1], [0, 0, 1, 1], [], []>} : vector<2x32xf32>, vector<32x32xf32>, vector<2x32xf32> -> vector<2x32xf32>
    %397 = arith.addf %395, %396 : vector<2x32xf32>
    %cst_197 = arith.constant 5.000000e-01 : f32
    %398 = vector.broadcast %cst_197 : f32 to vector<2x32xf32>
    %399 = arith.mulf %398, %397 : vector<2x32xf32>
    %400 = math.tanh %399 : vector<2x32xf32>
    %cst_198 = arith.constant 5.000000e-01 : f32
    %401 = vector.broadcast %cst_198 : f32 to vector<2x32xf32>
    %402 = arith.mulf %401, %400 : vector<2x32xf32>
    %cst_199 = arith.constant 5.000000e-01 : f32
    %403 = vector.broadcast %cst_199 : f32 to vector<2x32xf32>
    %404 = arith.addf %402, %403 : vector<2x32xf32>
    %405 = arith.mulf %388, %361 : vector<2x32xf32>
    %406 = arith.mulf %377, %393 : vector<2x32xf32>
    %407 = arith.addf %405, %406 : vector<2x32xf32>
    %408 = math.tanh %407 : vector<2x32xf32>
    %409 = arith.mulf %404, %408 : vector<2x32xf32>
    %410 = arith.index_cast %366 : i32 to index
    %c0_200 = arith.constant 0 : index
    %411 = vector.load %arg13[%410, %c0_200] : memref<16x32xf32, #tpu.memory_space<vmem>>, vector<2x32xf32>
    tpu.vector_store %arg13[%410, %c0_200], %409 {strides = array<i32>} : memref<16x32xf32, #tpu.memory_space<vmem>>, vector<2x32xf32>,
    %c8_i32 = arith.constant 8 : i32
    %c0_201 = arith.constant 0 : index
    %c0_202 = arith.constant 0 : index
    %c0_203 = arith.constant 0 : index
    %412 = vector.load %arg11[%c0_201, %c0_202, %c0_203] : memref<2x2x32xf32, #tpu.memory_space<vmem>>, vector<1x2x32xf32>
    %413 = vector.shape_cast %412 : vector<1x2x32xf32> to vector<2x32xf32>
    %414 = vector.shape_cast %409 : vector<2x32xf32> to vector<1x2x32xf32>
    tpu.vector_store %arg11[%c0_201, %c0_202, %c0_203], %414 {strides = array<i32>} : memref<2x2x32xf32, #tpu.memory_space<vmem>>, vector<1x2x32xf32>,
    %c0_204 = arith.constant 0 : index
    %c0_205 = arith.constant 0 : index
    %c0_206 = arith.constant 0 : index
    %415 = vector.load %arg12[%c0_204, %c0_205, %c0_206] : memref<2x2x32xf32, #tpu.memory_space<vmem>>, vector<1x2x32xf32>
    %416 = vector.shape_cast %415 : vector<1x2x32xf32> to vector<2x32xf32>
    %417 = vector.shape_cast %407 : vector<2x32xf32> to vector<1x2x32xf32>
    tpu.vector_store %arg12[%c0_204, %c0_205, %c0_206], %417 {strides = array<i32>} : memref<2x2x32xf32, #tpu.memory_space<vmem>>, vector<1x2x32xf32>,
    %c0_207 = arith.constant 0 : index
    %c0_208 = arith.constant 0 : index
    %418 = vector.load %arg13[%c0_207, %c0_208] : memref<16x32xf32, #tpu.memory_space<vmem>>, vector<16x32xf32>
    %c0_209 = arith.constant 0 : index
    %c0_210 = arith.constant 0 : index
    %c0_211 = arith.constant 0 : index
    %419 = vector.load %arg5[%c0_209, %c0_210, %c0_211] : memref<4x32x32xf32, #tpu.memory_space<vmem>>, vector<1x32x32xf32>
    %420 = vector.shape_cast %419 : vector<1x32x32xf32> to vector<32x32xf32>
    %cst_212 = arith.constant dense<0.000000e+00> : vector<16x32xf32>
    %421 = tpu.matmul %418, %420, %cst_212 {dimension_numbers = #tpu.dot_dimension_numbers<[1], [0], [0], [1], [0, 0, 1, 1], [], []>} : vector<16x32xf32>, vector<32x32xf32>, vector<16x32xf32> -> vector<16x32xf32>
    %c0_213 = arith.constant 0 : index
    %c0_214 = arith.constant 0 : index
    %c0_215 = arith.constant 0 : index
    %422 = vector.load %arg7[%c0_213, %c0_214, %c0_215] : memref<4x1x32xf32, #tpu.memory_space<vmem>>, vector<1x1x32xf32>
    %423 = vector.shape_cast %422 : vector<1x1x32xf32> to vector<1x32xf32>
    %424 = vector.broadcast %423 : vector<1x32xf32> to vector<16x32xf32>
    %425 = arith.addf %421, %424 : vector<16x32xf32>
    %c0_216 = arith.constant 0 : index
    %c0_217 = arith.constant 0 : index
    %426 = vector.load %arg14[%c0_216, %c0_217] : memref<16x32xf32, #tpu.memory_space<vmem>>, vector<16x32xf32>
    tpu.vector_store %arg14[%c0_216, %c0_217], %425 {strides = array<i32>} : memref<16x32xf32, #tpu.memory_space<vmem>>, vector<16x32xf32>,
    %c1_218 = arith.constant 1 : index
    %c0_219 = arith.constant 0 : index
    %c0_220 = arith.constant 0 : index
    %427 = vector.load %arg5[%c1_218, %c0_219, %c0_220] : memref<4x32x32xf32, #tpu.memory_space<vmem>>, vector<1x32x32xf32>
    %428 = vector.shape_cast %427 : vector<1x32x32xf32> to vector<32x32xf32>
    %cst_221 = arith.constant dense<0.000000e+00> : vector<16x32xf32>
    %429 = tpu.matmul %418, %428, %cst_221 {dimension_numbers = #tpu.dot_dimension_numbers<[1], [0], [0], [1], [0, 0, 1, 1], [], []>} : vector<16x32xf32>, vector<32x32xf32>, vector<16x32xf32> -> vector<16x32xf32>
    %c1_222 = arith.constant 1 : index
    %c0_223 = arith.constant 0 : index
    %c0_224 = arith.constant 0 : index
    %430 = vector.load %arg7[%c1_222, %c0_223, %c0_224] : memref<4x1x32xf32, #tpu.memory_space<vmem>>, vector<1x1x32xf32>
    %431 = vector.shape_cast %430 : vector<1x1x32xf32> to vector<1x32xf32>
    %432 = vector.broadcast %431 : vector<1x32xf32> to vector<16x32xf32>
    %433 = arith.addf %429, %432 : vector<16x32xf32>
    %c0_225 = arith.constant 0 : index
    %c0_226 = arith.constant 0 : index
    %434 = vector.load %arg15[%c0_225, %c0_226] : memref<16x32xf32, #tpu.memory_space<vmem>>, vector<16x32xf32>
    tpu.vector_store %arg15[%c0_225, %c0_226], %433 {strides = array<i32>} : memref<16x32xf32, #tpu.memory_space<vmem>>, vector<16x32xf32>,
    %c2_227 = arith.constant 2 : index
    %c0_228 = arith.constant 0 : index
    %c0_229 = arith.constant 0 : index
    %435 = vector.load %arg5[%c2_227, %c0_228, %c0_229] : memref<4x32x32xf32, #tpu.memory_space<vmem>>, vector<1x32x32xf32>
    %436 = vector.shape_cast %435 : vector<1x32x32xf32> to vector<32x32xf32>
    %cst_230 = arith.constant dense<0.000000e+00> : vector<16x32xf32>
    %437 = tpu.matmul %418, %436, %cst_230 {dimension_numbers = #tpu.dot_dimension_numbers<[1], [0], [0], [1], [0, 0, 1, 1], [], []>} : vector<16x32xf32>, vector<32x32xf32>, vector<16x32xf32> -> vector<16x32xf32>
    %c2_231 = arith.constant 2 : index
    %c0_232 = arith.constant 0 : index
    %c0_233 = arith.constant 0 : index
    %438 = vector.load %arg7[%c2_231, %c0_232, %c0_233] : memref<4x1x32xf32, #tpu.memory_space<vmem>>, vector<1x1x32xf32>
    %439 = vector.shape_cast %438 : vector<1x1x32xf32> to vector<1x32xf32>
    %440 = vector.broadcast %439 : vector<1x32xf32> to vector<16x32xf32>
    %441 = arith.addf %437, %440 : vector<16x32xf32>
    %c0_234 = arith.constant 0 : index
    %c0_235 = arith.constant 0 : index
    %442 = vector.load %arg16[%c0_234, %c0_235] : memref<16x32xf32, #tpu.memory_space<vmem>>, vector<16x32xf32>
    tpu.vector_store %arg16[%c0_234, %c0_235], %441 {strides = array<i32>} : memref<16x32xf32, #tpu.memory_space<vmem>>, vector<16x32xf32>,
    %c3_236 = arith.constant 3 : index
    %c0_237 = arith.constant 0 : index
    %c0_238 = arith.constant 0 : index
    %443 = vector.load %arg5[%c3_236, %c0_237, %c0_238] : memref<4x32x32xf32, #tpu.memory_space<vmem>>, vector<1x32x32xf32>
    %444 = vector.shape_cast %443 : vector<1x32x32xf32> to vector<32x32xf32>
    %cst_239 = arith.constant dense<0.000000e+00> : vector<16x32xf32>
    %445 = tpu.matmul %418, %444, %cst_239 {dimension_numbers = #tpu.dot_dimension_numbers<[1], [0], [0], [1], [0, 0, 1, 1], [], []>} : vector<16x32xf32>, vector<32x32xf32>, vector<16x32xf32> -> vector<16x32xf32>
    %c3_240 = arith.constant 3 : index
    %c0_241 = arith.constant 0 : index
    %c0_242 = arith.constant 0 : index
    %446 = vector.load %arg7[%c3_240, %c0_241, %c0_242] : memref<4x1x32xf32, #tpu.memory_space<vmem>>, vector<1x1x32xf32>
    %447 = vector.shape_cast %446 : vector<1x1x32xf32> to vector<1x32xf32>
    %448 = vector.broadcast %447 : vector<1x32xf32> to vector<16x32xf32>
    %449 = arith.addf %445, %448 : vector<16x32xf32>
    %c0_243 = arith.constant 0 : index
    %c0_244 = arith.constant 0 : index
    %450 = vector.load %arg17[%c0_243, %c0_244] : memref<16x32xf32, #tpu.memory_space<vmem>>, vector<16x32xf32>
    tpu.vector_store %arg17[%c0_243, %c0_244], %449 {strides = array<i32>} : memref<16x32xf32, #tpu.memory_space<vmem>>, vector<16x32xf32>,
    %c0_245 = arith.constant 0 : index
    %c0_246 = arith.constant 0 : index
    %c0_247 = arith.constant 0 : index
    %451 = vector.load %arg6[%c0_245, %c0_246, %c0_247] : memref<4x32x32xf32, #tpu.memory_space<vmem>>, vector<1x32x32xf32>
    %452 = vector.shape_cast %451 : vector<1x32x32xf32> to vector<32x32xf32>
    %c1_248 = arith.constant 1 : index
    %c0_249 = arith.constant 0 : index
    %c0_250 = arith.constant 0 : index
    %453 = vector.load %arg6[%c1_248, %c0_249, %c0_250] : memref<4x32x32xf32, #tpu.memory_space<vmem>>, vector<1x32x32xf32>
    %454 = vector.shape_cast %453 : vector<1x32x32xf32> to vector<32x32xf32>
    %c2_251 = arith.constant 2 : index
    %c0_252 = arith.constant 0 : index
    %c0_253 = arith.constant 0 : index
    %455 = vector.load %arg6[%c2_251, %c0_252, %c0_253] : memref<4x32x32xf32, #tpu.memory_space<vmem>>, vector<1x32x32xf32>
    %456 = vector.shape_cast %455 : vector<1x32x32xf32> to vector<32x32xf32>
    %c3_254 = arith.constant 3 : index
    %c0_255 = arith.constant 0 : index
    %c0_256 = arith.constant 0 : index
    %457 = vector.load %arg6[%c3_254, %c0_255, %c0_256] : memref<4x32x32xf32, #tpu.memory_space<vmem>>, vector<1x32x32xf32>
    %458 = vector.shape_cast %457 : vector<1x32x32xf32> to vector<32x32xf32>
    %c1_257 = arith.constant 1 : index
    %c0_258 = arith.constant 0 : index
    %c0_259 = arith.constant 0 : index
    %459 = vector.load %arg1[%c1_257, %c0_258, %c0_259] : memref<2x2x32xf32, #tpu.memory_space<vmem>>, vector<1x2x32xf32>
    %460 = vector.shape_cast %459 : vector<1x2x32xf32> to vector<2x32xf32>
    %cst_260 = arith.constant 0.000000e+00 : f32
    %461 = vector.broadcast %cst_260 : f32 to vector<2x32xf32>
    %c0_i32_261 = arith.constant 0 : i32
    %c2_i32_262 = arith.constant 2 : i32
    %462 = arith.muli %c0_i32_261, %c2_i32_262 : i32
    %463 = arith.index_cast %462 : i32 to index
    %c0_263 = arith.constant 0 : index
    %464 = vector.load %arg14[%463, %c0_263] : memref<16x32xf32, #tpu.memory_space<vmem>>, vector<2x32xf32>
    %cst_264 = arith.constant dense<0.000000e+00> : vector<2x32xf32>
    %465 = tpu.matmul %460, %452, %cst_264 {dimension_numbers = #tpu.dot_dimension_numbers<[1], [0], [0], [1], [0, 0, 1, 1], [], []>} : vector<2x32xf32>, vector<32x32xf32>, vector<2x32xf32> -> vector<2x32xf32>
    %466 = arith.addf %464, %465 : vector<2x32xf32>
    %cst_265 = arith.constant 5.000000e-01 : f32
    %467 = vector.broadcast %cst_265 : f32 to vector<2x32xf32>
    %468 = arith.mulf %467, %466 : vector<2x32xf32>
    %469 = math.tanh %468 : vector<2x32xf32>
    %cst_266 = arith.constant 5.000000e-01 : f32
    %470 = vector.broadcast %cst_266 : f32 to vector<2x32xf32>
    %471 = arith.mulf %470, %469 : vector<2x32xf32>
    %cst_267 = arith.constant 5.000000e-01 : f32
    %472 = vector.broadcast %cst_267 : f32 to vector<2x32xf32>
    %473 = arith.addf %471, %472 : vector<2x32xf32>
    %474 = arith.index_cast %462 : i32 to index
    %c0_268 = arith.constant 0 : index
    %475 = vector.load %arg15[%474, %c0_268] : memref<16x32xf32, #tpu.memory_space<vmem>>, vector<2x32xf32>
    %cst_269 = arith.constant dense<0.000000e+00> : vector<2x32xf32>
    %476 = tpu.matmul %460, %454, %cst_269 {dimension_numbers = #tpu.dot_dimension_numbers<[1], [0], [0], [1], [0, 0, 1, 1], [], []>} : vector<2x32xf32>, vector<32x32xf32>, vector<2x32xf32> -> vector<2x32xf32>
    %477 = arith.addf %475, %476 : vector<2x32xf32>
    %cst_270 = arith.constant 5.000000e-01 : f32
    %478 = vector.broadcast %cst_270 : f32 to vector<2x32xf32>
    %479 = arith.mulf %478, %477 : vector<2x32xf32>
    %480 = math.tanh %479 : vector<2x32xf32>
    %cst_271 = arith.constant 5.000000e-01 : f32
    %481 = vector.broadcast %cst_271 : f32 to vector<2x32xf32>
    %482 = arith.mulf %481, %480 : vector<2x32xf32>
    %cst_272 = arith.constant 5.000000e-01 : f32
    %483 = vector.broadcast %cst_272 : f32 to vector<2x32xf32>
    %484 = arith.addf %482, %483 : vector<2x32xf32>
    %485 = arith.index_cast %462 : i32 to index
    %c0_273 = arith.constant 0 : index
    %486 = vector.load %arg16[%485, %c0_273] : memref<16x32xf32, #tpu.memory_space<vmem>>, vector<2x32xf32>
    %cst_274 = arith.constant dense<0.000000e+00> : vector<2x32xf32>
    %487 = tpu.matmul %460, %456, %cst_274 {dimension_numbers = #tpu.dot_dimension_numbers<[1], [0], [0], [1], [0, 0, 1, 1], [], []>} : vector<2x32xf32>, vector<32x32xf32>, vector<2x32xf32> -> vector<2x32xf32>
    %488 = arith.addf %486, %487 : vector<2x32xf32>
    %489 = math.tanh %488 : vector<2x32xf32>
    %490 = arith.index_cast %462 : i32 to index
    %c0_275 = arith.constant 0 : index
    %491 = vector.load %arg17[%490, %c0_275] : memref<16x32xf32, #tpu.memory_space<vmem>>, vector<2x32xf32>
    %cst_276 = arith.constant dense<0.000000e+00> : vector<2x32xf32>
    %492 = tpu.matmul %460, %458, %cst_276 {dimension_numbers = #tpu.dot_dimension_numbers<[1], [0], [0], [1], [0, 0, 1, 1], [], []>} : vector<2x32xf32>, vector<32x32xf32>, vector<2x32xf32> -> vector<2x32xf32>
    %493 = arith.addf %491, %492 : vector<2x32xf32>
    %cst_277 = arith.constant 5.000000e-01 : f32
    %494 = vector.broadcast %cst_277 : f32 to vector<2x32xf32>
    %495 = arith.mulf %494, %493 : vector<2x32xf32>
    %496 = math.tanh %495 : vector<2x32xf32>
    %cst_278 = arith.constant 5.000000e-01 : f32
    %497 = vector.broadcast %cst_278 : f32 to vector<2x32xf32>
    %498 = arith.mulf %497, %496 : vector<2x32xf32>
    %cst_279 = arith.constant 5.000000e-01 : f32
    %499 = vector.broadcast %cst_279 : f32 to vector<2x32xf32>
    %500 = arith.addf %498, %499 : vector<2x32xf32>
    %501 = arith.mulf %484, %461 : vector<2x32xf32>
    %502 = arith.mulf %473, %489 : vector<2x32xf32>
    %503 = arith.addf %501, %502 : vector<2x32xf32>
    %504 = math.tanh %503 : vector<2x32xf32>
    %505 = arith.mulf %500, %504 : vector<2x32xf32>
    %506 = arith.index_cast %462 : i32 to index
    %c0_280 = arith.constant 0 : index
    %507 = vector.load %arg13[%506, %c0_280] : memref<16x32xf32, #tpu.memory_space<vmem>>, vector<2x32xf32>
    tpu.vector_store %arg13[%506, %c0_280], %505 {strides = array<i32>} : memref<16x32xf32, #tpu.memory_space<vmem>>, vector<2x32xf32>,
    %c1_i32_281 = arith.constant 1 : i32
    %c2_i32_282 = arith.constant 2 : i32
    %508 = arith.muli %c1_i32_281, %c2_i32_282 : i32
    %509 = arith.index_cast %508 : i32 to index
    %c0_283 = arith.constant 0 : index
    %510 = vector.load %arg14[%509, %c0_283] : memref<16x32xf32, #tpu.memory_space<vmem>>, vector<2x32xf32>
    %cst_284 = arith.constant dense<0.000000e+00> : vector<2x32xf32>
    %511 = tpu.matmul %505, %452, %cst_284 {dimension_numbers = #tpu.dot_dimension_numbers<[1], [0], [0], [1], [0, 0, 1, 1], [], []>} : vector<2x32xf32>, vector<32x32xf32>, vector<2x32xf32> -> vector<2x32xf32>
    %512 = arith.addf %510, %511 : vector<2x32xf32>
    %cst_285 = arith.constant 5.000000e-01 : f32
    %513 = vector.broadcast %cst_285 : f32 to vector<2x32xf32>
    %514 = arith.mulf %513, %512 : vector<2x32xf32>
    %515 = math.tanh %514 : vector<2x32xf32>
    %cst_286 = arith.constant 5.000000e-01 : f32
    %516 = vector.broadcast %cst_286 : f32 to vector<2x32xf32>
    %517 = arith.mulf %516, %515 : vector<2x32xf32>
    %cst_287 = arith.constant 5.000000e-01 : f32
    %518 = vector.broadcast %cst_287 : f32 to vector<2x32xf32>
    %519 = arith.addf %517, %518 : vector<2x32xf32>
    %520 = arith.index_cast %508 : i32 to index
    %c0_288 = arith.constant 0 : index
    %521 = vector.load %arg15[%520, %c0_288] : memref<16x32xf32, #tpu.memory_space<vmem>>, vector<2x32xf32>
    %cst_289 = arith.constant dense<0.000000e+00> : vector<2x32xf32>
    %522 = tpu.matmul %505, %454, %cst_289 {dimension_numbers = #tpu.dot_dimension_numbers<[1], [0], [0], [1], [0, 0, 1, 1], [], []>} : vector<2x32xf32>, vector<32x32xf32>, vector<2x32xf32> -> vector<2x32xf32>
    %523 = arith.addf %521, %522 : vector<2x32xf32>
    %cst_290 = arith.constant 5.000000e-01 : f32
    %524 = vector.broadcast %cst_290 : f32 to vector<2x32xf32>
    %525 = arith.mulf %524, %523 : vector<2x32xf32>
    %526 = math.tanh %525 : vector<2x32xf32>
    %cst_291 = arith.constant 5.000000e-01 : f32
    %527 = vector.broadcast %cst_291 : f32 to vector<2x32xf32>
    %528 = arith.mulf %527, %526 : vector<2x32xf32>
    %cst_292 = arith.constant 5.000000e-01 : f32
    %529 = vector.broadcast %cst_292 : f32 to vector<2x32xf32>
    %530 = arith.addf %528, %529 : vector<2x32xf32>
    %531 = arith.index_cast %508 : i32 to index
    %c0_293 = arith.constant 0 : index
    %532 = vector.load %arg16[%531, %c0_293] : memref<16x32xf32, #tpu.memory_space<vmem>>, vector<2x32xf32>
    %cst_294 = arith.constant dense<0.000000e+00> : vector<2x32xf32>
    %533 = tpu.matmul %505, %456, %cst_294 {dimension_numbers = #tpu.dot_dimension_numbers<[1], [0], [0], [1], [0, 0, 1, 1], [], []>} : vector<2x32xf32>, vector<32x32xf32>, vector<2x32xf32> -> vector<2x32xf32>
    %534 = arith.addf %532, %533 : vector<2x32xf32>
    %535 = math.tanh %534 : vector<2x32xf32>
    %536 = arith.index_cast %508 : i32 to index
    %c0_295 = arith.constant 0 : index
    %537 = vector.load %arg17[%536, %c0_295] : memref<16x32xf32, #tpu.memory_space<vmem>>, vector<2x32xf32>
    %cst_296 = arith.constant dense<0.000000e+00> : vector<2x32xf32>
    %538 = tpu.matmul %505, %458, %cst_296 {dimension_numbers = #tpu.dot_dimension_numbers<[1], [0], [0], [1], [0, 0, 1, 1], [], []>} : vector<2x32xf32>, vector<32x32xf32>, vector<2x32xf32> -> vector<2x32xf32>
    %539 = arith.addf %537, %538 : vector<2x32xf32>
    %cst_297 = arith.constant 5.000000e-01 : f32
    %540 = vector.broadcast %cst_297 : f32 to vector<2x32xf32>
    %541 = arith.mulf %540, %539 : vector<2x32xf32>
    %542 = math.tanh %541 : vector<2x32xf32>
    %cst_298 = arith.constant 5.000000e-01 : f32
    %543 = vector.broadcast %cst_298 : f32 to vector<2x32xf32>
    %544 = arith.mulf %543, %542 : vector<2x32xf32>
    %cst_299 = arith.constant 5.000000e-01 : f32
    %545 = vector.broadcast %cst_299 : f32 to vector<2x32xf32>
    %546 = arith.addf %544, %545 : vector<2x32xf32>
    %547 = arith.mulf %530, %503 : vector<2x32xf32>
    %548 = arith.mulf %519, %535 : vector<2x32xf32>
    %549 = arith.addf %547, %548 : vector<2x32xf32>
    %550 = math.tanh %549 : vector<2x32xf32>
    %551 = arith.mulf %546, %550 : vector<2x32xf32>
    %552 = arith.index_cast %508 : i32 to index
    %c0_300 = arith.constant 0 : index
    %553 = vector.load %arg13[%552, %c0_300] : memref<16x32xf32, #tpu.memory_space<vmem>>, vector<2x32xf32>
    tpu.vector_store %arg13[%552, %c0_300], %551 {strides = array<i32>} : memref<16x32xf32, #tpu.memory_space<vmem>>, vector<2x32xf32>,
    %c2_i32_301 = arith.constant 2 : i32
    %c2_i32_302 = arith.constant 2 : i32
    %554 = arith.muli %c2_i32_301, %c2_i32_302 : i32
    %555 = arith.index_cast %554 : i32 to index
    %c0_303 = arith.constant 0 : index
    %556 = vector.load %arg14[%555, %c0_303] : memref<16x32xf32, #tpu.memory_space<vmem>>, vector<2x32xf32>
    %cst_304 = arith.constant dense<0.000000e+00> : vector<2x32xf32>
    %557 = tpu.matmul %551, %452, %cst_304 {dimension_numbers = #tpu.dot_dimension_numbers<[1], [0], [0], [1], [0, 0, 1, 1], [], []>} : vector<2x32xf32>, vector<32x32xf32>, vector<2x32xf32> -> vector<2x32xf32>
    %558 = arith.addf %556, %557 : vector<2x32xf32>
    %cst_305 = arith.constant 5.000000e-01 : f32
    %559 = vector.broadcast %cst_305 : f32 to vector<2x32xf32>
    %560 = arith.mulf %559, %558 : vector<2x32xf32>
    %561 = math.tanh %560 : vector<2x32xf32>
    %cst_306 = arith.constant 5.000000e-01 : f32
    %562 = vector.broadcast %cst_306 : f32 to vector<2x32xf32>
    %563 = arith.mulf %562, %561 : vector<2x32xf32>
    %cst_307 = arith.constant 5.000000e-01 : f32
    %564 = vector.broadcast %cst_307 : f32 to vector<2x32xf32>
    %565 = arith.addf %563, %564 : vector<2x32xf32>
    %566 = arith.index_cast %554 : i32 to index
    %c0_308 = arith.constant 0 : index
    %567 = vector.load %arg15[%566, %c0_308] : memref<16x32xf32, #tpu.memory_space<vmem>>, vector<2x32xf32>
    %cst_309 = arith.constant dense<0.000000e+00> : vector<2x32xf32>
    %568 = tpu.matmul %551, %454, %cst_309 {dimension_numbers = #tpu.dot_dimension_numbers<[1], [0], [0], [1], [0, 0, 1, 1], [], []>} : vector<2x32xf32>, vector<32x32xf32>, vector<2x32xf32> -> vector<2x32xf32>
    %569 = arith.addf %567, %568 : vector<2x32xf32>
    %cst_310 = arith.constant 5.000000e-01 : f32
    %570 = vector.broadcast %cst_310 : f32 to vector<2x32xf32>
    %571 = arith.mulf %570, %569 : vector<2x32xf32>
    %572 = math.tanh %571 : vector<2x32xf32>
    %cst_311 = arith.constant 5.000000e-01 : f32
    %573 = vector.broadcast %cst_311 : f32 to vector<2x32xf32>
    %574 = arith.mulf %573, %572 : vector<2x32xf32>
    %cst_312 = arith.constant 5.000000e-01 : f32
    %575 = vector.broadcast %cst_312 : f32 to vector<2x32xf32>
    %576 = arith.addf %574, %575 : vector<2x32xf32>
    %577 = arith.index_cast %554 : i32 to index
    %c0_313 = arith.constant 0 : index
    %578 = vector.load %arg16[%577, %c0_313] : memref<16x32xf32, #tpu.memory_space<vmem>>, vector<2x32xf32>
    %cst_314 = arith.constant dense<0.000000e+00> : vector<2x32xf32>
    %579 = tpu.matmul %551, %456, %cst_314 {dimension_numbers = #tpu.dot_dimension_numbers<[1], [0], [0], [1], [0, 0, 1, 1], [], []>} : vector<2x32xf32>, vector<32x32xf32>, vector<2x32xf32> -> vector<2x32xf32>
    %580 = arith.addf %578, %579 : vector<2x32xf32>
    %581 = math.tanh %580 : vector<2x32xf32>
    %582 = arith.index_cast %554 : i32 to index
    %c0_315 = arith.constant 0 : index
    %583 = vector.load %arg17[%582, %c0_315] : memref<16x32xf32, #tpu.memory_space<vmem>>, vector<2x32xf32>
    %cst_316 = arith.constant dense<0.000000e+00> : vector<2x32xf32>
    %584 = tpu.matmul %551, %458, %cst_316 {dimension_numbers = #tpu.dot_dimension_numbers<[1], [0], [0], [1], [0, 0, 1, 1], [], []>} : vector<2x32xf32>, vector<32x32xf32>, vector<2x32xf32> -> vector<2x32xf32>
    %585 = arith.addf %583, %584 : vector<2x32xf32>
    %cst_317 = arith.constant 5.000000e-01 : f32
    %586 = vector.broadcast %cst_317 : f32 to vector<2x32xf32>
    %587 = arith.mulf %586, %585 : vector<2x32xf32>
    %588 = math.tanh %587 : vector<2x32xf32>
    %cst_318 = arith.constant 5.000000e-01 : f32
    %589 = vector.broadcast %cst_318 : f32 to vector<2x32xf32>
    %590 = arith.mulf %589, %588 : vector<2x32xf32>
    %cst_319 = arith.constant 5.000000e-01 : f32
    %591 = vector.broadcast %cst_319 : f32 to vector<2x32xf32>
    %592 = arith.addf %590, %591 : vector<2x32xf32>
    %593 = arith.mulf %576, %549 : vector<2x32xf32>
    %594 = arith.mulf %565, %581 : vector<2x32xf32>
    %595 = arith.addf %593, %594 : vector<2x32xf32>
    %596 = math.tanh %595 : vector<2x32xf32>
    %597 = arith.mulf %592, %596 : vector<2x32xf32>
    %598 = arith.index_cast %554 : i32 to index
    %c0_320 = arith.constant 0 : index
    %599 = vector.load %arg13[%598, %c0_320] : memref<16x32xf32, #tpu.memory_space<vmem>>, vector<2x32xf32>
    tpu.vector_store %arg13[%598, %c0_320], %597 {strides = array<i32>} : memref<16x32xf32, #tpu.memory_space<vmem>>, vector<2x32xf32>,
    %c3_i32_321 = arith.constant 3 : i32
    %c2_i32_322 = arith.constant 2 : i32
    %600 = arith.muli %c3_i32_321, %c2_i32_322 : i32
    %601 = arith.index_cast %600 : i32 to index
    %c0_323 = arith.constant 0 : index
    %602 = vector.load %arg14[%601, %c0_323] : memref<16x32xf32, #tpu.memory_space<vmem>>, vector<2x32xf32>
    %cst_324 = arith.constant dense<0.000000e+00> : vector<2x32xf32>
    %603 = tpu.matmul %597, %452, %cst_324 {dimension_numbers = #tpu.dot_dimension_numbers<[1], [0], [0], [1], [0, 0, 1, 1], [], []>} : vector<2x32xf32>, vector<32x32xf32>, vector<2x32xf32> -> vector<2x32xf32>
    %604 = arith.addf %602, %603 : vector<2x32xf32>
    %cst_325 = arith.constant 5.000000e-01 : f32
    %605 = vector.broadcast %cst_325 : f32 to vector<2x32xf32>
    %606 = arith.mulf %605, %604 : vector<2x32xf32>
    %607 = math.tanh %606 : vector<2x32xf32>
    %cst_326 = arith.constant 5.000000e-01 : f32
    %608 = vector.broadcast %cst_326 : f32 to vector<2x32xf32>
    %609 = arith.mulf %608, %607 : vector<2x32xf32>
    %cst_327 = arith.constant 5.000000e-01 : f32
    %610 = vector.broadcast %cst_327 : f32 to vector<2x32xf32>
    %611 = arith.addf %609, %610 : vector<2x32xf32>
    %612 = arith.index_cast %600 : i32 to index
    %c0_328 = arith.constant 0 : index
    %613 = vector.load %arg15[%612, %c0_328] : memref<16x32xf32, #tpu.memory_space<vmem>>, vector<2x32xf32>
    %cst_329 = arith.constant dense<0.000000e+00> : vector<2x32xf32>
    %614 = tpu.matmul %597, %454, %cst_329 {dimension_numbers = #tpu.dot_dimension_numbers<[1], [0], [0], [1], [0, 0, 1, 1], [], []>} : vector<2x32xf32>, vector<32x32xf32>, vector<2x32xf32> -> vector<2x32xf32>
    %615 = arith.addf %613, %614 : vector<2x32xf32>
    %cst_330 = arith.constant 5.000000e-01 : f32
    %616 = vector.broadcast %cst_330 : f32 to vector<2x32xf32>
    %617 = arith.mulf %616, %615 : vector<2x32xf32>
    %618 = math.tanh %617 : vector<2x32xf32>
    %cst_331 = arith.constant 5.000000e-01 : f32
    %619 = vector.broadcast %cst_331 : f32 to vector<2x32xf32>
    %620 = arith.mulf %619, %618 : vector<2x32xf32>
    %cst_332 = arith.constant 5.000000e-01 : f32
    %621 = vector.broadcast %cst_332 : f32 to vector<2x32xf32>
    %622 = arith.addf %620, %621 : vector<2x32xf32>
    %623 = arith.index_cast %600 : i32 to index
    %c0_333 = arith.constant 0 : index
    %624 = vector.load %arg16[%623, %c0_333] : memref<16x32xf32, #tpu.memory_space<vmem>>, vector<2x32xf32>
    %cst_334 = arith.constant dense<0.000000e+00> : vector<2x32xf32>
    %625 = tpu.matmul %597, %456, %cst_334 {dimension_numbers = #tpu.dot_dimension_numbers<[1], [0], [0], [1], [0, 0, 1, 1], [], []>} : vector<2x32xf32>, vector<32x32xf32>, vector<2x32xf32> -> vector<2x32xf32>
    %626 = arith.addf %624, %625 : vector<2x32xf32>
    %627 = math.tanh %626 : vector<2x32xf32>
    %628 = arith.index_cast %600 : i32 to index
    %c0_335 = arith.constant 0 : index
    %629 = vector.load %arg17[%628, %c0_335] : memref<16x32xf32, #tpu.memory_space<vmem>>, vector<2x32xf32>
    %cst_336 = arith.constant dense<0.000000e+00> : vector<2x32xf32>
    %630 = tpu.matmul %597, %458, %cst_336 {dimension_numbers = #tpu.dot_dimension_numbers<[1], [0], [0], [1], [0, 0, 1, 1], [], []>} : vector<2x32xf32>, vector<32x32xf32>, vector<2x32xf32> -> vector<2x32xf32>
    %631 = arith.addf %629, %630 : vector<2x32xf32>
    %cst_337 = arith.constant 5.000000e-01 : f32
    %632 = vector.broadcast %cst_337 : f32 to vector<2x32xf32>
    %633 = arith.mulf %632, %631 : vector<2x32xf32>
    %634 = math.tanh %633 : vector<2x32xf32>
    %cst_338 = arith.constant 5.000000e-01 : f32
    %635 = vector.broadcast %cst_338 : f32 to vector<2x32xf32>
    %636 = arith.mulf %635, %634 : vector<2x32xf32>
    %cst_339 = arith.constant 5.000000e-01 : f32
    %637 = vector.broadcast %cst_339 : f32 to vector<2x32xf32>
    %638 = arith.addf %636, %637 : vector<2x32xf32>
    %639 = arith.mulf %622, %595 : vector<2x32xf32>
    %640 = arith.mulf %611, %627 : vector<2x32xf32>
    %641 = arith.addf %639, %640 : vector<2x32xf32>
    %642 = math.tanh %641 : vector<2x32xf32>
    %643 = arith.mulf %638, %642 : vector<2x32xf32>
    %644 = arith.index_cast %600 : i32 to index
    %c0_340 = arith.constant 0 : index
    %645 = vector.load %arg13[%644, %c0_340] : memref<16x32xf32, #tpu.memory_space<vmem>>, vector<2x32xf32>
    tpu.vector_store %arg13[%644, %c0_340], %643 {strides = array<i32>} : memref<16x32xf32, #tpu.memory_space<vmem>>, vector<2x32xf32>,
    %c4_i32_341 = arith.constant 4 : i32
    %c2_i32_342 = arith.constant 2 : i32
    %646 = arith.muli %c4_i32_341, %c2_i32_342 : i32
    %647 = arith.index_cast %646 : i32 to index
    %c0_343 = arith.constant 0 : index
    %648 = vector.load %arg14[%647, %c0_343] : memref<16x32xf32, #tpu.memory_space<vmem>>, vector<2x32xf32>
    %cst_344 = arith.constant dense<0.000000e+00> : vector<2x32xf32>
    %649 = tpu.matmul %643, %452, %cst_344 {dimension_numbers = #tpu.dot_dimension_numbers<[1], [0], [0], [1], [0, 0, 1, 1], [], []>} : vector<2x32xf32>, vector<32x32xf32>, vector<2x32xf32> -> vector<2x32xf32>
    %650 = arith.addf %648, %649 : vector<2x32xf32>
    %cst_345 = arith.constant 5.000000e-01 : f32
    %651 = vector.broadcast %cst_345 : f32 to vector<2x32xf32>
    %652 = arith.mulf %651, %650 : vector<2x32xf32>
    %653 = math.tanh %652 : vector<2x32xf32>
    %cst_346 = arith.constant 5.000000e-01 : f32
    %654 = vector.broadcast %cst_346 : f32 to vector<2x32xf32>
    %655 = arith.mulf %654, %653 : vector<2x32xf32>
    %cst_347 = arith.constant 5.000000e-01 : f32
    %656 = vector.broadcast %cst_347 : f32 to vector<2x32xf32>
    %657 = arith.addf %655, %656 : vector<2x32xf32>
    %658 = arith.index_cast %646 : i32 to index
    %c0_348 = arith.constant 0 : index
    %659 = vector.load %arg15[%658, %c0_348] : memref<16x32xf32, #tpu.memory_space<vmem>>, vector<2x32xf32>
    %cst_349 = arith.constant dense<0.000000e+00> : vector<2x32xf32>
    %660 = tpu.matmul %643, %454, %cst_349 {dimension_numbers = #tpu.dot_dimension_numbers<[1], [0], [0], [1], [0, 0, 1, 1], [], []>} : vector<2x32xf32>, vector<32x32xf32>, vector<2x32xf32> -> vector<2x32xf32>
    %661 = arith.addf %659, %660 : vector<2x32xf32>
    %cst_350 = arith.constant 5.000000e-01 : f32
    %662 = vector.broadcast %cst_350 : f32 to vector<2x32xf32>
    %663 = arith.mulf %662, %661 : vector<2x32xf32>
    %664 = math.tanh %663 : vector<2x32xf32>
    %cst_351 = arith.constant 5.000000e-01 : f32
    %665 = vector.broadcast %cst_351 : f32 to vector<2x32xf32>
    %666 = arith.mulf %665, %664 : vector<2x32xf32>
    %cst_352 = arith.constant 5.000000e-01 : f32
    %667 = vector.broadcast %cst_352 : f32 to vector<2x32xf32>
    %668 = arith.addf %666, %667 : vector<2x32xf32>
    %669 = arith.index_cast %646 : i32 to index
    %c0_353 = arith.constant 0 : index
    %670 = vector.load %arg16[%669, %c0_353] : memref<16x32xf32, #tpu.memory_space<vmem>>, vector<2x32xf32>
    %cst_354 = arith.constant dense<0.000000e+00> : vector<2x32xf32>
    %671 = tpu.matmul %643, %456, %cst_354 {dimension_numbers = #tpu.dot_dimension_numbers<[1], [0], [0], [1], [0, 0, 1, 1], [], []>} : vector<2x32xf32>, vector<32x32xf32>, vector<2x32xf32> -> vector<2x32xf32>
    %672 = arith.addf %670, %671 : vector<2x32xf32>
    %673 = math.tanh %672 : vector<2x32xf32>
    %674 = arith.index_cast %646 : i32 to index
    %c0_355 = arith.constant 0 : index
    %675 = vector.load %arg17[%674, %c0_355] : memref<16x32xf32, #tpu.memory_space<vmem>>, vector<2x32xf32>
    %cst_356 = arith.constant dense<0.000000e+00> : vector<2x32xf32>
    %676 = tpu.matmul %643, %458, %cst_356 {dimension_numbers = #tpu.dot_dimension_numbers<[1], [0], [0], [1], [0, 0, 1, 1], [], []>} : vector<2x32xf32>, vector<32x32xf32>, vector<2x32xf32> -> vector<2x32xf32>
    %677 = arith.addf %675, %676 : vector<2x32xf32>
    %cst_357 = arith.constant 5.000000e-01 : f32
    %678 = vector.broadcast %cst_357 : f32 to vector<2x32xf32>
    %679 = arith.mulf %678, %677 : vector<2x32xf32>
    %680 = math.tanh %679 : vector<2x32xf32>
    %cst_358 = arith.constant 5.000000e-01 : f32
    %681 = vector.broadcast %cst_358 : f32 to vector<2x32xf32>
    %682 = arith.mulf %681, %680 : vector<2x32xf32>
    %cst_359 = arith.constant 5.000000e-01 : f32
    %683 = vector.broadcast %cst_359 : f32 to vector<2x32xf32>
    %684 = arith.addf %682, %683 : vector<2x32xf32>
    %685 = arith.mulf %668, %641 : vector<2x32xf32>
    %686 = arith.mulf %657, %673 : vector<2x32xf32>
    %687 = arith.addf %685, %686 : vector<2x32xf32>
    %688 = math.tanh %687 : vector<2x32xf32>
    %689 = arith.mulf %684, %688 : vector<2x32xf32>
    %690 = arith.index_cast %646 : i32 to index
    %c0_360 = arith.constant 0 : index
    %691 = vector.load %arg13[%690, %c0_360] : memref<16x32xf32, #tpu.memory_space<vmem>>, vector<2x32xf32>
    tpu.vector_store %arg13[%690, %c0_360], %689 {strides = array<i32>} : memref<16x32xf32, #tpu.memory_space<vmem>>, vector<2x32xf32>,
    %c5_i32_361 = arith.constant 5 : i32
    %c2_i32_362 = arith.constant 2 : i32
    %692 = arith.muli %c5_i32_361, %c2_i32_362 : i32
    %693 = arith.index_cast %692 : i32 to index
    %c0_363 = arith.constant 0 : index
    %694 = vector.load %arg14[%693, %c0_363] : memref<16x32xf32, #tpu.memory_space<vmem>>, vector<2x32xf32>
    %cst_364 = arith.constant dense<0.000000e+00> : vector<2x32xf32>
    %695 = tpu.matmul %689, %452, %cst_364 {dimension_numbers = #tpu.dot_dimension_numbers<[1], [0], [0], [1], [0, 0, 1, 1], [], []>} : vector<2x32xf32>, vector<32x32xf32>, vector<2x32xf32> -> vector<2x32xf32>
    %696 = arith.addf %694, %695 : vector<2x32xf32>
    %cst_365 = arith.constant 5.000000e-01 : f32
    %697 = vector.broadcast %cst_365 : f32 to vector<2x32xf32>
    %698 = arith.mulf %697, %696 : vector<2x32xf32>
    %699 = math.tanh %698 : vector<2x32xf32>
    %cst_366 = arith.constant 5.000000e-01 : f32
    %700 = vector.broadcast %cst_366 : f32 to vector<2x32xf32>
    %701 = arith.mulf %700, %699 : vector<2x32xf32>
    %cst_367 = arith.constant 5.000000e-01 : f32
    %702 = vector.broadcast %cst_367 : f32 to vector<2x32xf32>
    %703 = arith.addf %701, %702 : vector<2x32xf32>
    %704 = arith.index_cast %692 : i32 to index
    %c0_368 = arith.constant 0 : index
    %705 = vector.load %arg15[%704, %c0_368] : memref<16x32xf32, #tpu.memory_space<vmem>>, vector<2x32xf32>
    %cst_369 = arith.constant dense<0.000000e+00> : vector<2x32xf32>
    %706 = tpu.matmul %689, %454, %cst_369 {dimension_numbers = #tpu.dot_dimension_numbers<[1], [0], [0], [1], [0, 0, 1, 1], [], []>} : vector<2x32xf32>, vector<32x32xf32>, vector<2x32xf32> -> vector<2x32xf32>
    %707 = arith.addf %705, %706 : vector<2x32xf32>
    %cst_370 = arith.constant 5.000000e-01 : f32
    %708 = vector.broadcast %cst_370 : f32 to vector<2x32xf32>
    %709 = arith.mulf %708, %707 : vector<2x32xf32>
    %710 = math.tanh %709 : vector<2x32xf32>
    %cst_371 = arith.constant 5.000000e-01 : f32
    %711 = vector.broadcast %cst_371 : f32 to vector<2x32xf32>
    %712 = arith.mulf %711, %710 : vector<2x32xf32>
    %cst_372 = arith.constant 5.000000e-01 : f32
    %713 = vector.broadcast %cst_372 : f32 to vector<2x32xf32>
    %714 = arith.addf %712, %713 : vector<2x32xf32>
    %715 = arith.index_cast %692 : i32 to index
    %c0_373 = arith.constant 0 : index
    %716 = vector.load %arg16[%715, %c0_373] : memref<16x32xf32, #tpu.memory_space<vmem>>, vector<2x32xf32>
    %cst_374 = arith.constant dense<0.000000e+00> : vector<2x32xf32>
    %717 = tpu.matmul %689, %456, %cst_374 {dimension_numbers = #tpu.dot_dimension_numbers<[1], [0], [0], [1], [0, 0, 1, 1], [], []>} : vector<2x32xf32>, vector<32x32xf32>, vector<2x32xf32> -> vector<2x32xf32>
    %718 = arith.addf %716, %717 : vector<2x32xf32>
    %719 = math.tanh %718 : vector<2x32xf32>
    %720 = arith.index_cast %692 : i32 to index
    %c0_375 = arith.constant 0 : index
    %721 = vector.load %arg17[%720, %c0_375] : memref<16x32xf32, #tpu.memory_space<vmem>>, vector<2x32xf32>
    %cst_376 = arith.constant dense<0.000000e+00> : vector<2x32xf32>
    %722 = tpu.matmul %689, %458, %cst_376 {dimension_numbers = #tpu.dot_dimension_numbers<[1], [0], [0], [1], [0, 0, 1, 1], [], []>} : vector<2x32xf32>, vector<32x32xf32>, vector<2x32xf32> -> vector<2x32xf32>
    %723 = arith.addf %721, %722 : vector<2x32xf32>
    %cst_377 = arith.constant 5.000000e-01 : f32
    %724 = vector.broadcast %cst_377 : f32 to vector<2x32xf32>
    %725 = arith.mulf %724, %723 : vector<2x32xf32>
    %726 = math.tanh %725 : vector<2x32xf32>
    %cst_378 = arith.constant 5.000000e-01 : f32
    %727 = vector.broadcast %cst_378 : f32 to vector<2x32xf32>
    %728 = arith.mulf %727, %726 : vector<2x32xf32>
    %cst_379 = arith.constant 5.000000e-01 : f32
    %729 = vector.broadcast %cst_379 : f32 to vector<2x32xf32>
    %730 = arith.addf %728, %729 : vector<2x32xf32>
    %731 = arith.mulf %714, %687 : vector<2x32xf32>
    %732 = arith.mulf %703, %719 : vector<2x32xf32>
    %733 = arith.addf %731, %732 : vector<2x32xf32>
    %734 = math.tanh %733 : vector<2x32xf32>
    %735 = arith.mulf %730, %734 : vector<2x32xf32>
    %736 = arith.index_cast %692 : i32 to index
    %c0_380 = arith.constant 0 : index
    %737 = vector.load %arg13[%736, %c0_380] : memref<16x32xf32, #tpu.memory_space<vmem>>, vector<2x32xf32>
    tpu.vector_store %arg13[%736, %c0_380], %735 {strides = array<i32>} : memref<16x32xf32, #tpu.memory_space<vmem>>, vector<2x32xf32>,
    %c6_i32_381 = arith.constant 6 : i32
    %c2_i32_382 = arith.constant 2 : i32
    %738 = arith.muli %c6_i32_381, %c2_i32_382 : i32
    %739 = arith.index_cast %738 : i32 to index
    %c0_383 = arith.constant 0 : index
    %740 = vector.load %arg14[%739, %c0_383] : memref<16x32xf32, #tpu.memory_space<vmem>>, vector<2x32xf32>
    %cst_384 = arith.constant dense<0.000000e+00> : vector<2x32xf32>
    %741 = tpu.matmul %735, %452, %cst_384 {dimension_numbers = #tpu.dot_dimension_numbers<[1], [0], [0], [1], [0, 0, 1, 1], [], []>} : vector<2x32xf32>, vector<32x32xf32>, vector<2x32xf32> -> vector<2x32xf32>
    %742 = arith.addf %740, %741 : vector<2x32xf32>
    %cst_385 = arith.constant 5.000000e-01 : f32
    %743 = vector.broadcast %cst_385 : f32 to vector<2x32xf32>
    %744 = arith.mulf %743, %742 : vector<2x32xf32>
    %745 = math.tanh %744 : vector<2x32xf32>
    %cst_386 = arith.constant 5.000000e-01 : f32
    %746 = vector.broadcast %cst_386 : f32 to vector<2x32xf32>
    %747 = arith.mulf %746, %745 : vector<2x32xf32>
    %cst_387 = arith.constant 5.000000e-01 : f32
    %748 = vector.broadcast %cst_387 : f32 to vector<2x32xf32>
    %749 = arith.addf %747, %748 : vector<2x32xf32>
    %750 = arith.index_cast %738 : i32 to index
    %c0_388 = arith.constant 0 : index
    %751 = vector.load %arg15[%750, %c0_388] : memref<16x32xf32, #tpu.memory_space<vmem>>, vector<2x32xf32>
    %cst_389 = arith.constant dense<0.000000e+00> : vector<2x32xf32>
    %752 = tpu.matmul %735, %454, %cst_389 {dimension_numbers = #tpu.dot_dimension_numbers<[1], [0], [0], [1], [0, 0, 1, 1], [], []>} : vector<2x32xf32>, vector<32x32xf32>, vector<2x32xf32> -> vector<2x32xf32>
    %753 = arith.addf %751, %752 : vector<2x32xf32>
    %cst_390 = arith.constant 5.000000e-01 : f32
    %754 = vector.broadcast %cst_390 : f32 to vector<2x32xf32>
    %755 = arith.mulf %754, %753 : vector<2x32xf32>
    %756 = math.tanh %755 : vector<2x32xf32>
    %cst_391 = arith.constant 5.000000e-01 : f32
    %757 = vector.broadcast %cst_391 : f32 to vector<2x32xf32>
    %758 = arith.mulf %757, %756 : vector<2x32xf32>
    %cst_392 = arith.constant 5.000000e-01 : f32
    %759 = vector.broadcast %cst_392 : f32 to vector<2x32xf32>
    %760 = arith.addf %758, %759 : vector<2x32xf32>
    %761 = arith.index_cast %738 : i32 to index
    %c0_393 = arith.constant 0 : index
    %762 = vector.load %arg16[%761, %c0_393] : memref<16x32xf32, #tpu.memory_space<vmem>>, vector<2x32xf32>
    %cst_394 = arith.constant dense<0.000000e+00> : vector<2x32xf32>
    %763 = tpu.matmul %735, %456, %cst_394 {dimension_numbers = #tpu.dot_dimension_numbers<[1], [0], [0], [1], [0, 0, 1, 1], [], []>} : vector<2x32xf32>, vector<32x32xf32>, vector<2x32xf32> -> vector<2x32xf32>
    %764 = arith.addf %762, %763 : vector<2x32xf32>
    %765 = math.tanh %764 : vector<2x32xf32>
    %766 = arith.index_cast %738 : i32 to index
    %c0_395 = arith.constant 0 : index
    %767 = vector.load %arg17[%766, %c0_395] : memref<16x32xf32, #tpu.memory_space<vmem>>, vector<2x32xf32>
    %cst_396 = arith.constant dense<0.000000e+00> : vector<2x32xf32>
    %768 = tpu.matmul %735, %458, %cst_396 {dimension_numbers = #tpu.dot_dimension_numbers<[1], [0], [0], [1], [0, 0, 1, 1], [], []>} : vector<2x32xf32>, vector<32x32xf32>, vector<2x32xf32> -> vector<2x32xf32>
    %769 = arith.addf %767, %768 : vector<2x32xf32>
    %cst_397 = arith.constant 5.000000e-01 : f32
    %770 = vector.broadcast %cst_397 : f32 to vector<2x32xf32>
    %771 = arith.mulf %770, %769 : vector<2x32xf32>
    %772 = math.tanh %771 : vector<2x32xf32>
    %cst_398 = arith.constant 5.000000e-01 : f32
    %773 = vector.broadcast %cst_398 : f32 to vector<2x32xf32>
    %774 = arith.mulf %773, %772 : vector<2x32xf32>
    %cst_399 = arith.constant 5.000000e-01 : f32
    %775 = vector.broadcast %cst_399 : f32 to vector<2x32xf32>
    %776 = arith.addf %774, %775 : vector<2x32xf32>
    %777 = arith.mulf %760, %733 : vector<2x32xf32>
    %778 = arith.mulf %749, %765 : vector<2x32xf32>
    %779 = arith.addf %777, %778 : vector<2x32xf32>
    %780 = math.tanh %779 : vector<2x32xf32>
    %781 = arith.mulf %776, %780 : vector<2x32xf32>
    %782 = arith.index_cast %738 : i32 to index
    %c0_400 = arith.constant 0 : index
    %783 = vector.load %arg13[%782, %c0_400] : memref<16x32xf32, #tpu.memory_space<vmem>>, vector<2x32xf32>
    tpu.vector_store %arg13[%782, %c0_400], %781 {strides = array<i32>} : memref<16x32xf32, #tpu.memory_space<vmem>>, vector<2x32xf32>,
    %c7_i32_401 = arith.constant 7 : i32
    %c2_i32_402 = arith.constant 2 : i32
    %784 = arith.muli %c7_i32_401, %c2_i32_402 : i32
    %785 = arith.index_cast %784 : i32 to index
    %c0_403 = arith.constant 0 : index
    %786 = vector.load %arg14[%785, %c0_403] : memref<16x32xf32, #tpu.memory_space<vmem>>, vector<2x32xf32>
    %cst_404 = arith.constant dense<0.000000e+00> : vector<2x32xf32>
    %787 = tpu.matmul %781, %452, %cst_404 {dimension_numbers = #tpu.dot_dimension_numbers<[1], [0], [0], [1], [0, 0, 1, 1], [], []>} : vector<2x32xf32>, vector<32x32xf32>, vector<2x32xf32> -> vector<2x32xf32>
    %788 = arith.addf %786, %787 : vector<2x32xf32>
    %cst_405 = arith.constant 5.000000e-01 : f32
    %789 = vector.broadcast %cst_405 : f32 to vector<2x32xf32>
    %790 = arith.mulf %789, %788 : vector<2x32xf32>
    %791 = math.tanh %790 : vector<2x32xf32>
    %cst_406 = arith.constant 5.000000e-01 : f32
    %792 = vector.broadcast %cst_406 : f32 to vector<2x32xf32>
    %793 = arith.mulf %792, %791 : vector<2x32xf32>
    %cst_407 = arith.constant 5.000000e-01 : f32
    %794 = vector.broadcast %cst_407 : f32 to vector<2x32xf32>
    %795 = arith.addf %793, %794 : vector<2x32xf32>
    %796 = arith.index_cast %784 : i32 to index
    %c0_408 = arith.constant 0 : index
    %797 = vector.load %arg15[%796, %c0_408] : memref<16x32xf32, #tpu.memory_space<vmem>>, vector<2x32xf32>
    %cst_409 = arith.constant dense<0.000000e+00> : vector<2x32xf32>
    %798 = tpu.matmul %781, %454, %cst_409 {dimension_numbers = #tpu.dot_dimension_numbers<[1], [0], [0], [1], [0, 0, 1, 1], [], []>} : vector<2x32xf32>, vector<32x32xf32>, vector<2x32xf32> -> vector<2x32xf32>
    %799 = arith.addf %797, %798 : vector<2x32xf32>
    %cst_410 = arith.constant 5.000000e-01 : f32
    %800 = vector.broadcast %cst_410 : f32 to vector<2x32xf32>
    %801 = arith.mulf %800, %799 : vector<2x32xf32>
    %802 = math.tanh %801 : vector<2x32xf32>
    %cst_411 = arith.constant 5.000000e-01 : f32
    %803 = vector.broadcast %cst_411 : f32 to vector<2x32xf32>
    %804 = arith.mulf %803, %802 : vector<2x32xf32>
    %cst_412 = arith.constant 5.000000e-01 : f32
    %805 = vector.broadcast %cst_412 : f32 to vector<2x32xf32>
    %806 = arith.addf %804, %805 : vector<2x32xf32>
    %807 = arith.index_cast %784 : i32 to index
    %c0_413 = arith.constant 0 : index
    %808 = vector.load %arg16[%807, %c0_413] : memref<16x32xf32, #tpu.memory_space<vmem>>, vector<2x32xf32>
    %cst_414 = arith.constant dense<0.000000e+00> : vector<2x32xf32>
    %809 = tpu.matmul %781, %456, %cst_414 {dimension_numbers = #tpu.dot_dimension_numbers<[1], [0], [0], [1], [0, 0, 1, 1], [], []>} : vector<2x32xf32>, vector<32x32xf32>, vector<2x32xf32> -> vector<2x32xf32>
    %810 = arith.addf %808, %809 : vector<2x32xf32>
    %811 = math.tanh %810 : vector<2x32xf32>
    %812 = arith.index_cast %784 : i32 to index
    %c0_415 = arith.constant 0 : index
    %813 = vector.load %arg17[%812, %c0_415] : memref<16x32xf32, #tpu.memory_space<vmem>>, vector<2x32xf32>
    %cst_416 = arith.constant dense<0.000000e+00> : vector<2x32xf32>
    %814 = tpu.matmul %781, %458, %cst_416 {dimension_numbers = #tpu.dot_dimension_numbers<[1], [0], [0], [1], [0, 0, 1, 1], [], []>} : vector<2x32xf32>, vector<32x32xf32>, vector<2x32xf32> -> vector<2x32xf32>
    %815 = arith.addf %813, %814 : vector<2x32xf32>
    %cst_417 = arith.constant 5.000000e-01 : f32
    %816 = vector.broadcast %cst_417 : f32 to vector<2x32xf32>
    %817 = arith.mulf %816, %815 : vector<2x32xf32>
    %818 = math.tanh %817 : vector<2x32xf32>
    %cst_418 = arith.constant 5.000000e-01 : f32
    %819 = vector.broadcast %cst_418 : f32 to vector<2x32xf32>
    %820 = arith.mulf %819, %818 : vector<2x32xf32>
    %cst_419 = arith.constant 5.000000e-01 : f32
    %821 = vector.broadcast %cst_419 : f32 to vector<2x32xf32>
    %822 = arith.addf %820, %821 : vector<2x32xf32>
    %823 = arith.mulf %806, %779 : vector<2x32xf32>
    %824 = arith.mulf %795, %811 : vector<2x32xf32>
    %825 = arith.addf %823, %824 : vector<2x32xf32>
    %826 = math.tanh %825 : vector<2x32xf32>
    %827 = arith.mulf %822, %826 : vector<2x32xf32>
    %828 = arith.index_cast %784 : i32 to index
    %c0_420 = arith.constant 0 : index
    %829 = vector.load %arg13[%828, %c0_420] : memref<16x32xf32, #tpu.memory_space<vmem>>, vector<2x32xf32>
    tpu.vector_store %arg13[%828, %c0_420], %827 {strides = array<i32>} : memref<16x32xf32, #tpu.memory_space<vmem>>, vector<2x32xf32>,
    %c8_i32_421 = arith.constant 8 : i32
    %c1_422 = arith.constant 1 : index
    %c0_423 = arith.constant 0 : index
    %c0_424 = arith.constant 0 : index
    %830 = vector.load %arg11[%c1_422, %c0_423, %c0_424] : memref<2x2x32xf32, #tpu.memory_space<vmem>>, vector<1x2x32xf32>
    %831 = vector.shape_cast %830 : vector<1x2x32xf32> to vector<2x32xf32>
    %832 = vector.shape_cast %827 : vector<2x32xf32> to vector<1x2x32xf32>
    tpu.vector_store %arg11[%c1_422, %c0_423, %c0_424], %832 {strides = array<i32>} : memref<2x2x32xf32, #tpu.memory_space<vmem>>, vector<1x2x32xf32>,
    %c1_425 = arith.constant 1 : index
    %c0_426 = arith.constant 0 : index
    %c0_427 = arith.constant 0 : index
    %833 = vector.load %arg12[%c1_425, %c0_426, %c0_427] : memref<2x2x32xf32, #tpu.memory_space<vmem>>, vector<1x2x32xf32>
    %834 = vector.shape_cast %833 : vector<1x2x32xf32> to vector<2x32xf32>
    %835 = vector.shape_cast %825 : vector<2x32xf32> to vector<1x2x32xf32>
    tpu.vector_store %arg12[%c1_425, %c0_426, %c0_427], %835 {strides = array<i32>} : memref<2x2x32xf32, #tpu.memory_space<vmem>>, vector<1x2x32xf32>,
    %c0_428 = arith.constant 0 : index
    %c0_429 = arith.constant 0 : index
    %836 = vector.load %arg13[%c0_428, %c0_429] : memref<16x32xf32, #tpu.memory_space<vmem>>, vector<16x32xf32>
    %c0_430 = arith.constant 0 : index
    %c0_431 = arith.constant 0 : index
    %837 = vector.load %arg8[%c0_430, %c0_431] : memref<32x16xf32, #tpu.memory_space<vmem>>, vector<32x16xf32>
    %cst_432 = arith.constant dense<0.000000e+00> : vector<16x16xf32>
    %838 = tpu.matmul %836, %837, %cst_432 {dimension_numbers = #tpu.dot_dimension_numbers<[1], [0], [0], [1], [0, 0, 1, 1], [], []>} : vector<16x32xf32>, vector<32x16xf32>, vector<16x16xf32> -> vector<16x16xf32>
    %c0_433 = arith.constant 0 : index
    %c0_434 = arith.constant 0 : index
    %839 = vector.load %arg9[%c0_433, %c0_434] : memref<1x16xf32, #tpu.memory_space<vmem>>, vector<1x16xf32>
    %840 = vector.broadcast %839 : vector<1x16xf32> to vector<16x16xf32>
    %841 = arith.addf %838, %840 : vector<16x16xf32>
    %cst_435 = arith.constant 5.000000e-01 : f32
    %842 = vector.broadcast %cst_435 : f32 to vector<16x16xf32>
    %843 = arith.mulf %842, %841 : vector<16x16xf32>
    %844 = math.tanh %843 : vector<16x16xf32>
    %cst_436 = arith.constant 5.000000e-01 : f32
    %845 = vector.broadcast %cst_436 : f32 to vector<16x16xf32>
    %846 = arith.mulf %845, %844 : vector<16x16xf32>
    %cst_437 = arith.constant 5.000000e-01 : f32
    %847 = vector.broadcast %cst_437 : f32 to vector<16x16xf32>
    %848 = arith.addf %846, %847 : vector<16x16xf32>
    %c0_438 = arith.constant 0 : index
    %c0_439 = arith.constant 0 : index
    %849 = vector.load %arg10[%c0_438, %c0_439] : memref<16x16xf32, #tpu.memory_space<vmem>>, vector<16x16xf32>
    tpu.vector_store %arg10[%c0_438, %c0_439], %848 {strides = array<i32>} : memref<16x16xf32, #tpu.memory_space<vmem>>, vector<16x16xf32>,
    return
  }
}

</mosaic_0001>

<llo_original>
// kernel: rnn_decoder_forward.1
$region0: #{rnn_decoder_forward.1}
  #allocation0 [shape = 'u32[]', space=smem, size = 0x4, offset = 0x4, fixed_abs, tag = 'smem constant byte address 0x4 - core index']
  #allocation1 [shape = 'u32[72,128]{1,0:T(1,128)}', space=vmem, size = 0x9000, scoped, tag = 'internal scratch']
  #allocation2 [shape = 'f32[16,32]{1,0:T(8,128)}', space=vmem, size = 0x2000, scoped, tag = 'scratch operand']
  #allocation3 [shape = 'f32[16,32]{1,0:T(8,128)}', space=vmem, size = 0x2000, scoped, tag = 'scratch operand']
  #allocation4 [shape = 'f32[16,32]{1,0:T(8,128)}', space=vmem, size = 0x2000, scoped, tag = 'scratch operand']
  #allocation5 [shape = 'f32[16,32]{1,0:T(8,128)}', space=vmem, size = 0x2000, scoped, tag = 'scratch operand']
  #allocation6 [shape = 'f32[16,32]{1,0:T(8,128)}', space=vmem, size = 0x2000, scoped, tag = 'scratch operand']
  %s0 = inlined_call_operand.vmem [shape: f32[16,16], index: 0, kind: input, shape index: {}]
  %s1 = inlined_call_operand.vmem [shape: f32[2,2,32], index: 1, kind: input, shape index: {}]
  %s2 = inlined_call_operand.vmem [shape: f32[4,16,32], index: 2, kind: input, shape index: {}]
  %s3 = inlined_call_operand.hbm [shape: f32[4,32,32], index: 3, kind: input, shape index: {}]
  %s4 = inlined_call_operand.hbm [shape: f32[4,1,32], index: 4, kind: input, shape index: {}]
  %s5 = inlined_call_operand.hbm [shape: f32[4,32,32], index: 5, kind: input, shape index: {}]
  %s6 = inlined_call_operand.hbm [shape: f32[4,32,32], index: 6, kind: input, shape index: {}]
  %s7 = inlined_call_operand.hbm [shape: f32[4,1,32], index: 7, kind: input, shape index: {}]
  %s8 = inlined_call_operand.vmem [shape: f32[32,16], index: 8, kind: input, shape index: {}]
  %s9 = inlined_call_operand.hbm [shape: f32[1,16], index: 9, kind: input, shape index: {}]
  %s10 = inlined_call_operand.vmem [shape: f32[16,16], index: 10, kind: output, shape index: {0}]
  %s11 = inlined_call_operand.hbm [shape: f32[2,2,32], index: 11, kind: output, shape index: {1}]
  %s12 = inlined_call_operand.hbm [shape: f32[2,2,32], index: 12, kind: output, shape index: {2}]
  %13 = xla_tuple %s10, %s11, %s12
  %s14 = sld [smem:[#allocation0]]
  $region90: #{rnn_decoder_forward.1} parent=0
    _
  %s16 = ssub.s32 1, %s14
  %s17 = scalar_select 0, %s16, %s14
  $region1: #{rnn_decoder_forward.1} parent=0
    #allocation7 [shape = 'u8[65536]{0}', space=vmem, size = 0x10000, scoped, tag = 'input window, operand 3, single buffered']
    #allocation8 [shape = 's32[1]{0}', space=sflag, size = 0x4, scoped, tag = 'scoped memory for rnn_decoder_forward.1']
    #allocation9 [shape = 's32[1]{0}', space=sflag, size = 0x4, scoped, tag = 'scoped memory for rnn_decoder_forward.1']
    #allocation10 [shape = 'u8[2048]{0}', space=vmem, size = 0x800, scoped, tag = 'input window, operand 4, single buffered']
    #allocation11 [shape = 's32[1]{0}', space=sflag, size = 0x4, scoped, tag = 'scoped memory for rnn_decoder_forward.1']
    #allocation12 [shape = 'u8[65536]{0}', space=vmem, size = 0x10000, scoped, tag = 'input window, operand 5, single buffered']
    #allocation13 [shape = 'u8[65536]{0}', space=vmem, size = 0x10000, scoped, tag = 'input window, operand 6, single buffered']
    #allocation14 [shape = 's32[1]{0}', space=sflag, size = 0x4, scoped, tag = 'scoped memory for rnn_decoder_forward.1']
    #allocation15 [shape = 'u8[2048]{0}', space=vmem, size = 0x800, scoped, tag = 'input window, operand 7, single buffered']
    #allocation16 [shape = 'u8[512]{0}', space=vmem, size = 0x400, scoped, tag = 'input window, operand 9, single buffered']
    #allocation17 [shape = 's32[1]{0}', space=sflag, size = 0x4, scoped, tag = 'scoped memory for rnn_decoder_forward.1']
    #allocation18 [shape = 'u8[2048]{0}', space=vmem, size = 0x800, scoped, tag = 'output window, operand 1, single buffered']
    #allocation19 [shape = 'u8[2048]{0}', space=vmem, size = 0x800, scoped, tag = 'output window, operand 2, single buffered']
    #allocation20 [shape = 's32[1]{0}', space=sflag, size = 0x4, scoped, tag = 'scoped memory for rnn_decoder_forward.1']
    %18 = vsyncpa [#allocation8], 0
    %19 = vsyncpa [#allocation11], 0
    %20 = vsyncpa [#allocation14], 0
    %21 = vsyncpa [#allocation17], 0
    %22 = vsyncpa [#allocation9], 0
    %23 = vsyncpa [#allocation20], 0
    // Predicated region
    $region2: #{rnn_decoder_forward.1} parent=1 // pred_check
      _
    $region3: #{rnn_decoder_forward.1} parent=1 // pred_check_branch
      %25 = sbr.rel (0) target = $region5
    $region4: #{rnn_decoder_forward.1} parent=1 // pred_region
      _
    $region5: #{rnn_decoder_forward.1} parent=1 // pred_fallthru
      _
    // Predicated region
    $region6: #{rnn_decoder_forward.1} parent=1 // pred_check
      _
    $region7: #{rnn_decoder_forward.1} parent=1 // pred_check_branch
      %27 = sbr.rel (0) target = $region9
    $region8: #{rnn_decoder_forward.1} parent=1 // pred_region
      _
    $region9: #{rnn_decoder_forward.1} parent=1 // pred_fallthru
      _
    // Predicated region
    $region10: #{rnn_decoder_forward.1} parent=1 // pred_check
      _
    $region11: #{rnn_decoder_forward.1} parent=1 // pred_check_branch
      %29 = sbr.rel (0) target = $region13
    $region12: #{rnn_decoder_forward.1} parent=1 // pred_region
      _
    $region13: #{rnn_decoder_forward.1} parent=1 // pred_fallthru
      _
    // Predicated region
    $region14: #{rnn_decoder_forward.1} parent=1 // pred_check
      _
    $region15: #{rnn_decoder_forward.1} parent=1 // pred_check_branch
      %31 = sbr.rel (0) target = $region17
    $region16: #{rnn_decoder_forward.1} parent=1 // pred_region
      %33 = vsyncadd [#allocation8], 0
      %s34 = sshll.u32 %s3, 4
      %s35 = int_to_ptr.hbm [resolvable:$true] %s34
      %s36 = sshll.u32 [#allocation7], 4
      %s37 = int_to_ptr.vmem [resolvable:$true] %s36
      %42 = dma.hbm_to_vmem [thread:$0]  %s35, 2048, %s37, [#allocation8], 128, 128, 8
    $region17: #{rnn_decoder_forward.1} parent=1 // pred_fallthru
      _
    // Predicated region
    $region18: #{rnn_decoder_forward.1} parent=1 // pred_check
      _
    $region19: #{rnn_decoder_forward.1} parent=1 // pred_check_branch
      %44 = sbr.rel (0) target = $region21
    $region20: #{rnn_decoder_forward.1} parent=1 // pred_region
      %46 = vsyncadd [#allocation11], 0
      %s47 = sshll.u32 %s4, 4
      %s48 = int_to_ptr.hbm [resolvable:$true] %s47
      %s49 = sshll.u32 [#allocation10], 4
      %s50 = int_to_ptr.vmem [resolvable:$true] %s49
      %55 = dma.hbm_to_vmem [thread:$0]  %s48, 64, %s50, [#allocation11], 16, 16, 1
    $region21: #{rnn_decoder_forward.1} parent=1 // pred_fallthru
      _
    // Predicated region
    $region22: #{rnn_decoder_forward.1} parent=1 // pred_check
      _
    $region23: #{rnn_decoder_forward.1} parent=1 // pred_check_branch
      %57 = sbr.rel (0) target = $region25
    $region24: #{rnn_decoder_forward.1} parent=1 // pred_region
      %59 = vsyncadd [#allocation11], 0
      %s60 = sshll.u32 %s5, 4
      %s61 = int_to_ptr.hbm [resolvable:$true] %s60
      %s62 = sshll.u32 [#allocation12], 4
      %s63 = int_to_ptr.vmem [resolvable:$true] %s62
      %68 = dma.hbm_to_vmem [thread:$0]  %s61, 2048, %s63, [#allocation11], 128, 128, 8
    $region25: #{rnn_decoder_forward.1} parent=1 // pred_fallthru
      _
    // Predicated region
    $region26: #{rnn_decoder_forward.1} parent=1 // pred_check
      _
    $region27: #{rnn_decoder_forward.1} parent=1 // pred_check_branch
      %70 = sbr.rel (0) target = $region29
    $region28: #{rnn_decoder_forward.1} parent=1 // pred_region
      %72 = vsyncadd [#allocation14], 0
      %s73 = sshll.u32 %s6, 4
      %s74 = int_to_ptr.hbm [resolvable:$true] %s73
      %s75 = sshll.u32 [#allocation13], 4
      %s76 = int_to_ptr.vmem [resolvable:$true] %s75
      %81 = dma.hbm_to_vmem [thread:$0]  %s74, 2048, %s76, [#allocation14], 128, 128, 8
    $region29: #{rnn_decoder_forward.1} parent=1 // pred_fallthru
      _
    // Predicated region
    $region30: #{rnn_decoder_forward.1} parent=1 // pred_check
      _
    $region31: #{rnn_decoder_forward.1} parent=1 // pred_check_branch
      %83 = sbr.rel (0) target = $region33
    $region32: #{rnn_decoder_forward.1} parent=1 // pred_region
      %85 = vsyncadd [#allocation14], 0
      %s86 = sshll.u32 %s7, 4
      %s87 = int_to_ptr.hbm [resolvable:$true] %s86
      %s88 = sshll.u32 [#allocation15], 4
      %s89 = int_to_ptr.vmem [resolvable:$true] %s88
      %94 = dma.hbm_to_vmem [thread:$0]  %s87, 64, %s89, [#allocation14], 16, 16, 1
    $region33: #{rnn_decoder_forward.1} parent=1 // pred_fallthru
      _
    // Predicated region
    $region34: #{rnn_decoder_forward.1} parent=1 // pred_check
      _
    $region35: #{rnn_decoder_forward.1} parent=1 // pred_check_branch
      %96 = sbr.rel (0) target = $region37
    $region36: #{rnn_decoder_forward.1} parent=1 // pred_region
      _
    $region37: #{rnn_decoder_forward.1} parent=1 // pred_fallthru
      _
    // Predicated region
    $region38: #{rnn_decoder_forward.1} parent=1 // pred_check
      _
    $region39: #{rnn_decoder_forward.1} parent=1 // pred_check_branch
      %98 = sbr.rel (0) target = $region41
    $region40: #{rnn_decoder_forward.1} parent=1 // pred_region
      %100 = vsyncadd [#allocation17], 0
      %s102 = sshll.u32 %s9, 4
      %s103 = int_to_ptr.hbm [resolvable:$true] %s102
      %s104 = sshll.u32 [#allocation16], 4
      %s105 = int_to_ptr.vmem [resolvable:$true] %s104
      %107 = dma.hbm_to_vmem [thread:$0]  %s103, 16, %s105, [#allocation17]
    $region41: #{rnn_decoder_forward.1} parent=1 // pred_fallthru
      _
    // Predicated region
    $region42: #{rnn_decoder_forward.1} parent=1 // pred_check
      _
    $region43: #{rnn_decoder_forward.1} parent=1 // pred_check_branch
      %109 = sbr.rel (0) target = $region45
    $region44: #{rnn_decoder_forward.1} parent=1 // pred_region
      %111 = dma.done [#allocation8], 2048
    $region45: #{rnn_decoder_forward.1} parent=1 // pred_fallthru
      _
    // Predicated region
    $region46: #{rnn_decoder_forward.1} parent=1 // pred_check
      _
    $region47: #{rnn_decoder_forward.1} parent=1 // pred_check_branch
      %113 = sbr.rel (0) target = $region49
    $region48: #{rnn_decoder_forward.1} parent=1 // pred_region
      %115 = dma.done [#allocation11], 64
    $region49: #{rnn_decoder_forward.1} parent=1 // pred_fallthru
      _
    // Predicated region
    $region50: #{rnn_decoder_forward.1} parent=1 // pred_check
      _
    $region51: #{rnn_decoder_forward.1} parent=1 // pred_check_branch
      %117 = sbr.rel (0) target = $region53
    $region52: #{rnn_decoder_forward.1} parent=1 // pred_region
      %119 = dma.done [#allocation11], 2048
    $region53: #{rnn_decoder_forward.1} parent=1 // pred_fallthru
      _
    // Predicated region
    $region54: #{rnn_decoder_forward.1} parent=1 // pred_check
      _
    $region55: #{rnn_decoder_forward.1} parent=1 // pred_check_branch
      %121 = sbr.rel (0) target = $region57
    $region56: #{rnn_decoder_forward.1} parent=1 // pred_region
      %123 = dma.done [#allocation14], 2048
    $region57: #{rnn_decoder_forward.1} parent=1 // pred_fallthru
      _
    // Predicated region
    $region58: #{rnn_decoder_forward.1} parent=1 // pred_check
      _
    $region59: #{rnn_decoder_forward.1} parent=1 // pred_check_branch
      %125 = sbr.rel (0) target = $region61
    $region60: #{rnn_decoder_forward.1} parent=1 // pred_region
      %127 = dma.done [#allocation14], 64
    $region61: #{rnn_decoder_forward.1} parent=1 // pred_fallthru
      _
    // Predicated region
    $region62: #{rnn_decoder_forward.1} parent=1 // pred_check
      _
    $region63: #{rnn_decoder_forward.1} parent=1 // pred_check_branch
      %129 = sbr.rel (0) target = $region65
    $region64: #{rnn_decoder_forward.1} parent=1 // pred_region
      %131 = dma.done [#allocation17], 16
    $region65: #{rnn_decoder_forward.1} parent=1 // pred_fallthru
      _
    %v132 = vld [vmem:[%s0] sm:$0xff]
    %v133 = vld [vmem:[%s0 + $0x8] sm:$0xff]
    %v134 = vld [vmem:[%s2] sm:$0xff]
    %v135 = vld [vmem:[%s2 + $0x8] sm:$0xff]
    %v136 = vld [vmem:[#allocation10] sm:$0x1]
    %v138 = vperm.slane %v136, 0
    %vm140 = vcmask 130048
    %v142 = vsel %vm140, %v132, 0
    %v145 = vsel %vm140, %v133, 0
    %147 = vmatpush.msra.mxu0 0.0
    %148 = vmatpush.msra.mxu0 0.0
    %149 = vmatpush.msra.mxu0 0.0
    %150 = vmatpush.msra.mxu0 0.0
    %151 = vmatpush.msra.mxu0 0.0
    %152 = vmatpush.msra.mxu0 0.0
    %153 = vmatpush.msra.mxu0 0.0
    %154 = vmatpush.msra.mxu0 0.0
    %155 = vmatpush.msra.mxu0 0.0
    %156 = vmatpush.msra.mxu0 0.0
    %157 = vmatpush.msra.mxu0 0.0
    %158 = vmatpush.msra.mxu0 0.0
    %159 = vmatpush.msra.mxu0 0.0
    %160 = vmatpush.msra.mxu0 0.0
    %161 = vmatpush.msra.mxu0 %v135
    %162 = vmatpush.msra.mxu0 %v134
    %163 = vmatmul.f32.gmra.mxu0 %v142
    %v164 = vpop.f32.mrf.mxu0
    %v165 = vadd.f32 %v138, %v164
    %166 = vmatmul.f32.gmra.mxu0 %v145
    %v167 = vpop.f32.mrf.mxu0
    %v168 = vadd.f32 %v138, %v167
    %169 = vdwg.mxu0
    %vm170 = vcmask 261120
    %171 = vst.msk [vmem:[#allocation3] sm:$0xff] %vm170, %v165
    %172 = vst.msk [vmem:[#allocation3 + $0x8] sm:$0xff] %vm170, %v168
    %s173 = scalar_lea.vmem %s2, 16
    %v174 = vld [vmem:[%s173] sm:$0xff]
    %v175 = vld [vmem:[%s173 + $0x8] sm:$0xff]
    %s176 = scalar_lea.vmem [#allocation10], 1
    %v177 = vld [vmem:[%s176] sm:$0x1]
    %v179 = vperm.slane %v177, 0
    %181 = vmatpush.msra.mxu0 0.0
    %182 = vmatpush.msra.mxu0 0.0
    %183 = vmatpush.msra.mxu0 0.0
    %184 = vmatpush.msra.mxu0 0.0
    %185 = vmatpush.msra.mxu0 0.0
    %186 = vmatpush.msra.mxu0 0.0
    %187 = vmatpush.msra.mxu0 0.0
    %188 = vmatpush.msra.mxu0 0.0
    %189 = vmatpush.msra.mxu0 0.0
    %190 = vmatpush.msra.mxu0 0.0
    %191 = vmatpush.msra.mxu0 0.0
    %192 = vmatpush.msra.mxu0 0.0
    %193 = vmatpush.msra.mxu0 0.0
    %194 = vmatpush.msra.mxu0 0.0
    %195 = vmatpush.msra.mxu0 %v175
    %196 = vmatpush.msra.mxu0 %v174
    %197 = vmatmul.f32.gmra.mxu0 %v142
    %v198 = vpop.f32.mrf.mxu0
    %v199 = vadd.f32 %v179, %v198
    %200 = vmatmul.f32.gmra.mxu0 %v145
    %v201 = vpop.f32.mrf.mxu0
    %v202 = vadd.f32 %v179, %v201
    %203 = vdwg.mxu0
    %204 = vst.msk [vmem:[#allocation4] sm:$0xff] %vm170, %v199
    %205 = vst.msk [vmem:[#allocation4 + $0x8] sm:$0xff] %vm170, %v202
    %s206 = scalar_lea.vmem %s2, 32
    %v207 = vld [vmem:[%s206] sm:$0xff]
    %v208 = vld [vmem:[%s206 + $0x8] sm:$0xff]
    %s209 = scalar_lea.vmem [#allocation10], 2
    %v210 = vld [vmem:[%s209] sm:$0x1]
    %v212 = vperm.slane %v210, 0
    %214 = vmatpush.msra.mxu0 0.0
    %215 = vmatpush.msra.mxu0 0.0
    %216 = vmatpush.msra.mxu0 0.0
    %217 = vmatpush.msra.mxu0 0.0
    %218 = vmatpush.msra.mxu0 0.0
    %219 = vmatpush.msra.mxu0 0.0
    %220 = vmatpush.msra.mxu0 0.0
    %221 = vmatpush.msra.mxu0 0.0
    %222 = vmatpush.msra.mxu0 0.0
    %223 = vmatpush.msra.mxu0 0.0
    %224 = vmatpush.msra.mxu0 0.0
    %225 = vmatpush.msra.mxu0 0.0
    %226 = vmatpush.msra.mxu0 0.0
    %227 = vmatpush.msra.mxu0 0.0
    %228 = vmatpush.msra.mxu0 %v208
    %229 = vmatpush.msra.mxu0 %v207
    %230 = vmatmul.f32.gmra.mxu0 %v142
    %v231 = vpop.f32.mrf.mxu0
    %v232 = vadd.f32 %v212, %v231
    %233 = vmatmul.f32.gmra.mxu0 %v145
    %v234 = vpop.f32.mrf.mxu0
    %v235 = vadd.f32 %v212, %v234
    %236 = vdwg.mxu0
    %237 = vst.msk [vmem:[#allocation5] sm:$0xff] %vm170, %v232
    %238 = vst.msk [vmem:[#allocation5 + $0x8] sm:$0xff] %vm170, %v235
    %s239 = scalar_lea.vmem %s2, 48
    %v240 = vld [vmem:[%s239] sm:$0xff]
    %v241 = vld [vmem:[%s239 + $0x8] sm:$0xff]
    %s242 = scalar_lea.vmem [#allocation10], 3
    %v243 = vld [vmem:[%s242] sm:$0x1]
    %v245 = vperm.slane %v243, 0
    %247 = vmatpush.msra.mxu0 0.0
    %248 = vmatpush.msra.mxu0 0.0
    %249 = vmatpush.msra.mxu0 0.0
    %250 = vmatpush.msra.mxu0 0.0
    %251 = vmatpush.msra.mxu0 0.0
    %252 = vmatpush.msra.mxu0 0.0
    %253 = vmatpush.msra.mxu0 0.0
    %254 = vmatpush.msra.mxu0 0.0
    %255 = vmatpush.msra.mxu0 0.0
    %256 = vmatpush.msra.mxu0 0.0
    %257 = vmatpush.msra.mxu0 0.0
    %258 = vmatpush.msra.mxu0 0.0
    %259 = vmatpush.msra.mxu0 0.0
    %260 = vmatpush.msra.mxu0 0.0
    %261 = vmatpush.msra.mxu0 %v241
    %262 = vmatpush.msra.mxu0 %v240
    %263 = vmatmul.f32.gmra.mxu0 %v142
    %v264 = vpop.f32.mrf.mxu0
    %v265 = vadd.f32 %v245, %v264
    %266 = vmatmul.f32.gmra.mxu0 %v145
    %v267 = vpop.f32.mrf.mxu0
    %v268 = vadd.f32 %v245, %v267
    %269 = vdwg.mxu0
    %270 = vst.msk [vmem:[#allocation6] sm:$0xff] %vm170, %v265
    %271 = vst.msk [vmem:[#allocation6 + $0x8] sm:$0xff] %vm170, %v268
    %v272 = vld [vmem:[#allocation7] sm:$0xff]
    %v273 = vld [vmem:[#allocation7 + $0x8] sm:$0xff]
    %v274 = vld [vmem:[#allocation7 + $0x10] sm:$0xff]
    %v275 = vld [vmem:[#allocation7 + $0x18] sm:$0xff]
    %s276 = scalar_lea.vmem [#allocation7], 32
    %v277 = vld [vmem:[%s276] sm:$0xff]
    %v278 = vld [vmem:[%s276 + $0x8] sm:$0xff]
    %v279 = vld [vmem:[%s276 + $0x10] sm:$0xff]
    %v280 = vld [vmem:[%s276 + $0x18] sm:$0xff]
    %s281 = scalar_lea.vmem [#allocation7], 64
    %v282 = vld [vmem:[%s281] sm:$0xff]
    %v283 = vld [vmem:[%s281 + $0x8] sm:$0xff]
    %v284 = vld [vmem:[%s281 + $0x10] sm:$0xff]
    %v285 = vld [vmem:[%s281 + $0x18] sm:$0xff]
    %s286 = scalar_lea.vmem [#allocation7], 96
    %v287 = vld [vmem:[%s286] sm:$0xff]
    %v288 = vld [vmem:[%s286 + $0x8] sm:$0xff]
    %v289 = vld [vmem:[%s286 + $0x10] sm:$0xff]
    %v290 = vld [vmem:[%s286 + $0x18] sm:$0xff]
    %v291 = vld [vmem:[%s1] sm:$0x3]
    %v292 = vld [vmem:[#allocation3] sm:$0x3]
    %v294 = vsel %vm170, %v291, 0
    %296 = vmatpush.msra.mxu0 0.0
    %297 = vmatpush.msra.mxu0 0.0
    %298 = vmatpush.msra.mxu0 0.0
    %299 = vmatpush.msra.mxu0 0.0
    %300 = vmatpush.msra.mxu0 0.0
    %301 = vmatpush.msra.mxu0 0.0
    %302 = vmatpush.msra.mxu0 0.0
    %303 = vmatpush.msra.mxu0 0.0
    %304 = vmatpush.msra.mxu0 0.0
    %305 = vmatpush.msra.mxu0 0.0
    %306 = vmatpush.msra.mxu0 0.0
    %307 = vmatpush.msra.mxu0 0.0
    %308 = vmatpush.msra.mxu0 %v275
    %309 = vmatpush.msra.mxu0 %v274
    %310 = vmatpush.msra.mxu0 %v273
    %311 = vmatpush.msra.mxu0 %v272
    %312 = vmatmul.f32.gmra.mxu0 %v294
    %v313 = vpop.f32.mrf.mxu0
    %v314 = vadd.f32 0.0, %v313
    %315 = vdwg.mxu0
    %v316 = vadd.f32 %v292, %v314
    %v317 = vmul.f32 %v316, 0.5
    %v318 = vtanh.pop %v317
    %v319 = vmul.f32 %v318, 0.5
    %v320 = vadd.f32 %v319, 0.5
    %v321 = vld [vmem:[#allocation4] sm:$0x3]
    %322 = vmatpush.msra.mxu0 0.0
    %323 = vmatpush.msra.mxu0 0.0
    %324 = vmatpush.msra.mxu0 0.0
    %325 = vmatpush.msra.mxu0 0.0
    %326 = vmatpush.msra.mxu0 0.0
    %327 = vmatpush.msra.mxu0 0.0
    %328 = vmatpush.msra.mxu0 0.0
    %329 = vmatpush.msra.mxu0 0.0
    %330 = vmatpush.msra.mxu0 0.0
    %331 = vmatpush.msra.mxu0 0.0
    %332 = vmatpush.msra.mxu0 0.0
    %333 = vmatpush.msra.mxu0 0.0
    %334 = vmatpush.msra.mxu0 %v280
    %335 = vmatpush.msra.mxu0 %v279
    %336 = vmatpush.msra.mxu0 %v278
    %337 = vmatpush.msra.mxu0 %v277
    %338 = vmatmul.f32.gmra.mxu0 %v294
    %v339 = vpop.f32.mrf.mxu0
    %v340 = vadd.f32 0.0, %v339
    %341 = vdwg.mxu0
    %v342 = vadd.f32 %v321, %v340
    %v343 = vmul.f32 %v342, 0.5
    %v344 = vtanh.pop %v343
    %v345 = vmul.f32 %v344, 0.5
    %v346 = vadd.f32 %v345, 0.5
    %v347 = vld [vmem:[#allocation5] sm:$0x3]
    %348 = vmatpush.msra.mxu0 0.0
    %349 = vmatpush.msra.mxu0 0.0
    %350 = vmatpush.msra.mxu0 0.0
    %351 = vmatpush.msra.mxu0 0.0
    %352 = vmatpush.msra.mxu0 0.0
    %353 = vmatpush.msra.mxu0 0.0
    %354 = vmatpush.msra.mxu0 0.0
    %355 = vmatpush.msra.mxu0 0.0
    %356 = vmatpush.msra.mxu0 0.0
    %357 = vmatpush.msra.mxu0 0.0
    %358 = vmatpush.msra.mxu0 0.0
    %359 = vmatpush.msra.mxu0 0.0
    %360 = vmatpush.msra.mxu0 %v285
    %361 = vmatpush.msra.mxu0 %v284
    %362 = vmatpush.msra.mxu0 %v283
    %363 = vmatpush.msra.mxu0 %v282
    %364 = vmatmul.f32.gmra.mxu0 %v294
    %v365 = vpop.f32.mrf.mxu0
    %v366 = vadd.f32 0.0, %v365
    %367 = vdwg.mxu0
    %v368 = vadd.f32 %v347, %v366
    %v369 = vtanh.pop %v368
    %v370 = vld [vmem:[#allocation6] sm:$0x3]
    %371 = vmatpush.msra.mxu0 0.0
    %372 = vmatpush.msra.mxu0 0.0
    %373 = vmatpush.msra.mxu0 0.0
    %374 = vmatpush.msra.mxu0 0.0
    %375 = vmatpush.msra.mxu0 0.0
    %376 = vmatpush.msra.mxu0 0.0
    %377 = vmatpush.msra.mxu0 0.0
    %378 = vmatpush.msra.mxu0 0.0
    %379 = vmatpush.msra.mxu0 0.0
    %380 = vmatpush.msra.mxu0 0.0
    %381 = vmatpush.msra.mxu0 0.0
    %382 = vmatpush.msra.mxu0 0.0
    %383 = vmatpush.msra.mxu0 %v290
    %384 = vmatpush.msra.mxu0 %v289
    %385 = vmatpush.msra.mxu0 %v288
    %386 = vmatpush.msra.mxu0 %v287
    %387 = vmatmul.f32.gmra.mxu0 %v294
    %v388 = vpop.f32.mrf.mxu0
    %v389 = vadd.f32 0.0, %v388
    %390 = vdwg.mxu0
    %v391 = vadd.f32 %v370, %v389
    %v392 = vmul.f32 %v391, 0.5
    %v393 = vtanh.pop %v392
    %v394 = vmul.f32 %v393, 0.5
    %v395 = vadd.f32 %v394, 0.5
    %v396 = vmul.f32 %v346, 0.0
    %v397 = vmul.f32 %v320, %v369
    %v398 = vadd.f32 %v396, %v397
    %v399 = vtanh.pop %v398
    %v400 = vmul.f32 %v395, %v399
    %vm401 = vcmask 254976
    %402 = vst.msk [vmem:[#allocation2] sm:$0x3] %vm401, %v400
    %v403 = vld [vmem:[#allocation3 + $0x2] sm:$0x3]
    %v405 = vsel %vm170, %v400, 0
    %407 = vmatpush.msra.mxu0 0.0
    %408 = vmatpush.msra.mxu0 0.0
    %409 = vmatpush.msra.mxu0 0.0
    %410 = vmatpush.msra.mxu0 0.0
    %411 = vmatpush.msra.mxu0 0.0
    %412 = vmatpush.msra.mxu0 0.0
    %413 = vmatpush.msra.mxu0 0.0
    %414 = vmatpush.msra.mxu0 0.0
    %415 = vmatpush.msra.mxu0 0.0
    %416 = vmatpush.msra.mxu0 0.0
    %417 = vmatpush.msra.mxu0 0.0
    %418 = vmatpush.msra.mxu0 0.0
    %419 = vmatpush.msra.mxu0 %v275
    %420 = vmatpush.msra.mxu0 %v274
    %421 = vmatpush.msra.mxu0 %v273
    %422 = vmatpush.msra.mxu0 %v272
    %423 = vmatmul.f32.gmra.mxu0 %v405
    %v424 = vpop.f32.mrf.mxu0
    %v425 = vadd.f32 0.0, %v424
    %426 = vdwg.mxu0
    %v427 = vadd.f32 %v403, %v425
    %v428 = vmul.f32 %v427, 0.5
    %v429 = vtanh.pop %v428
    %v430 = vmul.f32 %v429, 0.5
    %v431 = vadd.f32 %v430, 0.5
    %v432 = vld [vmem:[#allocation4 + $0x2] sm:$0x3]
    %433 = vmatpush.msra.mxu0 0.0
    %434 = vmatpush.msra.mxu0 0.0
    %435 = vmatpush.msra.mxu0 0.0
    %436 = vmatpush.msra.mxu0 0.0
    %437 = vmatpush.msra.mxu0 0.0
    %438 = vmatpush.msra.mxu0 0.0
    %439 = vmatpush.msra.mxu0 0.0
    %440 = vmatpush.msra.mxu0 0.0
    %441 = vmatpush.msra.mxu0 0.0
    %442 = vmatpush.msra.mxu0 0.0
    %443 = vmatpush.msra.mxu0 0.0
    %444 = vmatpush.msra.mxu0 0.0
    %445 = vmatpush.msra.mxu0 %v280
    %446 = vmatpush.msra.mxu0 %v279
    %447 = vmatpush.msra.mxu0 %v278
    %448 = vmatpush.msra.mxu0 %v277
    %449 = vmatmul.f32.gmra.mxu0 %v405
    %v450 = vpop.f32.mrf.mxu0
    %v451 = vadd.f32 0.0, %v450
    %452 = vdwg.mxu0
    %v453 = vadd.f32 %v432, %v451
    %v454 = vmul.f32 %v453, 0.5
    %v455 = vtanh.pop %v454
    %v456 = vmul.f32 %v455, 0.5
    %v457 = vadd.f32 %v456, 0.5
    %v458 = vld [vmem:[#allocation5 + $0x2] sm:$0x3]
    %459 = vmatpush.msra.mxu0 0.0
    %460 = vmatpush.msra.mxu0 0.0
    %461 = vmatpush.msra.mxu0 0.0
    %462 = vmatpush.msra.mxu0 0.0
    %463 = vmatpush.msra.mxu0 0.0
    %464 = vmatpush.msra.mxu0 0.0
    %465 = vmatpush.msra.mxu0 0.0
    %466 = vmatpush.msra.mxu0 0.0
    %467 = vmatpush.msra.mxu0 0.0
    %468 = vmatpush.msra.mxu0 0.0
    %469 = vmatpush.msra.mxu0 0.0
    %470 = vmatpush.msra.mxu0 0.0
    %471 = vmatpush.msra.mxu0 %v285
    %472 = vmatpush.msra.mxu0 %v284
    %473 = vmatpush.msra.mxu0 %v283
    %474 = vmatpush.msra.mxu0 %v282
    %475 = vmatmul.f32.gmra.mxu0 %v405
    %v476 = vpop.f32.mrf.mxu0
    %v477 = vadd.f32 0.0, %v476
    %478 = vdwg.mxu0
    %v479 = vadd.f32 %v458, %v477
    %v480 = vtanh.pop %v479
    %v481 = vld [vmem:[#allocation6 + $0x2] sm:$0x3]
    %482 = vmatpush.msra.mxu0 0.0
    %483 = vmatpush.msra.mxu0 0.0
    %484 = vmatpush.msra.mxu0 0.0
    %485 = vmatpush.msra.mxu0 0.0
    %486 = vmatpush.msra.mxu0 0.0
    %487 = vmatpush.msra.mxu0 0.0
    %488 = vmatpush.msra.mxu0 0.0
    %489 = vmatpush.msra.mxu0 0.0
    %490 = vmatpush.msra.mxu0 0.0
    %491 = vmatpush.msra.mxu0 0.0
    %492 = vmatpush.msra.mxu0 0.0
    %493 = vmatpush.msra.mxu0 0.0
    %494 = vmatpush.msra.mxu0 %v290
    %495 = vmatpush.msra.mxu0 %v289
    %496 = vmatpush.msra.mxu0 %v288
    %497 = vmatpush.msra.mxu0 %v287
    %498 = vmatmul.f32.gmra.mxu0 %v405
    %v499 = vpop.f32.mrf.mxu0
    %v500 = vadd.f32 0.0, %v499
    %501 = vdwg.mxu0
    %v502 = vadd.f32 %v481, %v500
    %v503 = vmul.f32 %v502, 0.5
    %v504 = vtanh.pop %v503
    %v505 = vmul.f32 %v504, 0.5
    %v506 = vadd.f32 %v505, 0.5
    %v507 = vmul.f32 %v457, %v398
    %v508 = vmul.f32 %v431, %v480
    %v509 = vadd.f32 %v507, %v508
    %v510 = vtanh.pop %v509
    %v511 = vmul.f32 %v506, %v510
    %512 = vst.msk [vmem:[#allocation2 + $0x2] sm:$0x3] %vm401, %v511
    %v513 = vld [vmem:[#allocation3 + $0x4] sm:$0x3]
    %v515 = vsel %vm170, %v511, 0
    %517 = vmatpush.msra.mxu0 0.0
    %518 = vmatpush.msra.mxu0 0.0
    %519 = vmatpush.msra.mxu0 0.0
    %520 = vmatpush.msra.mxu0 0.0
    %521 = vmatpush.msra.mxu0 0.0
    %522 = vmatpush.msra.mxu0 0.0
    %523 = vmatpush.msra.mxu0 0.0
    %524 = vmatpush.msra.mxu0 0.0
    %525 = vmatpush.msra.mxu0 0.0
    %526 = vmatpush.msra.mxu0 0.0
    %527 = vmatpush.msra.mxu0 0.0
    %528 = vmatpush.msra.mxu0 0.0
    %529 = vmatpush.msra.mxu0 %v275
    %530 = vmatpush.msra.mxu0 %v274
    %531 = vmatpush.msra.mxu0 %v273
    %532 = vmatpush.msra.mxu0 %v272
    %533 = vmatmul.f32.gmra.mxu0 %v515
    %v534 = vpop.f32.mrf.mxu0
    %v535 = vadd.f32 0.0, %v534
    %536 = vdwg.mxu0
    %v537 = vadd.f32 %v513, %v535
    %v538 = vmul.f32 %v537, 0.5
    %v539 = vtanh.pop %v538
    %v540 = vmul.f32 %v539, 0.5
    %v541 = vadd.f32 %v540, 0.5
    %v542 = vld [vmem:[#allocation4 + $0x4] sm:$0x3]
    %543 = vmatpush.msra.mxu0 0.0
    %544 = vmatpush.msra.mxu0 0.0
    %545 = vmatpush.msra.mxu0 0.0
    %546 = vmatpush.msra.mxu0 0.0
    %547 = vmatpush.msra.mxu0 0.0
    %548 = vmatpush.msra.mxu0 0.0
    %549 = vmatpush.msra.mxu0 0.0
    %550 = vmatpush.msra.mxu0 0.0
    %551 = vmatpush.msra.mxu0 0.0
    %552 = vmatpush.msra.mxu0 0.0
    %553 = vmatpush.msra.mxu0 0.0
    %554 = vmatpush.msra.mxu0 0.0
    %555 = vmatpush.msra.mxu0 %v280
    %556 = vmatpush.msra.mxu0 %v279
    %557 = vmatpush.msra.mxu0 %v278
    %558 = vmatpush.msra.mxu0 %v277
    %559 = vmatmul.f32.gmra.mxu0 %v515
    %v560 = vpop.f32.mrf.mxu0
    %v561 = vadd.f32 0.0, %v560
    %562 = vdwg.mxu0
    %v563 = vadd.f32 %v542, %v561
    %v564 = vmul.f32 %v563, 0.5
    %v565 = vtanh.pop %v564
    %v566 = vmul.f32 %v565, 0.5
    %v567 = vadd.f32 %v566, 0.5
    %v568 = vld [vmem:[#allocation5 + $0x4] sm:$0x3]
    %569 = vmatpush.msra.mxu0 0.0
    %570 = vmatpush.msra.mxu0 0.0
    %571 = vmatpush.msra.mxu0 0.0
    %572 = vmatpush.msra.mxu0 0.0
    %573 = vmatpush.msra.mxu0 0.0
    %574 = vmatpush.msra.mxu0 0.0
    %575 = vmatpush.msra.mxu0 0.0
    %576 = vmatpush.msra.mxu0 0.0
    %577 = vmatpush.msra.mxu0 0.0
    %578 = vmatpush.msra.mxu0 0.0
    %579 = vmatpush.msra.mxu0 0.0
    %580 = vmatpush.msra.mxu0 0.0
    %581 = vmatpush.msra.mxu0 %v285
    %582 = vmatpush.msra.mxu0 %v284
    %583 = vmatpush.msra.mxu0 %v283
    %584 = vmatpush.msra.mxu0 %v282
    %585 = vmatmul.f32.gmra.mxu0 %v515
    %v586 = vpop.f32.mrf.mxu0
    %v587 = vadd.f32 0.0, %v586
    %588 = vdwg.mxu0
    %v589 = vadd.f32 %v568, %v587
    %v590 = vtanh.pop %v589
    %v591 = vld [vmem:[#allocation6 + $0x4] sm:$0x3]
    %592 = vmatpush.msra.mxu0 0.0
    %593 = vmatpush.msra.mxu0 0.0
    %594 = vmatpush.msra.mxu0 0.0
    %595 = vmatpush.msra.mxu0 0.0
    %596 = vmatpush.msra.mxu0 0.0
    %597 = vmatpush.msra.mxu0 0.0
    %598 = vmatpush.msra.mxu0 0.0
    %599 = vmatpush.msra.mxu0 0.0
    %600 = vmatpush.msra.mxu0 0.0
    %601 = vmatpush.msra.mxu0 0.0
    %602 = vmatpush.msra.mxu0 0.0
    %603 = vmatpush.msra.mxu0 0.0
    %604 = vmatpush.msra.mxu0 %v290
    %605 = vmatpush.msra.mxu0 %v289
    %606 = vmatpush.msra.mxu0 %v288
    %607 = vmatpush.msra.mxu0 %v287
    %608 = vmatmul.f32.gmra.mxu0 %v515
    %v609 = vpop.f32.mrf.mxu0
    %v610 = vadd.f32 0.0, %v609
    %611 = vdwg.mxu0
    %v612 = vadd.f32 %v591, %v610
    %v613 = vmul.f32 %v612, 0.5
    %v614 = vtanh.pop %v613
    %v615 = vmul.f32 %v614, 0.5
    %v616 = vadd.f32 %v615, 0.5
    %v617 = vmul.f32 %v567, %v509
    %v618 = vmul.f32 %v541, %v590
    %v619 = vadd.f32 %v617, %v618
    %v620 = vtanh.pop %v619
    %v621 = vmul.f32 %v616, %v620
    %622 = vst.msk [vmem:[#allocation2 + $0x4] sm:$0x3] %vm401, %v621
    %v623 = vld [vmem:[#allocation3 + $0x6] sm:$0x3]
    %v625 = vsel %vm170, %v621, 0
    %627 = vmatpush.msra.mxu0 0.0
    %628 = vmatpush.msra.mxu0 0.0
    %629 = vmatpush.msra.mxu0 0.0
    %630 = vmatpush.msra.mxu0 0.0
    %631 = vmatpush.msra.mxu0 0.0
    %632 = vmatpush.msra.mxu0 0.0
    %633 = vmatpush.msra.mxu0 0.0
    %634 = vmatpush.msra.mxu0 0.0
    %635 = vmatpush.msra.mxu0 0.0
    %636 = vmatpush.msra.mxu0 0.0
    %637 = vmatpush.msra.mxu0 0.0
    %638 = vmatpush.msra.mxu0 0.0
    %639 = vmatpush.msra.mxu0 %v275
    %640 = vmatpush.msra.mxu0 %v274
    %641 = vmatpush.msra.mxu0 %v273
    %642 = vmatpush.msra.mxu0 %v272
    %643 = vmatmul.f32.gmra.mxu0 %v625
    %v644 = vpop.f32.mrf.mxu0
    %v645 = vadd.f32 0.0, %v644
    %646 = vdwg.mxu0
    %v647 = vadd.f32 %v623, %v645
    %v648 = vmul.f32 %v647, 0.5
    %v649 = vtanh.pop %v648
    %v650 = vmul.f32 %v649, 0.5
    %v651 = vadd.f32 %v650, 0.5
    %v652 = vld [vmem:[#allocation4 + $0x6] sm:$0x3]
    %653 = vmatpush.msra.mxu0 0.0
    %654 = vmatpush.msra.mxu0 0.0
    %655 = vmatpush.msra.mxu0 0.0
    %656 = vmatpush.msra.mxu0 0.0
    %657 = vmatpush.msra.mxu0 0.0
    %658 = vmatpush.msra.mxu0 0.0
    %659 = vmatpush.msra.mxu0 0.0
    %660 = vmatpush.msra.mxu0 0.0
    %661 = vmatpush.msra.mxu0 0.0
    %662 = vmatpush.msra.mxu0 0.0
    %663 = vmatpush.msra.mxu0 0.0
    %664 = vmatpush.msra.mxu0 0.0
    %665 = vmatpush.msra.mxu0 %v280
    %666 = vmatpush.msra.mxu0 %v279
    %667 = vmatpush.msra.mxu0 %v278
    %668 = vmatpush.msra.mxu0 %v277
    %669 = vmatmul.f32.gmra.mxu0 %v625
    %v670 = vpop.f32.mrf.mxu0
    %v671 = vadd.f32 0.0, %v670
    %672 = vdwg.mxu0
    %v673 = vadd.f32 %v652, %v671
    %v674 = vmul.f32 %v673, 0.5
    %v675 = vtanh.pop %v674
    %v676 = vmul.f32 %v675, 0.5
    %v677 = vadd.f32 %v676, 0.5
    %v678 = vld [vmem:[#allocation5 + $0x6] sm:$0x3]
    %679 = vmatpush.msra.mxu0 0.0
    %680 = vmatpush.msra.mxu0 0.0
    %681 = vmatpush.msra.mxu0 0.0
    %682 = vmatpush.msra.mxu0 0.0
    %683 = vmatpush.msra.mxu0 0.0
    %684 = vmatpush.msra.mxu0 0.0
    %685 = vmatpush.msra.mxu0 0.0
    %686 = vmatpush.msra.mxu0 0.0
    %687 = vmatpush.msra.mxu0 0.0
    %688 = vmatpush.msra.mxu0 0.0
    %689 = vmatpush.msra.mxu0 0.0
    %690 = vmatpush.msra.mxu0 0.0
    %691 = vmatpush.msra.mxu0 %v285
    %692 = vmatpush.msra.mxu0 %v284
    %693 = vmatpush.msra.mxu0 %v283
    %694 = vmatpush.msra.mxu0 %v282
    %695 = vmatmul.f32.gmra.mxu0 %v625
    %v696 = vpop.f32.mrf.mxu0
    %v697 = vadd.f32 0.0, %v696
    %698 = vdwg.mxu0
    %v699 = vadd.f32 %v678, %v697
    %v700 = vtanh.pop %v699
    %v701 = vld [vmem:[#allocation6 + $0x6] sm:$0x3]
    %702 = vmatpush.msra.mxu0 0.0
    %703 = vmatpush.msra.mxu0 0.0
    %704 = vmatpush.msra.mxu0 0.0
    %705 = vmatpush.msra.mxu0 0.0
    %706 = vmatpush.msra.mxu0 0.0
    %707 = vmatpush.msra.mxu0 0.0
    %708 = vmatpush.msra.mxu0 0.0
    %709 = vmatpush.msra.mxu0 0.0
    %710 = vmatpush.msra.mxu0 0.0
    %711 = vmatpush.msra.mxu0 0.0
    %712 = vmatpush.msra.mxu0 0.0
    %713 = vmatpush.msra.mxu0 0.0
    %714 = vmatpush.msra.mxu0 %v290
    %715 = vmatpush.msra.mxu0 %v289
    %716 = vmatpush.msra.mxu0 %v288
    %717 = vmatpush.msra.mxu0 %v287
    %718 = vmatmul.f32.gmra.mxu0 %v625
    %v719 = vpop.f32.mrf.mxu0
    %v720 = vadd.f32 0.0, %v719
    %721 = vdwg.mxu0
    %v722 = vadd.f32 %v701, %v720
    %v723 = vmul.f32 %v722, 0.5
    %v724 = vtanh.pop %v723
    %v725 = vmul.f32 %v724, 0.5
    %v726 = vadd.f32 %v725, 0.5
    %v727 = vmul.f32 %v677, %v619
    %v728 = vmul.f32 %v651, %v700
    %v729 = vadd.f32 %v727, %v728
    %v730 = vtanh.pop %v729
    %v731 = vmul.f32 %v726, %v730
    %732 = vst.msk [vmem:[#allocation2 + $0x6] sm:$0x3] %vm401, %v731
    %v733 = vld [vmem:[#allocation3 + $0x8] sm:$0x3]
    %v735 = vsel %vm170, %v731, 0
    %737 = vmatpush.msra.mxu0 0.0
    %738 = vmatpush.msra.mxu0 0.0
    %739 = vmatpush.msra.mxu0 0.0
    %740 = vmatpush.msra.mxu0 0.0
    %741 = vmatpush.msra.mxu0 0.0
    %742 = vmatpush.msra.mxu0 0.0
    %743 = vmatpush.msra.mxu0 0.0
    %744 = vmatpush.msra.mxu0 0.0
    %745 = vmatpush.msra.mxu0 0.0
    %746 = vmatpush.msra.mxu0 0.0
    %747 = vmatpush.msra.mxu0 0.0
    %748 = vmatpush.msra.mxu0 0.0
    %749 = vmatpush.msra.mxu0 %v275
    %750 = vmatpush.msra.mxu0 %v274
    %751 = vmatpush.msra.mxu0 %v273
    %752 = vmatpush.msra.mxu0 %v272
    %753 = vmatmul.f32.gmra.mxu0 %v735
    %v754 = vpop.f32.mrf.mxu0
    %v755 = vadd.f32 0.0, %v754
    %756 = vdwg.mxu0
    %v757 = vadd.f32 %v733, %v755
    %v758 = vmul.f32 %v757, 0.5
    %v759 = vtanh.pop %v758
    %v760 = vmul.f32 %v759, 0.5
    %v761 = vadd.f32 %v760, 0.5
    %v762 = vld [vmem:[#allocation4 + $0x8] sm:$0x3]
    %763 = vmatpush.msra.mxu0 0.0
    %764 = vmatpush.msra.mxu0 0.0
    %765 = vmatpush.msra.mxu0 0.0
    %766 = vmatpush.msra.mxu0 0.0
    %767 = vmatpush.msra.mxu0 0.0
    %768 = vmatpush.msra.mxu0 0.0
    %769 = vmatpush.msra.mxu0 0.0
    %770 = vmatpush.msra.mxu0 0.0
    %771 = vmatpush.msra.mxu0 0.0
    %772 = vmatpush.msra.mxu0 0.0
    %773 = vmatpush.msra.mxu0 0.0
    %774 = vmatpush.msra.mxu0 0.0
    %775 = vmatpush.msra.mxu0 %v280
    %776 = vmatpush.msra.mxu0 %v279
    %777 = vmatpush.msra.mxu0 %v278
    %778 = vmatpush.msra.mxu0 %v277
    %779 = vmatmul.f32.gmra.mxu0 %v735
    %v780 = vpop.f32.mrf.mxu0
    %v781 = vadd.f32 0.0, %v780
    %782 = vdwg.mxu0
    %v783 = vadd.f32 %v762, %v781
    %v784 = vmul.f32 %v783, 0.5
    %v785 = vtanh.pop %v784
    %v786 = vmul.f32 %v785, 0.5
    %v787 = vadd.f32 %v786, 0.5
    %v788 = vld [vmem:[#allocation5 + $0x8] sm:$0x3]
    %789 = vmatpush.msra.mxu0 0.0
    %790 = vmatpush.msra.mxu0 0.0
    %791 = vmatpush.msra.mxu0 0.0
    %792 = vmatpush.msra.mxu0 0.0
    %793 = vmatpush.msra.mxu0 0.0
    %794 = vmatpush.msra.mxu0 0.0
    %795 = vmatpush.msra.mxu0 0.0
    %796 = vmatpush.msra.mxu0 0.0
    %797 = vmatpush.msra.mxu0 0.0
    %798 = vmatpush.msra.mxu0 0.0
    %799 = vmatpush.msra.mxu0 0.0
    %800 = vmatpush.msra.mxu0 0.0
    %801 = vmatpush.msra.mxu0 %v285
    %802 = vmatpush.msra.mxu0 %v284
    %803 = vmatpush.msra.mxu0 %v283
    %804 = vmatpush.msra.mxu0 %v282
    %805 = vmatmul.f32.gmra.mxu0 %v735
    %v806 = vpop.f32.mrf.mxu0
    %v807 = vadd.f32 0.0, %v806
    %808 = vdwg.mxu0
    %v809 = vadd.f32 %v788, %v807
    %v810 = vtanh.pop %v809
    %v811 = vld [vmem:[#allocation6 + $0x8] sm:$0x3]
    %812 = vmatpush.msra.mxu0 0.0
    %813 = vmatpush.msra.mxu0 0.0
    %814 = vmatpush.msra.mxu0 0.0
    %815 = vmatpush.msra.mxu0 0.0
    %816 = vmatpush.msra.mxu0 0.0
    %817 = vmatpush.msra.mxu0 0.0
    %818 = vmatpush.msra.mxu0 0.0
    %819 = vmatpush.msra.mxu0 0.0
    %820 = vmatpush.msra.mxu0 0.0
    %821 = vmatpush.msra.mxu0 0.0
    %822 = vmatpush.msra.mxu0 0.0
    %823 = vmatpush.msra.mxu0 0.0
    %824 = vmatpush.msra.mxu0 %v290
    %825 = vmatpush.msra.mxu0 %v289
    %826 = vmatpush.msra.mxu0 %v288
    %827 = vmatpush.msra.mxu0 %v287
    %828 = vmatmul.f32.gmra.mxu0 %v735
    %v829 = vpop.f32.mrf.mxu0
    %v830 = vadd.f32 0.0, %v829
    %831 = vdwg.mxu0
    %v832 = vadd.f32 %v811, %v830
    %v833 = vmul.f32 %v832, 0.5
    %v834 = vtanh.pop %v833
    %v835 = vmul.f32 %v834, 0.5
    %v836 = vadd.f32 %v835, 0.5
    %v837 = vmul.f32 %v787, %v729
    %v838 = vmul.f32 %v761, %v810
    %v839 = vadd.f32 %v837, %v838
    %v840 = vtanh.pop %v839
    %v841 = vmul.f32 %v836, %v840
    %842 = vst.msk [vmem:[#allocation2 + $0x8] sm:$0x3] %vm401, %v841
    %v843 = vld [vmem:[#allocation3 + $0xa] sm:$0x3]
    %v845 = vsel %vm170, %v841, 0
    %847 = vmatpush.msra.mxu0 0.0
    %848 = vmatpush.msra.mxu0 0.0
    %849 = vmatpush.msra.mxu0 0.0
    %850 = vmatpush.msra.mxu0 0.0
    %851 = vmatpush.msra.mxu0 0.0
    %852 = vmatpush.msra.mxu0 0.0
    %853 = vmatpush.msra.mxu0 0.0
    %854 = vmatpush.msra.mxu0 0.0
    %855 = vmatpush.msra.mxu0 0.0
    %856 = vmatpush.msra.mxu0 0.0
    %857 = vmatpush.msra.mxu0 0.0
    %858 = vmatpush.msra.mxu0 0.0
    %859 = vmatpush.msra.mxu0 %v275
    %860 = vmatpush.msra.mxu0 %v274
    %861 = vmatpush.msra.mxu0 %v273
    %862 = vmatpush.msra.mxu0 %v272
    %863 = vmatmul.f32.gmra.mxu0 %v845
    %v864 = vpop.f32.mrf.mxu0
    %v865 = vadd.f32 0.0, %v864
    %866 = vdwg.mxu0
    %v867 = vadd.f32 %v843, %v865
    %v868 = vmul.f32 %v867, 0.5
    %v869 = vtanh.pop %v868
    %v870 = vmul.f32 %v869, 0.5
    %v871 = vadd.f32 %v870, 0.5
    %v872 = vld [vmem:[#allocation4 + $0xa] sm:$0x3]
    %873 = vmatpush.msra.mxu0 0.0
    %874 = vmatpush.msra.mxu0 0.0
    %875 = vmatpush.msra.mxu0 0.0
    %876 = vmatpush.msra.mxu0 0.0
    %877 = vmatpush.msra.mxu0 0.0
    %878 = vmatpush.msra.mxu0 0.0
    %879 = vmatpush.msra.mxu0 0.0
    %880 = vmatpush.msra.mxu0 0.0
    %881 = vmatpush.msra.mxu0 0.0
    %882 = vmatpush.msra.mxu0 0.0
    %883 = vmatpush.msra.mxu0 0.0
    %884 = vmatpush.msra.mxu0 0.0
    %885 = vmatpush.msra.mxu0 %v280
    %886 = vmatpush.msra.mxu0 %v279
    %887 = vmatpush.msra.mxu0 %v278
    %888 = vmatpush.msra.mxu0 %v277
    %889 = vmatmul.f32.gmra.mxu0 %v845
    %v890 = vpop.f32.mrf.mxu0
    %v891 = vadd.f32 0.0, %v890
    %892 = vdwg.mxu0
    %v893 = vadd.f32 %v872, %v891
    %v894 = vmul.f32 %v893, 0.5
    %v895 = vtanh.pop %v894
    %v896 = vmul.f32 %v895, 0.5
    %v897 = vadd.f32 %v896, 0.5
    %v898 = vld [vmem:[#allocation5 + $0xa] sm:$0x3]
    %899 = vmatpush.msra.mxu0 0.0
    %900 = vmatpush.msra.mxu0 0.0
    %901 = vmatpush.msra.mxu0 0.0
    %902 = vmatpush.msra.mxu0 0.0
    %903 = vmatpush.msra.mxu0 0.0
    %904 = vmatpush.msra.mxu0 0.0
    %905 = vmatpush.msra.mxu0 0.0
    %906 = vmatpush.msra.mxu0 0.0
    %907 = vmatpush.msra.mxu0 0.0
    %908 = vmatpush.msra.mxu0 0.0
    %909 = vmatpush.msra.mxu0 0.0
    %910 = vmatpush.msra.mxu0 0.0
    %911 = vmatpush.msra.mxu0 %v285
    %912 = vmatpush.msra.mxu0 %v284
    %913 = vmatpush.msra.mxu0 %v283
    %914 = vmatpush.msra.mxu0 %v282
    %915 = vmatmul.f32.gmra.mxu0 %v845
    %v916 = vpop.f32.mrf.mxu0
    %v917 = vadd.f32 0.0, %v916
    %918 = vdwg.mxu0
    %v919 = vadd.f32 %v898, %v917
    %v920 = vtanh.pop %v919
    %v921 = vld [vmem:[#allocation6 + $0xa] sm:$0x3]
    %922 = vmatpush.msra.mxu0 0.0
    %923 = vmatpush.msra.mxu0 0.0
    %924 = vmatpush.msra.mxu0 0.0
    %925 = vmatpush.msra.mxu0 0.0
    %926 = vmatpush.msra.mxu0 0.0
    %927 = vmatpush.msra.mxu0 0.0
    %928 = vmatpush.msra.mxu0 0.0
    %929 = vmatpush.msra.mxu0 0.0
    %930 = vmatpush.msra.mxu0 0.0
    %931 = vmatpush.msra.mxu0 0.0
    %932 = vmatpush.msra.mxu0 0.0
    %933 = vmatpush.msra.mxu0 0.0
    %934 = vmatpush.msra.mxu0 %v290
    %935 = vmatpush.msra.mxu0 %v289
    %936 = vmatpush.msra.mxu0 %v288
    %937 = vmatpush.msra.mxu0 %v287
    %938 = vmatmul.f32.gmra.mxu0 %v845
    %v939 = vpop.f32.mrf.mxu0
    %v940 = vadd.f32 0.0, %v939
    %941 = vdwg.mxu0
    %v942 = vadd.f32 %v921, %v940
    %v943 = vmul.f32 %v942, 0.5
    %v944 = vtanh.pop %v943
    %v945 = vmul.f32 %v944, 0.5
    %v946 = vadd.f32 %v945, 0.5
    %v947 = vmul.f32 %v897, %v839
    %v948 = vmul.f32 %v871, %v920
    %v949 = vadd.f32 %v947, %v948
    %v950 = vtanh.pop %v949
    %v951 = vmul.f32 %v946, %v950
    %952 = vst.msk [vmem:[#allocation2 + $0xa] sm:$0x3] %vm401, %v951
    %v953 = vld [vmem:[#allocation3 + $0xc] sm:$0x3]
    %v955 = vsel %vm170, %v951, 0
    %957 = vmatpush.msra.mxu0 0.0
    %958 = vmatpush.msra.mxu0 0.0
    %959 = vmatpush.msra.mxu0 0.0
    %960 = vmatpush.msra.mxu0 0.0
    %961 = vmatpush.msra.mxu0 0.0
    %962 = vmatpush.msra.mxu0 0.0
    %963 = vmatpush.msra.mxu0 0.0
    %964 = vmatpush.msra.mxu0 0.0
    %965 = vmatpush.msra.mxu0 0.0
    %966 = vmatpush.msra.mxu0 0.0
    %967 = vmatpush.msra.mxu0 0.0
    %968 = vmatpush.msra.mxu0 0.0
    %969 = vmatpush.msra.mxu0 %v275
    %970 = vmatpush.msra.mxu0 %v274
    %971 = vmatpush.msra.mxu0 %v273
    %972 = vmatpush.msra.mxu0 %v272
    %973 = vmatmul.f32.gmra.mxu0 %v955
    %v974 = vpop.f32.mrf.mxu0
    %v975 = vadd.f32 0.0, %v974
    %976 = vdwg.mxu0
    %v977 = vadd.f32 %v953, %v975
    %v978 = vmul.f32 %v977, 0.5
    %v979 = vtanh.pop %v978
    %v980 = vmul.f32 %v979, 0.5
    %v981 = vadd.f32 %v980, 0.5
    %v982 = vld [vmem:[#allocation4 + $0xc] sm:$0x3]
    %983 = vmatpush.msra.mxu0 0.0
    %984 = vmatpush.msra.mxu0 0.0
    %985 = vmatpush.msra.mxu0 0.0
    %986 = vmatpush.msra.mxu0 0.0
    %987 = vmatpush.msra.mxu0 0.0
    %988 = vmatpush.msra.mxu0 0.0
    %989 = vmatpush.msra.mxu0 0.0
    %990 = vmatpush.msra.mxu0 0.0
    %991 = vmatpush.msra.mxu0 0.0
    %992 = vmatpush.msra.mxu0 0.0
    %993 = vmatpush.msra.mxu0 0.0
    %994 = vmatpush.msra.mxu0 0.0
    %995 = vmatpush.msra.mxu0 %v280
    %996 = vmatpush.msra.mxu0 %v279
    %997 = vmatpush.msra.mxu0 %v278
    %998 = vmatpush.msra.mxu0 %v277
    %999 = vmatmul.f32.gmra.mxu0 %v955
    %v1000 = vpop.f32.mrf.mxu0
    %v1001 = vadd.f32 0.0, %v1000
    %1002 = vdwg.mxu0
    %v1003 = vadd.f32 %v982, %v1001
    %v1004 = vmul.f32 %v1003, 0.5
    %v1005 = vtanh.pop %v1004
    %v1006 = vmul.f32 %v1005, 0.5
    %v1007 = vadd.f32 %v1006, 0.5
    %v1008 = vld [vmem:[#allocation5 + $0xc] sm:$0x3]
    %1009 = vmatpush.msra.mxu0 0.0
    %1010 = vmatpush.msra.mxu0 0.0
    %1011 = vmatpush.msra.mxu0 0.0
    %1012 = vmatpush.msra.mxu0 0.0
    %1013 = vmatpush.msra.mxu0 0.0
    %1014 = vmatpush.msra.mxu0 0.0
    %1015 = vmatpush.msra.mxu0 0.0
    %1016 = vmatpush.msra.mxu0 0.0
    %1017 = vmatpush.msra.mxu0 0.0
    %1018 = vmatpush.msra.mxu0 0.0
    %1019 = vmatpush.msra.mxu0 0.0
    %1020 = vmatpush.msra.mxu0 0.0
    %1021 = vmatpush.msra.mxu0 %v285
    %1022 = vmatpush.msra.mxu0 %v284
    %1023 = vmatpush.msra.mxu0 %v283
    %1024 = vmatpush.msra.mxu0 %v282
    %1025 = vmatmul.f32.gmra.mxu0 %v955
    %v1026 = vpop.f32.mrf.mxu0
    %v1027 = vadd.f32 0.0, %v1026
    %1028 = vdwg.mxu0
    %v1029 = vadd.f32 %v1008, %v1027
    %v1030 = vtanh.pop %v1029
    %v1031 = vld [vmem:[#allocation6 + $0xc] sm:$0x3]
    %1032 = vmatpush.msra.mxu0 0.0
    %1033 = vmatpush.msra.mxu0 0.0
    %1034 = vmatpush.msra.mxu0 0.0
    %1035 = vmatpush.msra.mxu0 0.0
    %1036 = vmatpush.msra.mxu0 0.0
    %1037 = vmatpush.msra.mxu0 0.0
    %1038 = vmatpush.msra.mxu0 0.0
    %1039 = vmatpush.msra.mxu0 0.0
    %1040 = vmatpush.msra.mxu0 0.0
    %1041 = vmatpush.msra.mxu0 0.0
    %1042 = vmatpush.msra.mxu0 0.0
    %1043 = vmatpush.msra.mxu0 0.0
    %1044 = vmatpush.msra.mxu0 %v290
    %1045 = vmatpush.msra.mxu0 %v289
    %1046 = vmatpush.msra.mxu0 %v288
    %1047 = vmatpush.msra.mxu0 %v287
    %1048 = vmatmul.f32.gmra.mxu0 %v955
    %v1049 = vpop.f32.mrf.mxu0
    %v1050 = vadd.f32 0.0, %v1049
    %1051 = vdwg.mxu0
    %v1052 = vadd.f32 %v1031, %v1050
    %v1053 = vmul.f32 %v1052, 0.5
    %v1054 = vtanh.pop %v1053
    %v1055 = vmul.f32 %v1054, 0.5
    %v1056 = vadd.f32 %v1055, 0.5
    %v1057 = vmul.f32 %v1007, %v949
    %v1058 = vmul.f32 %v981, %v1030
    %v1059 = vadd.f32 %v1057, %v1058
    %v1060 = vtanh.pop %v1059
    %v1061 = vmul.f32 %v1056, %v1060
    %1062 = vst.msk [vmem:[#allocation2 + $0xc] sm:$0x3] %vm401, %v1061
    %v1063 = vld [vmem:[#allocation3 + $0xe] sm:$0x3]
    %v1065 = vsel %vm170, %v1061, 0
    %1067 = vmatpush.msra.mxu0 0.0
    %1068 = vmatpush.msra.mxu0 0.0
    %1069 = vmatpush.msra.mxu0 0.0
    %1070 = vmatpush.msra.mxu0 0.0
    %1071 = vmatpush.msra.mxu0 0.0
    %1072 = vmatpush.msra.mxu0 0.0
    %1073 = vmatpush.msra.mxu0 0.0
    %1074 = vmatpush.msra.mxu0 0.0
    %1075 = vmatpush.msra.mxu0 0.0
    %1076 = vmatpush.msra.mxu0 0.0
    %1077 = vmatpush.msra.mxu0 0.0
    %1078 = vmatpush.msra.mxu0 0.0
    %1079 = vmatpush.msra.mxu0 %v275
    %1080 = vmatpush.msra.mxu0 %v274
    %1081 = vmatpush.msra.mxu0 %v273
    %1082 = vmatpush.msra.mxu0 %v272
    %1083 = vmatmul.f32.gmra.mxu0 %v1065
    %v1084 = vpop.f32.mrf.mxu0
    %v1085 = vadd.f32 0.0, %v1084
    %1086 = vdwg.mxu0
    %v1087 = vadd.f32 %v1063, %v1085
    %v1088 = vmul.f32 %v1087, 0.5
    %v1089 = vtanh.pop %v1088
    %v1090 = vmul.f32 %v1089, 0.5
    %v1091 = vadd.f32 %v1090, 0.5
    %v1092 = vld [vmem:[#allocation4 + $0xe] sm:$0x3]
    %1093 = vmatpush.msra.mxu0 0.0
    %1094 = vmatpush.msra.mxu0 0.0
    %1095 = vmatpush.msra.mxu0 0.0
    %1096 = vmatpush.msra.mxu0 0.0
    %1097 = vmatpush.msra.mxu0 0.0
    %1098 = vmatpush.msra.mxu0 0.0
    %1099 = vmatpush.msra.mxu0 0.0
    %1100 = vmatpush.msra.mxu0 0.0
    %1101 = vmatpush.msra.mxu0 0.0
    %1102 = vmatpush.msra.mxu0 0.0
    %1103 = vmatpush.msra.mxu0 0.0
    %1104 = vmatpush.msra.mxu0 0.0
    %1105 = vmatpush.msra.mxu0 %v280
    %1106 = vmatpush.msra.mxu0 %v279
    %1107 = vmatpush.msra.mxu0 %v278
    %1108 = vmatpush.msra.mxu0 %v277
    %1109 = vmatmul.f32.gmra.mxu0 %v1065
    %v1110 = vpop.f32.mrf.mxu0
    %v1111 = vadd.f32 0.0, %v1110
    %1112 = vdwg.mxu0
    %v1113 = vadd.f32 %v1092, %v1111
    %v1114 = vmul.f32 %v1113, 0.5
    %v1115 = vtanh.pop %v1114
    %v1116 = vmul.f32 %v1115, 0.5
    %v1117 = vadd.f32 %v1116, 0.5
    %v1118 = vld [vmem:[#allocation5 + $0xe] sm:$0x3]
    %1119 = vmatpush.msra.mxu0 0.0
    %1120 = vmatpush.msra.mxu0 0.0
    %1121 = vmatpush.msra.mxu0 0.0
    %1122 = vmatpush.msra.mxu0 0.0
    %1123 = vmatpush.msra.mxu0 0.0
    %1124 = vmatpush.msra.mxu0 0.0
    %1125 = vmatpush.msra.mxu0 0.0
    %1126 = vmatpush.msra.mxu0 0.0
    %1127 = vmatpush.msra.mxu0 0.0
    %1128 = vmatpush.msra.mxu0 0.0
    %1129 = vmatpush.msra.mxu0 0.0
    %1130 = vmatpush.msra.mxu0 0.0
    %1131 = vmatpush.msra.mxu0 %v285
    %1132 = vmatpush.msra.mxu0 %v284
    %1133 = vmatpush.msra.mxu0 %v283
    %1134 = vmatpush.msra.mxu0 %v282
    %1135 = vmatmul.f32.gmra.mxu0 %v1065
    %v1136 = vpop.f32.mrf.mxu0
    %v1137 = vadd.f32 0.0, %v1136
    %1138 = vdwg.mxu0
    %v1139 = vadd.f32 %v1118, %v1137
    %v1140 = vtanh.pop %v1139
    %v1141 = vld [vmem:[#allocation6 + $0xe] sm:$0x3]
    %1142 = vmatpush.msra.mxu0 0.0
    %1143 = vmatpush.msra.mxu0 0.0
    %1144 = vmatpush.msra.mxu0 0.0
    %1145 = vmatpush.msra.mxu0 0.0
    %1146 = vmatpush.msra.mxu0 0.0
    %1147 = vmatpush.msra.mxu0 0.0
    %1148 = vmatpush.msra.mxu0 0.0
    %1149 = vmatpush.msra.mxu0 0.0
    %1150 = vmatpush.msra.mxu0 0.0
    %1151 = vmatpush.msra.mxu0 0.0
    %1152 = vmatpush.msra.mxu0 0.0
    %1153 = vmatpush.msra.mxu0 0.0
    %1154 = vmatpush.msra.mxu0 %v290
    %1155 = vmatpush.msra.mxu0 %v289
    %1156 = vmatpush.msra.mxu0 %v288
    %1157 = vmatpush.msra.mxu0 %v287
    %1158 = vmatmul.f32.gmra.mxu0 %v1065
    %v1159 = vpop.f32.mrf.mxu0
    %v1160 = vadd.f32 0.0, %v1159
    %1161 = vdwg.mxu0
    %v1162 = vadd.f32 %v1141, %v1160
    %v1163 = vmul.f32 %v1162, 0.5
    %v1164 = vtanh.pop %v1163
    %v1165 = vmul.f32 %v1164, 0.5
    %v1166 = vadd.f32 %v1165, 0.5
    %v1167 = vmul.f32 %v1117, %v1059
    %v1168 = vmul.f32 %v1091, %v1140
    %v1169 = vadd.f32 %v1167, %v1168
    %v1170 = vtanh.pop %v1169
    %v1171 = vmul.f32 %v1166, %v1170
    %1172 = vst.msk [vmem:[#allocation2 + $0xe] sm:$0x3] %vm401, %v1171
    %1173 = vst.msk [vmem:[#allocation18] sm:$0x3] %vm401, %v1171
    %1174 = vst.msk [vmem:[#allocation19] sm:$0x3] %vm401, %v1169
    %v1175 = vld [vmem:[#allocation2] sm:$0xff]
    %v1176 = vld [vmem:[#allocation2 + $0x8] sm:$0xff]
    %v1177 = vld [vmem:[#allocation12] sm:$0xff]
    %v1178 = vld [vmem:[#allocation12 + $0x8] sm:$0xff]
    %v1179 = vld [vmem:[#allocation12 + $0x10] sm:$0xff]
    %v1180 = vld [vmem:[#allocation12 + $0x18] sm:$0xff]
    %v1181 = vld [vmem:[#allocation15] sm:$0x1]
    %v1183 = vperm.slane %v1181, 0
    %v1186 = vsel %vm170, %v1175, 0
    %v1189 = vsel %vm170, %v1176, 0
    %1191 = vmatpush.msra.mxu0 0.0
    %1192 = vmatpush.msra.mxu0 0.0
    %1193 = vmatpush.msra.mxu0 0.0
    %1194 = vmatpush.msra.mxu0 0.0
    %1195 = vmatpush.msra.mxu0 0.0
    %1196 = vmatpush.msra.mxu0 0.0
    %1197 = vmatpush.msra.mxu0 0.0
    %1198 = vmatpush.msra.mxu0 0.0
    %1199 = vmatpush.msra.mxu0 0.0
    %1200 = vmatpush.msra.mxu0 0.0
    %1201 = vmatpush.msra.mxu0 0.0
    %1202 = vmatpush.msra.mxu0 0.0
    %1203 = vmatpush.msra.mxu0 %v1180
    %1204 = vmatpush.msra.mxu0 %v1179
    %1205 = vmatpush.msra.mxu0 %v1178
    %1206 = vmatpush.msra.mxu0 %v1177
    %1207 = vmatmul.f32.gmra.mxu0 %v1186
    %v1208 = vpop.f32.mrf.mxu0
    %v1209 = vadd.f32 %v1183, %v1208
    %1210 = vmatmul.f32.gmra.mxu0 %v1189
    %v1211 = vpop.f32.mrf.mxu0
    %v1212 = vadd.f32 %v1183, %v1211
    %1213 = vdwg.mxu0
    %1214 = vst.msk [vmem:[#allocation3] sm:$0xff] %vm170, %v1209
    %1215 = vst.msk [vmem:[#allocation3 + $0x8] sm:$0xff] %vm170, %v1212
    %s1216 = scalar_lea.vmem [#allocation12], 32
    %v1217 = vld [vmem:[%s1216] sm:$0xff]
    %v1218 = vld [vmem:[%s1216 + $0x8] sm:$0xff]
    %v1219 = vld [vmem:[%s1216 + $0x10] sm:$0xff]
    %v1220 = vld [vmem:[%s1216 + $0x18] sm:$0xff]
    %s1221 = scalar_lea.vmem [#allocation15], 1
    %v1222 = vld [vmem:[%s1221] sm:$0x1]
    %v1224 = vperm.slane %v1222, 0
    %1226 = vmatpush.msra.mxu0 0.0
    %1227 = vmatpush.msra.mxu0 0.0
    %1228 = vmatpush.msra.mxu0 0.0
    %1229 = vmatpush.msra.mxu0 0.0
    %1230 = vmatpush.msra.mxu0 0.0
    %1231 = vmatpush.msra.mxu0 0.0
    %1232 = vmatpush.msra.mxu0 0.0
    %1233 = vmatpush.msra.mxu0 0.0
    %1234 = vmatpush.msra.mxu0 0.0
    %1235 = vmatpush.msra.mxu0 0.0
    %1236 = vmatpush.msra.mxu0 0.0
    %1237 = vmatpush.msra.mxu0 0.0
    %1238 = vmatpush.msra.mxu0 %v1220
    %1239 = vmatpush.msra.mxu0 %v1219
    %1240 = vmatpush.msra.mxu0 %v1218
    %1241 = vmatpush.msra.mxu0 %v1217
    %1242 = vmatmul.f32.gmra.mxu0 %v1186
    %v1243 = vpop.f32.mrf.mxu0
    %v1244 = vadd.f32 %v1224, %v1243
    %1245 = vmatmul.f32.gmra.mxu0 %v1189
    %v1246 = vpop.f32.mrf.mxu0
    %v1247 = vadd.f32 %v1224, %v1246
    %1248 = vdwg.mxu0
    %1249 = vst.msk [vmem:[#allocation4] sm:$0xff] %vm170, %v1244
    %1250 = vst.msk [vmem:[#allocation4 + $0x8] sm:$0xff] %vm170, %v1247
    %s1251 = scalar_lea.vmem [#allocation12], 64
    %v1252 = vld [vmem:[%s1251] sm:$0xff]
    %v1253 = vld [vmem:[%s1251 + $0x8] sm:$0xff]
    %v1254 = vld [vmem:[%s1251 + $0x10] sm:$0xff]
    %v1255 = vld [vmem:[%s1251 + $0x18] sm:$0xff]
    %s1256 = scalar_lea.vmem [#allocation15], 2
    %v1257 = vld [vmem:[%s1256] sm:$0x1]
    %v1259 = vperm.slane %v1257, 0
    %1261 = vmatpush.msra.mxu0 0.0
    %1262 = vmatpush.msra.mxu0 0.0
    %1263 = vmatpush.msra.mxu0 0.0
    %1264 = vmatpush.msra.mxu0 0.0
    %1265 = vmatpush.msra.mxu0 0.0
    %1266 = vmatpush.msra.mxu0 0.0
    %1267 = vmatpush.msra.mxu0 0.0
    %1268 = vmatpush.msra.mxu0 0.0
    %1269 = vmatpush.msra.mxu0 0.0
    %1270 = vmatpush.msra.mxu0 0.0
    %1271 = vmatpush.msra.mxu0 0.0
    %1272 = vmatpush.msra.mxu0 0.0
    %1273 = vmatpush.msra.mxu0 %v1255
    %1274 = vmatpush.msra.mxu0 %v1254
    %1275 = vmatpush.msra.mxu0 %v1253
    %1276 = vmatpush.msra.mxu0 %v1252
    %1277 = vmatmul.f32.gmra.mxu0 %v1186
    %v1278 = vpop.f32.mrf.mxu0
    %v1279 = vadd.f32 %v1259, %v1278
    %1280 = vmatmul.f32.gmra.mxu0 %v1189
    %v1281 = vpop.f32.mrf.mxu0
    %v1282 = vadd.f32 %v1259, %v1281
    %1283 = vdwg.mxu0
    %1284 = vst.msk [vmem:[#allocation5] sm:$0xff] %vm170, %v1279
    %1285 = vst.msk [vmem:[#allocation5 + $0x8] sm:$0xff] %vm170, %v1282
    %s1286 = scalar_lea.vmem [#allocation12], 96
    %v1287 = vld [vmem:[%s1286] sm:$0xff]
    %v1288 = vld [vmem:[%s1286 + $0x8] sm:$0xff]
    %v1289 = vld [vmem:[%s1286 + $0x10] sm:$0xff]
    %v1290 = vld [vmem:[%s1286 + $0x18] sm:$0xff]
    %s1291 = scalar_lea.vmem [#allocation15], 3
    %v1292 = vld [vmem:[%s1291] sm:$0x1]
    %v1294 = vperm.slane %v1292, 0
    %1296 = vmatpush.msra.mxu0 0.0
    %1297 = vmatpush.msra.mxu0 0.0
    %1298 = vmatpush.msra.mxu0 0.0
    %1299 = vmatpush.msra.mxu0 0.0
    %1300 = vmatpush.msra.mxu0 0.0
    %1301 = vmatpush.msra.mxu0 0.0
    %1302 = vmatpush.msra.mxu0 0.0
    %1303 = vmatpush.msra.mxu0 0.0
    %1304 = vmatpush.msra.mxu0 0.0
    %1305 = vmatpush.msra.mxu0 0.0
    %1306 = vmatpush.msra.mxu0 0.0
    %1307 = vmatpush.msra.mxu0 0.0
    %1308 = vmatpush.msra.mxu0 %v1290
    %1309 = vmatpush.msra.mxu0 %v1289
    %1310 = vmatpush.msra.mxu0 %v1288
    %1311 = vmatpush.msra.mxu0 %v1287
    %1312 = vmatmul.f32.gmra.mxu0 %v1186
    %v1313 = vpop.f32.mrf.mxu0
    %v1314 = vadd.f32 %v1294, %v1313
    %1315 = vmatmul.f32.gmra.mxu0 %v1189
    %v1316 = vpop.f32.mrf.mxu0
    %v1317 = vadd.f32 %v1294, %v1316
    %1318 = vdwg.mxu0
    %1319 = vst.msk [vmem:[#allocation6] sm:$0xff] %vm170, %v1314
    %1320 = vst.msk [vmem:[#allocation6 + $0x8] sm:$0xff] %vm170, %v1317
    %v1321 = vld [vmem:[#allocation13] sm:$0xff]
    %v1322 = vld [vmem:[#allocation13 + $0x8] sm:$0xff]
    %v1323 = vld [vmem:[#allocation13 + $0x10] sm:$0xff]
    %v1324 = vld [vmem:[#allocation13 + $0x18] sm:$0xff]
    %s1325 = scalar_lea.vmem [#allocation13], 32
    %v1326 = vld [vmem:[%s1325] sm:$0xff]
    %v1327 = vld [vmem:[%s1325 + $0x8] sm:$0xff]
    %v1328 = vld [vmem:[%s1325 + $0x10] sm:$0xff]
    %v1329 = vld [vmem:[%s1325 + $0x18] sm:$0xff]
    %s1330 = scalar_lea.vmem [#allocation13], 64
    %v1331 = vld [vmem:[%s1330] sm:$0xff]
    %v1332 = vld [vmem:[%s1330 + $0x8] sm:$0xff]
    %v1333 = vld [vmem:[%s1330 + $0x10] sm:$0xff]
    %v1334 = vld [vmem:[%s1330 + $0x18] sm:$0xff]
    %s1335 = scalar_lea.vmem [#allocation13], 96
    %v1336 = vld [vmem:[%s1335] sm:$0xff]
    %v1337 = vld [vmem:[%s1335 + $0x8] sm:$0xff]
    %v1338 = vld [vmem:[%s1335 + $0x10] sm:$0xff]
    %v1339 = vld [vmem:[%s1335 + $0x18] sm:$0xff]
    %s1340 = scalar_lea.vmem %s1, 2
    %v1341 = vld [vmem:[%s1340] sm:$0x3]
    %v1342 = vld [vmem:[#allocation3] sm:$0x3]
    %v1344 = vsel %vm170, %v1341, 0
    %1346 = vmatpush.msra.mxu0 0.0
    %1347 = vmatpush.msra.mxu0 0.0
    %1348 = vmatpush.msra.mxu0 0.0
    %1349 = vmatpush.msra.mxu0 0.0
    %1350 = vmatpush.msra.mxu0 0.0
    %1351 = vmatpush.msra.mxu0 0.0
    %1352 = vmatpush.msra.mxu0 0.0
    %1353 = vmatpush.msra.mxu0 0.0
    %1354 = vmatpush.msra.mxu0 0.0
    %1355 = vmatpush.msra.mxu0 0.0
    %1356 = vmatpush.msra.mxu0 0.0
    %1357 = vmatpush.msra.mxu0 0.0
    %1358 = vmatpush.msra.mxu0 %v1324
    %1359 = vmatpush.msra.mxu0 %v1323
    %1360 = vmatpush.msra.mxu0 %v1322
    %1361 = vmatpush.msra.mxu0 %v1321
    %1362 = vmatmul.f32.gmra.mxu0 %v1344
    %v1363 = vpop.f32.mrf.mxu0
    %v1364 = vadd.f32 0.0, %v1363
    %1365 = vdwg.mxu0
    %v1366 = vadd.f32 %v1342, %v1364
    %v1367 = vmul.f32 %v1366, 0.5
    %v1368 = vtanh.pop %v1367
    %v1369 = vmul.f32 %v1368, 0.5
    %v1370 = vadd.f32 %v1369, 0.5
    %v1371 = vld [vmem:[#allocation4] sm:$0x3]
    %1372 = vmatpush.msra.mxu0 0.0
    %1373 = vmatpush.msra.mxu0 0.0
    %1374 = vmatpush.msra.mxu0 0.0
    %1375 = vmatpush.msra.mxu0 0.0
    %1376 = vmatpush.msra.mxu0 0.0
    %1377 = vmatpush.msra.mxu0 0.0
    %1378 = vmatpush.msra.mxu0 0.0
    %1379 = vmatpush.msra.mxu0 0.0
    %1380 = vmatpush.msra.mxu0 0.0
    %1381 = vmatpush.msra.mxu0 0.0
    %1382 = vmatpush.msra.mxu0 0.0
    %1383 = vmatpush.msra.mxu0 0.0
    %1384 = vmatpush.msra.mxu0 %v1329
    %1385 = vmatpush.msra.mxu0 %v1328
    %1386 = vmatpush.msra.mxu0 %v1327
    %1387 = vmatpush.msra.mxu0 %v1326
    %1388 = vmatmul.f32.gmra.mxu0 %v1344
    %v1389 = vpop.f32.mrf.mxu0
    %v1390 = vadd.f32 0.0, %v1389
    %1391 = vdwg.mxu0
    %v1392 = vadd.f32 %v1371, %v1390
    %v1393 = vmul.f32 %v1392, 0.5
    %v1394 = vtanh.pop %v1393
    %v1395 = vmul.f32 %v1394, 0.5
    %v1396 = vadd.f32 %v1395, 0.5
    %v1397 = vld [vmem:[#allocation5] sm:$0x3]
    %1398 = vmatpush.msra.mxu0 0.0
    %1399 = vmatpush.msra.mxu0 0.0
    %1400 = vmatpush.msra.mxu0 0.0
    %1401 = vmatpush.msra.mxu0 0.0
    %1402 = vmatpush.msra.mxu0 0.0
    %1403 = vmatpush.msra.mxu0 0.0
    %1404 = vmatpush.msra.mxu0 0.0
    %1405 = vmatpush.msra.mxu0 0.0
    %1406 = vmatpush.msra.mxu0 0.0
    %1407 = vmatpush.msra.mxu0 0.0
    %1408 = vmatpush.msra.mxu0 0.0
    %1409 = vmatpush.msra.mxu0 0.0
    %1410 = vmatpush.msra.mxu0 %v1334
    %1411 = vmatpush.msra.mxu0 %v1333
    %1412 = vmatpush.msra.mxu0 %v1332
    %1413 = vmatpush.msra.mxu0 %v1331
    %1414 = vmatmul.f32.gmra.mxu0 %v1344
    %v1415 = vpop.f32.mrf.mxu0
    %v1416 = vadd.f32 0.0, %v1415
    %1417 = vdwg.mxu0
    %v1418 = vadd.f32 %v1397, %v1416
    %v1419 = vtanh.pop %v1418
    %v1420 = vld [vmem:[#allocation6] sm:$0x3]
    %1421 = vmatpush.msra.mxu0 0.0
    %1422 = vmatpush.msra.mxu0 0.0
    %1423 = vmatpush.msra.mxu0 0.0
    %1424 = vmatpush.msra.mxu0 0.0
    %1425 = vmatpush.msra.mxu0 0.0
    %1426 = vmatpush.msra.mxu0 0.0
    %1427 = vmatpush.msra.mxu0 0.0
    %1428 = vmatpush.msra.mxu0 0.0
    %1429 = vmatpush.msra.mxu0 0.0
    %1430 = vmatpush.msra.mxu0 0.0
    %1431 = vmatpush.msra.mxu0 0.0
    %1432 = vmatpush.msra.mxu0 0.0
    %1433 = vmatpush.msra.mxu0 %v1339
    %1434 = vmatpush.msra.mxu0 %v1338
    %1435 = vmatpush.msra.mxu0 %v1337
    %1436 = vmatpush.msra.mxu0 %v1336
    %1437 = vmatmul.f32.gmra.mxu0 %v1344
    %v1438 = vpop.f32.mrf.mxu0
    %v1439 = vadd.f32 0.0, %v1438
    %1440 = vdwg.mxu0
    %v1441 = vadd.f32 %v1420, %v1439
    %v1442 = vmul.f32 %v1441, 0.5
    %v1443 = vtanh.pop %v1442
    %v1444 = vmul.f32 %v1443, 0.5
    %v1445 = vadd.f32 %v1444, 0.5
    %v1446 = vmul.f32 %v1396, 0.0
    %v1447 = vmul.f32 %v1370, %v1419
    %v1448 = vadd.f32 %v1446, %v1447
    %v1449 = vtanh.pop %v1448
    %v1450 = vmul.f32 %v1445, %v1449
    %1451 = vst.msk [vmem:[#allocation2] sm:$0x3] %vm401, %v1450
    %v1452 = vld [vmem:[#allocation3 + $0x2] sm:$0x3]
    %v1454 = vsel %vm170, %v1450, 0
    %1456 = vmatpush.msra.mxu0 0.0
    %1457 = vmatpush.msra.mxu0 0.0
    %1458 = vmatpush.msra.mxu0 0.0
    %1459 = vmatpush.msra.mxu0 0.0
    %1460 = vmatpush.msra.mxu0 0.0
    %1461 = vmatpush.msra.mxu0 0.0
    %1462 = vmatpush.msra.mxu0 0.0
    %1463 = vmatpush.msra.mxu0 0.0
    %1464 = vmatpush.msra.mxu0 0.0
    %1465 = vmatpush.msra.mxu0 0.0
    %1466 = vmatpush.msra.mxu0 0.0
    %1467 = vmatpush.msra.mxu0 0.0
    %1468 = vmatpush.msra.mxu0 %v1324
    %1469 = vmatpush.msra.mxu0 %v1323
    %1470 = vmatpush.msra.mxu0 %v1322
    %1471 = vmatpush.msra.mxu0 %v1321
    %1472 = vmatmul.f32.gmra.mxu0 %v1454
    %v1473 = vpop.f32.mrf.mxu0
    %v1474 = vadd.f32 0.0, %v1473
    %1475 = vdwg.mxu0
    %v1476 = vadd.f32 %v1452, %v1474
    %v1477 = vmul.f32 %v1476, 0.5
    %v1478 = vtanh.pop %v1477
    %v1479 = vmul.f32 %v1478, 0.5
    %v1480 = vadd.f32 %v1479, 0.5
    %v1481 = vld [vmem:[#allocation4 + $0x2] sm:$0x3]
    %1482 = vmatpush.msra.mxu0 0.0
    %1483 = vmatpush.msra.mxu0 0.0
    %1484 = vmatpush.msra.mxu0 0.0
    %1485 = vmatpush.msra.mxu0 0.0
    %1486 = vmatpush.msra.mxu0 0.0
    %1487 = vmatpush.msra.mxu0 0.0
    %1488 = vmatpush.msra.mxu0 0.0
    %1489 = vmatpush.msra.mxu0 0.0
    %1490 = vmatpush.msra.mxu0 0.0
    %1491 = vmatpush.msra.mxu0 0.0
    %1492 = vmatpush.msra.mxu0 0.0
    %1493 = vmatpush.msra.mxu0 0.0
    %1494 = vmatpush.msra.mxu0 %v1329
    %1495 = vmatpush.msra.mxu0 %v1328
    %1496 = vmatpush.msra.mxu0 %v1327
    %1497 = vmatpush.msra.mxu0 %v1326
    %1498 = vmatmul.f32.gmra.mxu0 %v1454
    %v1499 = vpop.f32.mrf.mxu0
    %v1500 = vadd.f32 0.0, %v1499
    %1501 = vdwg.mxu0
    %v1502 = vadd.f32 %v1481, %v1500
    %v1503 = vmul.f32 %v1502, 0.5
    %v1504 = vtanh.pop %v1503
    %v1505 = vmul.f32 %v1504, 0.5
    %v1506 = vadd.f32 %v1505, 0.5
    %v1507 = vld [vmem:[#allocation5 + $0x2] sm:$0x3]
    %1508 = vmatpush.msra.mxu0 0.0
    %1509 = vmatpush.msra.mxu0 0.0
    %1510 = vmatpush.msra.mxu0 0.0
    %1511 = vmatpush.msra.mxu0 0.0
    %1512 = vmatpush.msra.mxu0 0.0
    %1513 = vmatpush.msra.mxu0 0.0
    %1514 = vmatpush.msra.mxu0 0.0
    %1515 = vmatpush.msra.mxu0 0.0
    %1516 = vmatpush.msra.mxu0 0.0
    %1517 = vmatpush.msra.mxu0 0.0
    %1518 = vmatpush.msra.mxu0 0.0
    %1519 = vmatpush.msra.mxu0 0.0
    %1520 = vmatpush.msra.mxu0 %v1334
    %1521 = vmatpush.msra.mxu0 %v1333
    %1522 = vmatpush.msra.mxu0 %v1332
    %1523 = vmatpush.msra.mxu0 %v1331
    %1524 = vmatmul.f32.gmra.mxu0 %v1454
    %v1525 = vpop.f32.mrf.mxu0
    %v1526 = vadd.f32 0.0, %v1525
    %1527 = vdwg.mxu0
    %v1528 = vadd.f32 %v1507, %v1526
    %v1529 = vtanh.pop %v1528
    %v1530 = vld [vmem:[#allocation6 + $0x2] sm:$0x3]
    %1531 = vmatpush.msra.mxu0 0.0
    %1532 = vmatpush.msra.mxu0 0.0
    %1533 = vmatpush.msra.mxu0 0.0
    %1534 = vmatpush.msra.mxu0 0.0
    %1535 = vmatpush.msra.mxu0 0.0
    %1536 = vmatpush.msra.mxu0 0.0
    %1537 = vmatpush.msra.mxu0 0.0
    %1538 = vmatpush.msra.mxu0 0.0
    %1539 = vmatpush.msra.mxu0 0.0
    %1540 = vmatpush.msra.mxu0 0.0
    %1541 = vmatpush.msra.mxu0 0.0
    %1542 = vmatpush.msra.mxu0 0.0
    %1543 = vmatpush.msra.mxu0 %v1339
    %1544 = vmatpush.msra.mxu0 %v1338
    %1545 = vmatpush.msra.mxu0 %v1337
    %1546 = vmatpush.msra.mxu0 %v1336
    %1547 = vmatmul.f32.gmra.mxu0 %v1454
    %v1548 = vpop.f32.mrf.mxu0
    %v1549 = vadd.f32 0.0, %v1548
    %1550 = vdwg.mxu0
    %v1551 = vadd.f32 %v1530, %v1549
    %v1552 = vmul.f32 %v1551, 0.5
    %v1553 = vtanh.pop %v1552
    %v1554 = vmul.f32 %v1553, 0.5
    %v1555 = vadd.f32 %v1554, 0.5
    %v1556 = vmul.f32 %v1506, %v1448
    %v1557 = vmul.f32 %v1480, %v1529
    %v1558 = vadd.f32 %v1556, %v1557
    %v1559 = vtanh.pop %v1558
    %v1560 = vmul.f32 %v1555, %v1559
    %1561 = vst.msk [vmem:[#allocation2 + $0x2] sm:$0x3] %vm401, %v1560
    %v1562 = vld [vmem:[#allocation3 + $0x4] sm:$0x3]
    %v1564 = vsel %vm170, %v1560, 0
    %1566 = vmatpush.msra.mxu0 0.0
    %1567 = vmatpush.msra.mxu0 0.0
    %1568 = vmatpush.msra.mxu0 0.0
    %1569 = vmatpush.msra.mxu0 0.0
    %1570 = vmatpush.msra.mxu0 0.0
    %1571 = vmatpush.msra.mxu0 0.0
    %1572 = vmatpush.msra.mxu0 0.0
    %1573 = vmatpush.msra.mxu0 0.0
    %1574 = vmatpush.msra.mxu0 0.0
    %1575 = vmatpush.msra.mxu0 0.0
    %1576 = vmatpush.msra.mxu0 0.0
    %1577 = vmatpush.msra.mxu0 0.0
    %1578 = vmatpush.msra.mxu0 %v1324
    %1579 = vmatpush.msra.mxu0 %v1323
    %1580 = vmatpush.msra.mxu0 %v1322
    %1581 = vmatpush.msra.mxu0 %v1321
    %1582 = vmatmul.f32.gmra.mxu0 %v1564
    %v1583 = vpop.f32.mrf.mxu0
    %v1584 = vadd.f32 0.0, %v1583
    %1585 = vdwg.mxu0
    %v1586 = vadd.f32 %v1562, %v1584
    %v1587 = vmul.f32 %v1586, 0.5
    %v1588 = vtanh.pop %v1587
    %v1589 = vmul.f32 %v1588, 0.5
    %v1590 = vadd.f32 %v1589, 0.5
    %v1591 = vld [vmem:[#allocation4 + $0x4] sm:$0x3]
    %1592 = vmatpush.msra.mxu0 0.0
    %1593 = vmatpush.msra.mxu0 0.0
    %1594 = vmatpush.msra.mxu0 0.0
    %1595 = vmatpush.msra.mxu0 0.0
    %1596 = vmatpush.msra.mxu0 0.0
    %1597 = vmatpush.msra.mxu0 0.0
    %1598 = vmatpush.msra.mxu0 0.0
    %1599 = vmatpush.msra.mxu0 0.0
    %1600 = vmatpush.msra.mxu0 0.0
    %1601 = vmatpush.msra.mxu0 0.0
    %1602 = vmatpush.msra.mxu0 0.0
    %1603 = vmatpush.msra.mxu0 0.0
    %1604 = vmatpush.msra.mxu0 %v1329
    %1605 = vmatpush.msra.mxu0 %v1328
    %1606 = vmatpush.msra.mxu0 %v1327
    %1607 = vmatpush.msra.mxu0 %v1326
    %1608 = vmatmul.f32.gmra.mxu0 %v1564
    %v1609 = vpop.f32.mrf.mxu0
    %v1610 = vadd.f32 0.0, %v1609
    %1611 = vdwg.mxu0
    %v1612 = vadd.f32 %v1591, %v1610
    %v1613 = vmul.f32 %v1612, 0.5
    %v1614 = vtanh.pop %v1613
    %v1615 = vmul.f32 %v1614, 0.5
    %v1616 = vadd.f32 %v1615, 0.5
    %v1617 = vld [vmem:[#allocation5 + $0x4] sm:$0x3]
    %1618 = vmatpush.msra.mxu0 0.0
    %1619 = vmatpush.msra.mxu0 0.0
    %1620 = vmatpush.msra.mxu0 0.0
    %1621 = vmatpush.msra.mxu0 0.0
    %1622 = vmatpush.msra.mxu0 0.0
    %1623 = vmatpush.msra.mxu0 0.0
    %1624 = vmatpush.msra.mxu0 0.0
    %1625 = vmatpush.msra.mxu0 0.0
    %1626 = vmatpush.msra.mxu0 0.0
    %1627 = vmatpush.msra.mxu0 0.0
    %1628 = vmatpush.msra.mxu0 0.0
    %1629 = vmatpush.msra.mxu0 0.0
    %1630 = vmatpush.msra.mxu0 %v1334
    %1631 = vmatpush.msra.mxu0 %v1333
    %1632 = vmatpush.msra.mxu0 %v1332
    %1633 = vmatpush.msra.mxu0 %v1331
    %1634 = vmatmul.f32.gmra.mxu0 %v1564
    %v1635 = vpop.f32.mrf.mxu0
    %v1636 = vadd.f32 0.0, %v1635
    %1637 = vdwg.mxu0
    %v1638 = vadd.f32 %v1617, %v1636
    %v1639 = vtanh.pop %v1638
    %v1640 = vld [vmem:[#allocation6 + $0x4] sm:$0x3]
    %1641 = vmatpush.msra.mxu0 0.0
    %1642 = vmatpush.msra.mxu0 0.0
    %1643 = vmatpush.msra.mxu0 0.0
    %1644 = vmatpush.msra.mxu0 0.0
    %1645 = vmatpush.msra.mxu0 0.0
    %1646 = vmatpush.msra.mxu0 0.0
    %1647 = vmatpush.msra.mxu0 0.0
    %1648 = vmatpush.msra.mxu0 0.0
    %1649 = vmatpush.msra.mxu0 0.0
    %1650 = vmatpush.msra.mxu0 0.0
    %1651 = vmatpush.msra.mxu0 0.0
    %1652 = vmatpush.msra.mxu0 0.0
    %1653 = vmatpush.msra.mxu0 %v1339
    %1654 = vmatpush.msra.mxu0 %v1338
    %1655 = vmatpush.msra.mxu0 %v1337
    %1656 = vmatpush.msra.mxu0 %v1336
    %1657 = vmatmul.f32.gmra.mxu0 %v1564
    %v1658 = vpop.f32.mrf.mxu0
    %v1659 = vadd.f32 0.0, %v1658
    %1660 = vdwg.mxu0
    %v1661 = vadd.f32 %v1640, %v1659
    %v1662 = vmul.f32 %v1661, 0.5
    %v1663 = vtanh.pop %v1662
    %v1664 = vmul.f32 %v1663, 0.5
    %v1665 = vadd.f32 %v1664, 0.5
    %v1666 = vmul.f32 %v1616, %v1558
    %v1667 = vmul.f32 %v1590, %v1639
    %v1668 = vadd.f32 %v1666, %v1667
    %v1669 = vtanh.pop %v1668
    %v1670 = vmul.f32 %v1665, %v1669
    %1671 = vst.msk [vmem:[#allocation2 + $0x4] sm:$0x3] %vm401, %v1670
    %v1672 = vld [vmem:[#allocation3 + $0x6] sm:$0x3]
    %v1674 = vsel %vm170, %v1670, 0
    %1676 = vmatpush.msra.mxu0 0.0
    %1677 = vmatpush.msra.mxu0 0.0
    %1678 = vmatpush.msra.mxu0 0.0
    %1679 = vmatpush.msra.mxu0 0.0
    %1680 = vmatpush.msra.mxu0 0.0
    %1681 = vmatpush.msra.mxu0 0.0
    %1682 = vmatpush.msra.mxu0 0.0
    %1683 = vmatpush.msra.mxu0 0.0
    %1684 = vmatpush.msra.mxu0 0.0
    %1685 = vmatpush.msra.mxu0 0.0
    %1686 = vmatpush.msra.mxu0 0.0
    %1687 = vmatpush.msra.mxu0 0.0
    %1688 = vmatpush.msra.mxu0 %v1324
    %1689 = vmatpush.msra.mxu0 %v1323
    %1690 = vmatpush.msra.mxu0 %v1322
    %1691 = vmatpush.msra.mxu0 %v1321
    %1692 = vmatmul.f32.gmra.mxu0 %v1674
    %v1693 = vpop.f32.mrf.mxu0
    %v1694 = vadd.f32 0.0, %v1693
    %1695 = vdwg.mxu0
    %v1696 = vadd.f32 %v1672, %v1694
    %v1697 = vmul.f32 %v1696, 0.5
    %v1698 = vtanh.pop %v1697
    %v1699 = vmul.f32 %v1698, 0.5
    %v1700 = vadd.f32 %v1699, 0.5
    %v1701 = vld [vmem:[#allocation4 + $0x6] sm:$0x3]
    %1702 = vmatpush.msra.mxu0 0.0
    %1703 = vmatpush.msra.mxu0 0.0
    %1704 = vmatpush.msra.mxu0 0.0
    %1705 = vmatpush.msra.mxu0 0.0
    %1706 = vmatpush.msra.mxu0 0.0
    %1707 = vmatpush.msra.mxu0 0.0
    %1708 = vmatpush.msra.mxu0 0.0
    %1709 = vmatpush.msra.mxu0 0.0
    %1710 = vmatpush.msra.mxu0 0.0
    %1711 = vmatpush.msra.mxu0 0.0
    %1712 = vmatpush.msra.mxu0 0.0
    %1713 = vmatpush.msra.mxu0 0.0
    %1714 = vmatpush.msra.mxu0 %v1329
    %1715 = vmatpush.msra.mxu0 %v1328
    %1716 = vmatpush.msra.mxu0 %v1327
    %1717 = vmatpush.msra.mxu0 %v1326
    %1718 = vmatmul.f32.gmra.mxu0 %v1674
    %v1719 = vpop.f32.mrf.mxu0
    %v1720 = vadd.f32 0.0, %v1719
    %1721 = vdwg.mxu0
    %v1722 = vadd.f32 %v1701, %v1720
    %v1723 = vmul.f32 %v1722, 0.5
    %v1724 = vtanh.pop %v1723
    %v1725 = vmul.f32 %v1724, 0.5
    %v1726 = vadd.f32 %v1725, 0.5
    %v1727 = vld [vmem:[#allocation5 + $0x6] sm:$0x3]
    %1728 = vmatpush.msra.mxu0 0.0
    %1729 = vmatpush.msra.mxu0 0.0
    %1730 = vmatpush.msra.mxu0 0.0
    %1731 = vmatpush.msra.mxu0 0.0
    %1732 = vmatpush.msra.mxu0 0.0
    %1733 = vmatpush.msra.mxu0 0.0
    %1734 = vmatpush.msra.mxu0 0.0
    %1735 = vmatpush.msra.mxu0 0.0
    %1736 = vmatpush.msra.mxu0 0.0
    %1737 = vmatpush.msra.mxu0 0.0
    %1738 = vmatpush.msra.mxu0 0.0
    %1739 = vmatpush.msra.mxu0 0.0
    %1740 = vmatpush.msra.mxu0 %v1334
    %1741 = vmatpush.msra.mxu0 %v1333
    %1742 = vmatpush.msra.mxu0 %v1332
    %1743 = vmatpush.msra.mxu0 %v1331
    %1744 = vmatmul.f32.gmra.mxu0 %v1674
    %v1745 = vpop.f32.mrf.mxu0
    %v1746 = vadd.f32 0.0, %v1745
    %1747 = vdwg.mxu0
    %v1748 = vadd.f32 %v1727, %v1746
    %v1749 = vtanh.pop %v1748
    %v1750 = vld [vmem:[#allocation6 + $0x6] sm:$0x3]
    %1751 = vmatpush.msra.mxu0 0.0
    %1752 = vmatpush.msra.mxu0 0.0
    %1753 = vmatpush.msra.mxu0 0.0
    %1754 = vmatpush.msra.mxu0 0.0
    %1755 = vmatpush.msra.mxu0 0.0
    %1756 = vmatpush.msra.mxu0 0.0
    %1757 = vmatpush.msra.mxu0 0.0
    %1758 = vmatpush.msra.mxu0 0.0
    %1759 = vmatpush.msra.mxu0 0.0
    %1760 = vmatpush.msra.mxu0 0.0
    %1761 = vmatpush.msra.mxu0 0.0
    %1762 = vmatpush.msra.mxu0 0.0
    %1763 = vmatpush.msra.mxu0 %v1339
    %1764 = vmatpush.msra.mxu0 %v1338
    %1765 = vmatpush.msra.mxu0 %v1337
    %1766 = vmatpush.msra.mxu0 %v1336
    %1767 = vmatmul.f32.gmra.mxu0 %v1674
    %v1768 = vpop.f32.mrf.mxu0
    %v1769 = vadd.f32 0.0, %v1768
    %1770 = vdwg.mxu0
    %v1771 = vadd.f32 %v1750, %v1769
    %v1772 = vmul.f32 %v1771, 0.5
    %v1773 = vtanh.pop %v1772
    %v1774 = vmul.f32 %v1773, 0.5
    %v1775 = vadd.f32 %v1774, 0.5
    %v1776 = vmul.f32 %v1726, %v1668
    %v1777 = vmul.f32 %v1700, %v1749
    %v1778 = vadd.f32 %v1776, %v1777
    %v1779 = vtanh.pop %v1778
    %v1780 = vmul.f32 %v1775, %v1779
    %1781 = vst.msk [vmem:[#allocation2 + $0x6] sm:$0x3] %vm401, %v1780
    %v1782 = vld [vmem:[#allocation3 + $0x8] sm:$0x3]
    %v1784 = vsel %vm170, %v1780, 0
    %1786 = vmatpush.msra.mxu0 0.0
    %1787 = vmatpush.msra.mxu0 0.0
    %1788 = vmatpush.msra.mxu0 0.0
    %1789 = vmatpush.msra.mxu0 0.0
    %1790 = vmatpush.msra.mxu0 0.0
    %1791 = vmatpush.msra.mxu0 0.0
    %1792 = vmatpush.msra.mxu0 0.0
    %1793 = vmatpush.msra.mxu0 0.0
    %1794 = vmatpush.msra.mxu0 0.0
    %1795 = vmatpush.msra.mxu0 0.0
    %1796 = vmatpush.msra.mxu0 0.0
    %1797 = vmatpush.msra.mxu0 0.0
    %1798 = vmatpush.msra.mxu0 %v1324
    %1799 = vmatpush.msra.mxu0 %v1323
    %1800 = vmatpush.msra.mxu0 %v1322
    %1801 = vmatpush.msra.mxu0 %v1321
    %1802 = vmatmul.f32.gmra.mxu0 %v1784
    %v1803 = vpop.f32.mrf.mxu0
    %v1804 = vadd.f32 0.0, %v1803
    %1805 = vdwg.mxu0
    %v1806 = vadd.f32 %v1782, %v1804
    %v1807 = vmul.f32 %v1806, 0.5
    %v1808 = vtanh.pop %v1807
    %v1809 = vmul.f32 %v1808, 0.5
    %v1810 = vadd.f32 %v1809, 0.5
    %v1811 = vld [vmem:[#allocation4 + $0x8] sm:$0x3]
    %1812 = vmatpush.msra.mxu0 0.0
    %1813 = vmatpush.msra.mxu0 0.0
    %1814 = vmatpush.msra.mxu0 0.0
    %1815 = vmatpush.msra.mxu0 0.0
    %1816 = vmatpush.msra.mxu0 0.0
    %1817 = vmatpush.msra.mxu0 0.0
    %1818 = vmatpush.msra.mxu0 0.0
    %1819 = vmatpush.msra.mxu0 0.0
    %1820 = vmatpush.msra.mxu0 0.0
    %1821 = vmatpush.msra.mxu0 0.0
    %1822 = vmatpush.msra.mxu0 0.0
    %1823 = vmatpush.msra.mxu0 0.0
    %1824 = vmatpush.msra.mxu0 %v1329
    %1825 = vmatpush.msra.mxu0 %v1328
    %1826 = vmatpush.msra.mxu0 %v1327
    %1827 = vmatpush.msra.mxu0 %v1326
    %1828 = vmatmul.f32.gmra.mxu0 %v1784
    %v1829 = vpop.f32.mrf.mxu0
    %v1830 = vadd.f32 0.0, %v1829
    %1831 = vdwg.mxu0
    %v1832 = vadd.f32 %v1811, %v1830
    %v1833 = vmul.f32 %v1832, 0.5
    %v1834 = vtanh.pop %v1833
    %v1835 = vmul.f32 %v1834, 0.5
    %v1836 = vadd.f32 %v1835, 0.5
    %v1837 = vld [vmem:[#allocation5 + $0x8] sm:$0x3]
    %1838 = vmatpush.msra.mxu0 0.0
    %1839 = vmatpush.msra.mxu0 0.0
    %1840 = vmatpush.msra.mxu0 0.0
    %1841 = vmatpush.msra.mxu0 0.0
    %1842 = vmatpush.msra.mxu0 0.0
    %1843 = vmatpush.msra.mxu0 0.0
    %1844 = vmatpush.msra.mxu0 0.0
    %1845 = vmatpush.msra.mxu0 0.0
    %1846 = vmatpush.msra.mxu0 0.0
    %1847 = vmatpush.msra.mxu0 0.0
    %1848 = vmatpush.msra.mxu0 0.0
    %1849 = vmatpush.msra.mxu0 0.0
    %1850 = vmatpush.msra.mxu0 %v1334
    %1851 = vmatpush.msra.mxu0 %v1333
    %1852 = vmatpush.msra.mxu0 %v1332
    %1853 = vmatpush.msra.mxu0 %v1331
    %1854 = vmatmul.f32.gmra.mxu0 %v1784
    %v1855 = vpop.f32.mrf.mxu0
    %v1856 = vadd.f32 0.0, %v1855
    %1857 = vdwg.mxu0
    %v1858 = vadd.f32 %v1837, %v1856
    %v1859 = vtanh.pop %v1858
    %v1860 = vld [vmem:[#allocation6 + $0x8] sm:$0x3]
    %1861 = vmatpush.msra.mxu0 0.0
    %1862 = vmatpush.msra.mxu0 0.0
    %1863 = vmatpush.msra.mxu0 0.0
    %1864 = vmatpush.msra.mxu0 0.0
    %1865 = vmatpush.msra.mxu0 0.0
    %1866 = vmatpush.msra.mxu0 0.0
    %1867 = vmatpush.msra.mxu0 0.0
    %1868 = vmatpush.msra.mxu0 0.0
    %1869 = vmatpush.msra.mxu0 0.0
    %1870 = vmatpush.msra.mxu0 0.0
    %1871 = vmatpush.msra.mxu0 0.0
    %1872 = vmatpush.msra.mxu0 0.0
    %1873 = vmatpush.msra.mxu0 %v1339
    %1874 = vmatpush.msra.mxu0 %v1338
    %1875 = vmatpush.msra.mxu0 %v1337
    %1876 = vmatpush.msra.mxu0 %v1336
    %1877 = vmatmul.f32.gmra.mxu0 %v1784
    %v1878 = vpop.f32.mrf.mxu0
    %v1879 = vadd.f32 0.0, %v1878
    %1880 = vdwg.mxu0
    %v1881 = vadd.f32 %v1860, %v1879
    %v1882 = vmul.f32 %v1881, 0.5
    %v1883 = vtanh.pop %v1882
    %v1884 = vmul.f32 %v1883, 0.5
    %v1885 = vadd.f32 %v1884, 0.5
    %v1886 = vmul.f32 %v1836, %v1778
    %v1887 = vmul.f32 %v1810, %v1859
    %v1888 = vadd.f32 %v1886, %v1887
    %v1889 = vtanh.pop %v1888
    %v1890 = vmul.f32 %v1885, %v1889
    %1891 = vst.msk [vmem:[#allocation2 + $0x8] sm:$0x3] %vm401, %v1890
    %v1892 = vld [vmem:[#allocation3 + $0xa] sm:$0x3]
    %v1894 = vsel %vm170, %v1890, 0
    %1896 = vmatpush.msra.mxu0 0.0
    %1897 = vmatpush.msra.mxu0 0.0
    %1898 = vmatpush.msra.mxu0 0.0
    %1899 = vmatpush.msra.mxu0 0.0
    %1900 = vmatpush.msra.mxu0 0.0
    %1901 = vmatpush.msra.mxu0 0.0
    %1902 = vmatpush.msra.mxu0 0.0
    %1903 = vmatpush.msra.mxu0 0.0
    %1904 = vmatpush.msra.mxu0 0.0
    %1905 = vmatpush.msra.mxu0 0.0
    %1906 = vmatpush.msra.mxu0 0.0
    %1907 = vmatpush.msra.mxu0 0.0
    %1908 = vmatpush.msra.mxu0 %v1324
    %1909 = vmatpush.msra.mxu0 %v1323
    %1910 = vmatpush.msra.mxu0 %v1322
    %1911 = vmatpush.msra.mxu0 %v1321
    %1912 = vmatmul.f32.gmra.mxu0 %v1894
    %v1913 = vpop.f32.mrf.mxu0
    %v1914 = vadd.f32 0.0, %v1913
    %1915 = vdwg.mxu0
    %v1916 = vadd.f32 %v1892, %v1914
    %v1917 = vmul.f32 %v1916, 0.5
    %v1918 = vtanh.pop %v1917
    %v1919 = vmul.f32 %v1918, 0.5
    %v1920 = vadd.f32 %v1919, 0.5
    %v1921 = vld [vmem:[#allocation4 + $0xa] sm:$0x3]
    %1922 = vmatpush.msra.mxu0 0.0
    %1923 = vmatpush.msra.mxu0 0.0
    %1924 = vmatpush.msra.mxu0 0.0
    %1925 = vmatpush.msra.mxu0 0.0
    %1926 = vmatpush.msra.mxu0 0.0
    %1927 = vmatpush.msra.mxu0 0.0
    %1928 = vmatpush.msra.mxu0 0.0
    %1929 = vmatpush.msra.mxu0 0.0
    %1930 = vmatpush.msra.mxu0 0.0
    %1931 = vmatpush.msra.mxu0 0.0
    %1932 = vmatpush.msra.mxu0 0.0
    %1933 = vmatpush.msra.mxu0 0.0
    %1934 = vmatpush.msra.mxu0 %v1329
    %1935 = vmatpush.msra.mxu0 %v1328
    %1936 = vmatpush.msra.mxu0 %v1327
    %1937 = vmatpush.msra.mxu0 %v1326
    %1938 = vmatmul.f32.gmra.mxu0 %v1894
    %v1939 = vpop.f32.mrf.mxu0
    %v1940 = vadd.f32 0.0, %v1939
    %1941 = vdwg.mxu0
    %v1942 = vadd.f32 %v1921, %v1940
    %v1943 = vmul.f32 %v1942, 0.5
    %v1944 = vtanh.pop %v1943
    %v1945 = vmul.f32 %v1944, 0.5
    %v1946 = vadd.f32 %v1945, 0.5
    %v1947 = vld [vmem:[#allocation5 + $0xa] sm:$0x3]
    %1948 = vmatpush.msra.mxu0 0.0
    %1949 = vmatpush.msra.mxu0 0.0
    %1950 = vmatpush.msra.mxu0 0.0
    %1951 = vmatpush.msra.mxu0 0.0
    %1952 = vmatpush.msra.mxu0 0.0
    %1953 = vmatpush.msra.mxu0 0.0
    %1954 = vmatpush.msra.mxu0 0.0
    %1955 = vmatpush.msra.mxu0 0.0
    %1956 = vmatpush.msra.mxu0 0.0
    %1957 = vmatpush.msra.mxu0 0.0
    %1958 = vmatpush.msra.mxu0 0.0
    %1959 = vmatpush.msra.mxu0 0.0
    %1960 = vmatpush.msra.mxu0 %v1334
    %1961 = vmatpush.msra.mxu0 %v1333
    %1962 = vmatpush.msra.mxu0 %v1332
    %1963 = vmatpush.msra.mxu0 %v1331
    %1964 = vmatmul.f32.gmra.mxu0 %v1894
    %v1965 = vpop.f32.mrf.mxu0
    %v1966 = vadd.f32 0.0, %v1965
    %1967 = vdwg.mxu0
    %v1968 = vadd.f32 %v1947, %v1966
    %v1969 = vtanh.pop %v1968
    %v1970 = vld [vmem:[#allocation6 + $0xa] sm:$0x3]
    %1971 = vmatpush.msra.mxu0 0.0
    %1972 = vmatpush.msra.mxu0 0.0
    %1973 = vmatpush.msra.mxu0 0.0
    %1974 = vmatpush.msra.mxu0 0.0
    %1975 = vmatpush.msra.mxu0 0.0
    %1976 = vmatpush.msra.mxu0 0.0
    %1977 = vmatpush.msra.mxu0 0.0
    %1978 = vmatpush.msra.mxu0 0.0
    %1979 = vmatpush.msra.mxu0 0.0
    %1980 = vmatpush.msra.mxu0 0.0
    %1981 = vmatpush.msra.mxu0 0.0
    %1982 = vmatpush.msra.mxu0 0.0
    %1983 = vmatpush.msra.mxu0 %v1339
    %1984 = vmatpush.msra.mxu0 %v1338
    %1985 = vmatpush.msra.mxu0 %v1337
    %1986 = vmatpush.msra.mxu0 %v1336
    %1987 = vmatmul.f32.gmra.mxu0 %v1894
    %v1988 = vpop.f32.mrf.mxu0
    %v1989 = vadd.f32 0.0, %v1988
    %1990 = vdwg.mxu0
    %v1991 = vadd.f32 %v1970, %v1989
    %v1992 = vmul.f32 %v1991, 0.5
    %v1993 = vtanh.pop %v1992
    %v1994 = vmul.f32 %v1993, 0.5
    %v1995 = vadd.f32 %v1994, 0.5
    %v1996 = vmul.f32 %v1946, %v1888
    %v1997 = vmul.f32 %v1920, %v1969
    %v1998 = vadd.f32 %v1996, %v1997
    %v1999 = vtanh.pop %v1998
    %v2000 = vmul.f32 %v1995, %v1999
    %2001 = vst.msk [vmem:[#allocation2 + $0xa] sm:$0x3] %vm401, %v2000
    %v2002 = vld [vmem:[#allocation3 + $0xc] sm:$0x3]
    %v2004 = vsel %vm170, %v2000, 0
    %2006 = vmatpush.msra.mxu0 0.0
    %2007 = vmatpush.msra.mxu0 0.0
    %2008 = vmatpush.msra.mxu0 0.0
    %2009 = vmatpush.msra.mxu0 0.0
    %2010 = vmatpush.msra.mxu0 0.0
    %2011 = vmatpush.msra.mxu0 0.0
    %2012 = vmatpush.msra.mxu0 0.0
    %2013 = vmatpush.msra.mxu0 0.0
    %2014 = vmatpush.msra.mxu0 0.0
    %2015 = vmatpush.msra.mxu0 0.0
    %2016 = vmatpush.msra.mxu0 0.0
    %2017 = vmatpush.msra.mxu0 0.0
    %2018 = vmatpush.msra.mxu0 %v1324
    %2019 = vmatpush.msra.mxu0 %v1323
    %2020 = vmatpush.msra.mxu0 %v1322
    %2021 = vmatpush.msra.mxu0 %v1321
    %2022 = vmatmul.f32.gmra.mxu0 %v2004
    %v2023 = vpop.f32.mrf.mxu0
    %v2024 = vadd.f32 0.0, %v2023
    %2025 = vdwg.mxu0
    %v2026 = vadd.f32 %v2002, %v2024
    %v2027 = vmul.f32 %v2026, 0.5
    %v2028 = vtanh.pop %v2027
    %v2029 = vmul.f32 %v2028, 0.5
    %v2030 = vadd.f32 %v2029, 0.5
    %v2031 = vld [vmem:[#allocation4 + $0xc] sm:$0x3]
    %2032 = vmatpush.msra.mxu0 0.0
    %2033 = vmatpush.msra.mxu0 0.0
    %2034 = vmatpush.msra.mxu0 0.0
    %2035 = vmatpush.msra.mxu0 0.0
    %2036 = vmatpush.msra.mxu0 0.0
    %2037 = vmatpush.msra.mxu0 0.0
    %2038 = vmatpush.msra.mxu0 0.0
    %2039 = vmatpush.msra.mxu0 0.0
    %2040 = vmatpush.msra.mxu0 0.0
    %2041 = vmatpush.msra.mxu0 0.0
    %2042 = vmatpush.msra.mxu0 0.0
    %2043 = vmatpush.msra.mxu0 0.0
    %2044 = vmatpush.msra.mxu0 %v1329
    %2045 = vmatpush.msra.mxu0 %v1328
    %2046 = vmatpush.msra.mxu0 %v1327
    %2047 = vmatpush.msra.mxu0 %v1326
    %2048 = vmatmul.f32.gmra.mxu0 %v2004
    %v2049 = vpop.f32.mrf.mxu0
    %v2050 = vadd.f32 0.0, %v2049
    %2051 = vdwg.mxu0
    %v2052 = vadd.f32 %v2031, %v2050
    %v2053 = vmul.f32 %v2052, 0.5
    %v2054 = vtanh.pop %v2053
    %v2055 = vmul.f32 %v2054, 0.5
    %v2056 = vadd.f32 %v2055, 0.5
    %v2057 = vld [vmem:[#allocation5 + $0xc] sm:$0x3]
    %2058 = vmatpush.msra.mxu0 0.0
    %2059 = vmatpush.msra.mxu0 0.0
    %2060 = vmatpush.msra.mxu0 0.0
    %2061 = vmatpush.msra.mxu0 0.0
    %2062 = vmatpush.msra.mxu0 0.0
    %2063 = vmatpush.msra.mxu0 0.0
    %2064 = vmatpush.msra.mxu0 0.0
    %2065 = vmatpush.msra.mxu0 0.0
    %2066 = vmatpush.msra.mxu0 0.0
    %2067 = vmatpush.msra.mxu0 0.0
    %2068 = vmatpush.msra.mxu0 0.0
    %2069 = vmatpush.msra.mxu0 0.0
    %2070 = vmatpush.msra.mxu0 %v1334
    %2071 = vmatpush.msra.mxu0 %v1333
    %2072 = vmatpush.msra.mxu0 %v1332
    %2073 = vmatpush.msra.mxu0 %v1331
    %2074 = vmatmul.f32.gmra.mxu0 %v2004
    %v2075 = vpop.f32.mrf.mxu0
    %v2076 = vadd.f32 0.0, %v2075
    %2077 = vdwg.mxu0
    %v2078 = vadd.f32 %v2057, %v2076
    %v2079 = vtanh.pop %v2078
    %v2080 = vld [vmem:[#allocation6 + $0xc] sm:$0x3]
    %2081 = vmatpush.msra.mxu0 0.0
    %2082 = vmatpush.msra.mxu0 0.0
    %2083 = vmatpush.msra.mxu0 0.0
    %2084 = vmatpush.msra.mxu0 0.0
    %2085 = vmatpush.msra.mxu0 0.0
    %2086 = vmatpush.msra.mxu0 0.0
    %2087 = vmatpush.msra.mxu0 0.0
    %2088 = vmatpush.msra.mxu0 0.0
    %2089 = vmatpush.msra.mxu0 0.0
    %2090 = vmatpush.msra.mxu0 0.0
    %2091 = vmatpush.msra.mxu0 0.0
    %2092 = vmatpush.msra.mxu0 0.0
    %2093 = vmatpush.msra.mxu0 %v1339
    %2094 = vmatpush.msra.mxu0 %v1338
    %2095 = vmatpush.msra.mxu0 %v1337
    %2096 = vmatpush.msra.mxu0 %v1336
    %2097 = vmatmul.f32.gmra.mxu0 %v2004
    %v2098 = vpop.f32.mrf.mxu0
    %v2099 = vadd.f32 0.0, %v2098
    %2100 = vdwg.mxu0
    %v2101 = vadd.f32 %v2080, %v2099
    %v2102 = vmul.f32 %v2101, 0.5
    %v2103 = vtanh.pop %v2102
    %v2104 = vmul.f32 %v2103, 0.5
    %v2105 = vadd.f32 %v2104, 0.5
    %v2106 = vmul.f32 %v2056, %v1998
    %v2107 = vmul.f32 %v2030, %v2079
    %v2108 = vadd.f32 %v2106, %v2107
    %v2109 = vtanh.pop %v2108
    %v2110 = vmul.f32 %v2105, %v2109
    %2111 = vst.msk [vmem:[#allocation2 + $0xc] sm:$0x3] %vm401, %v2110
    %v2112 = vld [vmem:[#allocation3 + $0xe] sm:$0x3]
    %v2114 = vsel %vm170, %v2110, 0
    %2116 = vmatpush.msra.mxu0 0.0
    %2117 = vmatpush.msra.mxu0 0.0
    %2118 = vmatpush.msra.mxu0 0.0
    %2119 = vmatpush.msra.mxu0 0.0
    %2120 = vmatpush.msra.mxu0 0.0
    %2121 = vmatpush.msra.mxu0 0.0
    %2122 = vmatpush.msra.mxu0 0.0
    %2123 = vmatpush.msra.mxu0 0.0
    %2124 = vmatpush.msra.mxu0 0.0
    %2125 = vmatpush.msra.mxu0 0.0
    %2126 = vmatpush.msra.mxu0 0.0
    %2127 = vmatpush.msra.mxu0 0.0
    %2128 = vmatpush.msra.mxu0 %v1324
    %2129 = vmatpush.msra.mxu0 %v1323
    %2130 = vmatpush.msra.mxu0 %v1322
    %2131 = vmatpush.msra.mxu0 %v1321
    %2132 = vmatmul.f32.gmra.mxu0 %v2114
    %v2133 = vpop.f32.mrf.mxu0
    %v2134 = vadd.f32 0.0, %v2133
    %2135 = vdwg.mxu0
    %v2136 = vadd.f32 %v2112, %v2134
    %v2137 = vmul.f32 %v2136, 0.5
    %v2138 = vtanh.pop %v2137
    %v2139 = vmul.f32 %v2138, 0.5
    %v2140 = vadd.f32 %v2139, 0.5
    %v2141 = vld [vmem:[#allocation4 + $0xe] sm:$0x3]
    %2142 = vmatpush.msra.mxu0 0.0
    %2143 = vmatpush.msra.mxu0 0.0
    %2144 = vmatpush.msra.mxu0 0.0
    %2145 = vmatpush.msra.mxu0 0.0
    %2146 = vmatpush.msra.mxu0 0.0
    %2147 = vmatpush.msra.mxu0 0.0
    %2148 = vmatpush.msra.mxu0 0.0
    %2149 = vmatpush.msra.mxu0 0.0
    %2150 = vmatpush.msra.mxu0 0.0
    %2151 = vmatpush.msra.mxu0 0.0
    %2152 = vmatpush.msra.mxu0 0.0
    %2153 = vmatpush.msra.mxu0 0.0
    %2154 = vmatpush.msra.mxu0 %v1329
    %2155 = vmatpush.msra.mxu0 %v1328
    %2156 = vmatpush.msra.mxu0 %v1327
    %2157 = vmatpush.msra.mxu0 %v1326
    %2158 = vmatmul.f32.gmra.mxu0 %v2114
    %v2159 = vpop.f32.mrf.mxu0
    %v2160 = vadd.f32 0.0, %v2159
    %2161 = vdwg.mxu0
    %v2162 = vadd.f32 %v2141, %v2160
    %v2163 = vmul.f32 %v2162, 0.5
    %v2164 = vtanh.pop %v2163
    %v2165 = vmul.f32 %v2164, 0.5
    %v2166 = vadd.f32 %v2165, 0.5
    %v2167 = vld [vmem:[#allocation5 + $0xe] sm:$0x3]
    %2168 = vmatpush.msra.mxu0 0.0
    %2169 = vmatpush.msra.mxu0 0.0
    %2170 = vmatpush.msra.mxu0 0.0
    %2171 = vmatpush.msra.mxu0 0.0
    %2172 = vmatpush.msra.mxu0 0.0
    %2173 = vmatpush.msra.mxu0 0.0
    %2174 = vmatpush.msra.mxu0 0.0
    %2175 = vmatpush.msra.mxu0 0.0
    %2176 = vmatpush.msra.mxu0 0.0
    %2177 = vmatpush.msra.mxu0 0.0
    %2178 = vmatpush.msra.mxu0 0.0
    %2179 = vmatpush.msra.mxu0 0.0
    %2180 = vmatpush.msra.mxu0 %v1334
    %2181 = vmatpush.msra.mxu0 %v1333
    %2182 = vmatpush.msra.mxu0 %v1332
    %2183 = vmatpush.msra.mxu0 %v1331
    %2184 = vmatmul.f32.gmra.mxu0 %v2114
    %v2185 = vpop.f32.mrf.mxu0
    %v2186 = vadd.f32 0.0, %v2185
    %2187 = vdwg.mxu0
    %v2188 = vadd.f32 %v2167, %v2186
    %v2189 = vtanh.pop %v2188
    %v2190 = vld [vmem:[#allocation6 + $0xe] sm:$0x3]
    %2191 = vmatpush.msra.mxu0 0.0
    %2192 = vmatpush.msra.mxu0 0.0
    %2193 = vmatpush.msra.mxu0 0.0
    %2194 = vmatpush.msra.mxu0 0.0
    %2195 = vmatpush.msra.mxu0 0.0
    %2196 = vmatpush.msra.mxu0 0.0
    %2197 = vmatpush.msra.mxu0 0.0
    %2198 = vmatpush.msra.mxu0 0.0
    %2199 = vmatpush.msra.mxu0 0.0
    %2200 = vmatpush.msra.mxu0 0.0
    %2201 = vmatpush.msra.mxu0 0.0
    %2202 = vmatpush.msra.mxu0 0.0
    %2203 = vmatpush.msra.mxu0 %v1339
    %2204 = vmatpush.msra.mxu0 %v1338
    %2205 = vmatpush.msra.mxu0 %v1337
    %2206 = vmatpush.msra.mxu0 %v1336
    %2207 = vmatmul.f32.gmra.mxu0 %v2114
    %v2208 = vpop.f32.mrf.mxu0
    %v2209 = vadd.f32 0.0, %v2208
    %2210 = vdwg.mxu0
    %v2211 = vadd.f32 %v2190, %v2209
    %v2212 = vmul.f32 %v2211, 0.5
    %v2213 = vtanh.pop %v2212
    %v2214 = vmul.f32 %v2213, 0.5
    %v2215 = vadd.f32 %v2214, 0.5
    %v2216 = vmul.f32 %v2166, %v2108
    %v2217 = vmul.f32 %v2140, %v2189
    %v2218 = vadd.f32 %v2216, %v2217
    %v2219 = vtanh.pop %v2218
    %v2220 = vmul.f32 %v2215, %v2219
    %2221 = vst.msk [vmem:[#allocation2 + $0xe] sm:$0x3] %vm401, %v2220
    %s2222 = scalar_lea.vmem [#allocation18], 2
    %2223 = vst.msk [vmem:[%s2222] sm:$0x3] %vm401, %v2220
    %s2224 = scalar_lea.vmem [#allocation19], 2
    %2225 = vst.msk [vmem:[%s2224] sm:$0x3] %vm401, %v2218
    %v2226 = vld [vmem:[#allocation2] sm:$0xff]
    %v2227 = vld [vmem:[#allocation2 + $0x8] sm:$0xff]
    %v2228 = vld [vmem:[%s8] sm:$0xff]
    %v2229 = vld [vmem:[%s8 + $0x8] sm:$0xff]
    %v2230 = vld [vmem:[%s8 + $0x10] sm:$0xff]
    %v2231 = vld [vmem:[%s8 + $0x18] sm:$0xff]
    %v2232 = vld [vmem:[#allocation16] sm:$0x1]
    %v2234 = vperm.slane %v2232, 0
    %v2237 = vsel %vm170, %v2226, 0
    %v2240 = vsel %vm170, %v2227, 0
    %2242 = vmatpush.msra.mxu0 0.0
    %2243 = vmatpush.msra.mxu0 0.0
    %2244 = vmatpush.msra.mxu0 0.0
    %2245 = vmatpush.msra.mxu0 0.0
    %2246 = vmatpush.msra.mxu0 0.0
    %2247 = vmatpush.msra.mxu0 0.0
    %2248 = vmatpush.msra.mxu0 0.0
    %2249 = vmatpush.msra.mxu0 0.0
    %2250 = vmatpush.msra.mxu0 0.0
    %2251 = vmatpush.msra.mxu0 0.0
    %2252 = vmatpush.msra.mxu0 0.0
    %2253 = vmatpush.msra.mxu0 0.0
    %2254 = vmatpush.msra.mxu0 %v2231
    %2255 = vmatpush.msra.mxu0 %v2230
    %2256 = vmatpush.msra.mxu0 %v2229
    %2257 = vmatpush.msra.mxu0 %v2228
    %2258 = vmatmul.f32.gmra.mxu0 %v2237
    %v2259 = vpop.f32.mrf.mxu0
    %v2260 = vadd.f32 %v2234, %v2259
    %2261 = vmatmul.f32.gmra.mxu0 %v2240
    %v2262 = vpop.f32.mrf.mxu0
    %v2263 = vadd.f32 %v2234, %v2262
    %2264 = vdwg.mxu0
    %v2265 = vmul.f32 %v2260, 0.5
    %v2266 = vmul.f32 %v2263, 0.5
    %v2267 = vtanh.pop %v2265
    %v2268 = vtanh.pop %v2266
    %v2269 = vmul.f32 %v2267, 0.5
    %v2270 = vmul.f32 %v2268, 0.5
    %v2271 = vadd.f32 %v2269, 0.5
    %v2272 = vadd.f32 %v2270, 0.5
    %2273 = vst.msk [vmem:[%s10] sm:$0xff] %vm140, %v2271
    %2274 = vst.msk [vmem:[%s10 + $0x8] sm:$0xff] %vm140, %v2272
    // Predicated region
    $region66: #{rnn_decoder_forward.1} parent=1 // pred_check
      _
    $region67: #{rnn_decoder_forward.1} parent=1 // pred_check_branch
      %2276 = sbr.rel (0) target = $region69
    $region68: #{rnn_decoder_forward.1} parent=1 // pred_region
      _
    $region69: #{rnn_decoder_forward.1} parent=1 // pred_fallthru
      _
    // Predicated region
    $region70: #{rnn_decoder_forward.1} parent=1 // pred_check
      _
    $region71: #{rnn_decoder_forward.1} parent=1 // pred_check_branch
      %2278 = sbr.rel (0) target = $region73
    $region72: #{rnn_decoder_forward.1} parent=1 // pred_region
      %2280 = vsyncadd [#allocation9], 0
      %s2281 = sshll.u32 [#allocation18], 4
      %s2282 = int_to_ptr.vmem [resolvable:$true] %s2281
      %s2283 = sshll.u32 %s11, 4
      %s2284 = int_to_ptr.hbm [resolvable:$true] %s2283
      %2289 = dma.vmem_to_hbm [thread:$0]  %s2282, 64, %s2284, [#allocation9], 32, 32, 2
    $region73: #{rnn_decoder_forward.1} parent=1 // pred_fallthru
      _
    // Predicated region
    $region74: #{rnn_decoder_forward.1} parent=1 // pred_check
      _
    $region75: #{rnn_decoder_forward.1} parent=1 // pred_check_branch
      %2291 = sbr.rel (0) target = $region77
    $region76: #{rnn_decoder_forward.1} parent=1 // pred_region
      %2293 = vsyncadd [#allocation20], 0
      %s2294 = sshll.u32 [#allocation19], 4
      %s2295 = int_to_ptr.vmem [resolvable:$true] %s2294
      %s2296 = sshll.u32 %s12, 4
      %s2297 = int_to_ptr.hbm [resolvable:$true] %s2296
      %2302 = dma.vmem_to_hbm [thread:$0]  %s2295, 64, %s2297, [#allocation20], 32, 32, 2
    $region77: #{rnn_decoder_forward.1} parent=1 // pred_fallthru
      _
    // Predicated region
    $region78: #{rnn_decoder_forward.1} parent=1 // pred_check
      _
    $region79: #{rnn_decoder_forward.1} parent=1 // pred_check_branch
      %2304 = sbr.rel (0) target = $region81
    $region80: #{rnn_decoder_forward.1} parent=1 // pred_region
      _
    $region81: #{rnn_decoder_forward.1} parent=1 // pred_fallthru
      _
    // Predicated region
    $region82: #{rnn_decoder_forward.1} parent=1 // pred_check
      _
    $region83: #{rnn_decoder_forward.1} parent=1 // pred_check_branch
      %2306 = sbr.rel (0) target = $region85
    $region84: #{rnn_decoder_forward.1} parent=1 // pred_region
      %2308 = dma.done [#allocation9], 64
    $region85: #{rnn_decoder_forward.1} parent=1 // pred_fallthru
      _
    // Predicated region
    $region86: #{rnn_decoder_forward.1} parent=1 // pred_check
      _
    $region87: #{rnn_decoder_forward.1} parent=1 // pred_check_branch
      %2310 = sbr.rel (0) target = $region89
    $region88: #{rnn_decoder_forward.1} parent=1 // pred_region
      %2312 = dma.done [#allocation20], 64
    $region89: #{rnn_decoder_forward.1} parent=1 // pred_fallthru
      _
    %2313 = vsyncpa [#allocation8], 1
    %2314 = vsyncpa [#allocation11], 1
    %2315 = vsyncpa [#allocation14], 1
    %2316 = vsyncpa [#allocation17], 1
    %2317 = vsyncpa [#allocation9], 1
    %2318 = vsyncpa [#allocation20], 1

</llo_original>
